<compile_context>
chip_gen: v5e
topology: v5e:2x2
jax: 0.10.0
libtpu: 0.0.40
codegen_flags: <defaults>
</compile_context>

<pallas_src>
import functools

import numpy as np
import jax
import jax.numpy as jnp
from jax import lax
from jax.experimental import pallas as pl
from jax.experimental.pallas import tpu as pltpu

# ----- fixed constants from MPLC_CNN.__init__ --------------------------------
K_W = 49                       # conv tap width (both convs) & avg-pool window
ADA_W = 1952                   # AdaptiveMaxPool2d target width
MP_K, MP_S = 100, 10           # maxpool_3 / maxpool_4 kernel & stride
W5 = (ADA_W - MP_K) // MP_S + 1        # 186 (width after maxpool_3)
W6 = (W5 - MP_K) // MP_S + 1           # 9   (width after maxpool_4)
BN_EPS = 1e-5


# ================================ kernel =====================================
def _fused_kernel(x_ref, w1_ref, s1_ref, w2_ref, s2_ref, g5_ref,
                  hid_ref, out_ref):
    """Per-batch fused forward:
       conv1+BN+ReLU -> conv2+BN+ReLU (+ bypass avgpool + add)
       -> adaptive max(1952) -> maxpool(100,10) -> maxpool(100,10) -> global avg.
    """
    x1 = x_ref[0]                                   # (S, Wl)
    w_l = x1.shape[-1]
    w2w = w_l - K_W + 1
    w3w = w2w - K_W + 1

    # ---- SSTSC conv (Conv2d(1, C, (S, 49))) as a 49-tap MXU reduction over
    # lane-shifted views.  layer0 scale/bias, conv bias and eval BatchNorm are
    # pre-folded into w1_ref / s1_ref, so the epilogue is shift + ReLU only. --
    acc1 = jnp.dot(w1_ref[0], x1[:, 0:w2w], preferred_element_type=jnp.float32)
    for k in range(1, K_W):
        acc1 = acc1 + jnp.dot(w1_ref[k], x1[:, k:k + w2w],
                              preferred_element_type=jnp.float32)
    x2 = jnp.maximum(acc1 + s1_ref[...], 0.0)       # (C, w2w), lane-dense width

    # ---- Main path Conv2d(C, C, (1, 49)) + BN + ReLU, fused with the bypass
    # AvgPool2d((1,49)) (running sum of the same tap views) and the add. ------
    tap0 = x2[:, 0:w3w]
    acc2 = jnp.dot(w2_ref[0], tap0, preferred_element_type=jnp.float32)
    byp = tap0
    for k in range(1, K_W):
        tap = x2[:, k:k + w3w]
        acc2 = acc2 + jnp.dot(w2_ref[k], tap, preferred_element_type=jnp.float32)
        byp = byp + tap
    x3 = jnp.maximum(acc2 + s2_ref[...], 0.0) + byp * (1.0 / K_W)   # (C, w3w)

    # ---- AdaptiveMaxPool2d((1,1952)) fused with MaxPool2d((1,100),(1,10)):
    # x5[c, j] = max(x3[c, a_j:b_j]) realized as a max over a few exact
    # one-hot gather matmuls (static (w3w, 186) selection matrices). ----------
    x5 = jnp.dot(x3, g5_ref[0], preferred_element_type=jnp.float32)  # (C, W5)
    for t in range(1, g5_ref.shape[0]):
        x5 = jnp.maximum(
            x5, jnp.dot(x3, g5_ref[t], preferred_element_type=jnp.float32))
    hid_ref[...] = x5[None]

    # ---- MaxPool2d((1,100),(1,10)) on fixed-width x5 (bounded mask), then
    # the global average pool. ------------------------------------------------
    row = lax.broadcasted_iota(jnp.int32, (W6, W5), 0)
    col = lax.broadcasted_iota(jnp.int32, (W6, W5), 1)
    sel = (col >= MP_S * row) & (col < MP_S * row + MP_K)
    x6 = jnp.max(jnp.where(sel[None], x5[:, None, :], -jnp.inf), axis=-1)  # (C, W6)
    out_ref[...] = jnp.mean(x6, axis=-1, keepdims=True)[None]


# ============================ pallas wrapper =================================
def _pallas_fused(xs, w1k, s1, w2k, s2, g5):
    B, S, w_l = xs.shape
    C = s1.shape[0]
    w3w = w_l - 2 * (K_W - 1)
    maxw = g5.shape[0]
    return pl.pallas_call(
        _fused_kernel,
        out_shape=(jax.ShapeDtypeStruct((B, C, W5), jnp.float32),
                   jax.ShapeDtypeStruct((B, C, 1), jnp.float32)),
        grid=(B,),
        in_specs=[
            pl.BlockSpec((1, S, w_l), lambda b: (b, 0, 0)),
            pl.BlockSpec((K_W, C, S), lambda b: (0, 0, 0)),
            pl.BlockSpec((C, 1), lambda b: (0, 0)),
            pl.BlockSpec((K_W, C, C), lambda b: (0, 0, 0)),
            pl.BlockSpec((C, 1), lambda b: (0, 0)),
            pl.BlockSpec((maxw, w3w, W5), lambda b: (0, 0, 0)),
        ],
        out_specs=(
            pl.BlockSpec((1, C, W5), lambda b: (b, 0, 0)),
            pl.BlockSpec((1, C, 1), lambda b: (b, 0, 0)),
        ),
        compiler_params=pltpu.CompilerParams(
            dimension_semantics=("parallel",)),
    )(xs, w1k, s1, w2k, s2, g5)


# =========================== host-side preparation ===========================
def _fold_params(params):
    """Fold layer0, conv biases and eval-mode BN into per-tap weights/shifts."""
    scale1 = params["bn1_g"] * lax.rsqrt(params["bn1_v"] + BN_EPS)
    w1e = params["w1"][:, 0]                                     # (C, S, 49)
    w1k = jnp.transpose(w1e, (2, 0, 1)) * (params["w0"] * scale1)[None, :, None]
    s1 = (scale1 * (params["b0"] * jnp.sum(w1e, axis=(1, 2))
                    + params["b1"] - params["bn1_m"]) + params["bn1_b"])[:, None]

    scale2 = params["bn2_g"] * lax.rsqrt(params["bn2_v"] + BN_EPS)
    w2e = params["w2"][:, :, 0]                                  # (C, C, 49)
    w2k = jnp.transpose(w2e, (2, 0, 1)) * scale2[None, :, None]
    s2 = (scale2 * (params["b2"] - params["bn2_m"]) + params["bn2_b"])[:, None]
    return w1k, s1, w2k, s2


def _build_g5(w3):
    """One-hot selection matrices so that max_t (x3 @ G[t]) ==
    MaxPool((1,100),(1,10))(AdaptiveMaxPool((1,1952))(x3)).  Window j of the
    fused pooling covers the contiguous x3 range [a_j, b_j)."""
    j = np.arange(W5)
    a = (MP_S * j * w3) // ADA_W                       # floor(10j * w3 / 1952)
    b = -((-(MP_S * j + MP_K) * w3) // ADA_W)          # ceil((10j+100)*w3/1952)
    maxw = int((b - a).max())
    g = np.zeros((maxw, w3, W5), np.float32)
    cols = np.arange(W5)
    for t in range(maxw):
        rows = np.minimum(a + t, b - 1)
        g[t, rows, cols] = 1.0
    return jnp.asarray(g)


# ======================= plain-JAX reference (no Pallas) =====================
def _ref_pool_chain(x3_bc):
    """Direct translation of adaptive-max -> maxpool_3 -> maxpool_4 -> avg."""
    _, w3 = x3_bc.shape
    idx = np.arange(ADA_W)
    starts = (idx * w3) // ADA_W
    ends = -((-(idx + 1) * w3) // ADA_W)
    maxwin = int((ends - starts).max())
    gidx = np.stack([np.minimum(starts + w, ends - 1) for w in range(maxwin)], 0)
    x4 = jnp.max(x3_bc[:, gidx], axis=1)

    def mp(v, k, s):
        n_out = (v.shape[1] - k) // s + 1
        win = np.arange(n_out)[:, None] * s + np.arange(k)[None, :]
        return jnp.max(v[:, win], axis=-1)

    x5 = mp(x4, MP_K, MP_S)
    x6 = mp(x5, MP_K, MP_S)
    return x5, jnp.mean(x6, axis=-1, keepdims=True)


def _ref_forward(x, params):
    B = x.shape[0]
    C = params["b1"].shape[0]
    hp = lax.Precision.HIGHEST
    x1 = x[:, 0, :, ::5] * params["w0"] + params["b0"]           # (B, S, Wl)
    w2w = x1.shape[-1] - K_W + 1
    p1 = jnp.stack([x1[..., k:k + w2w] for k in range(K_W)], axis=-1)
    z1 = (jnp.einsum("bswk,csk->bcw", p1, params["w1"][:, 0], precision=hp)
          + params["b1"][None, :, None])
    s1 = params["bn1_g"] / jnp.sqrt(params["bn1_v"] + BN_EPS)
    x2 = jnp.maximum(s1[None, :, None] * (z1 - params["bn1_m"][None, :, None])
                     + params["bn1_b"][None, :, None], 0.0)
    w3w = w2w - K_W + 1
    p2 = jnp.stack([x2[..., k:k + w3w] for k in range(K_W)], axis=-1)
    z2 = (jnp.einsum("bdwk,cdk->bcw", p2, params["w2"][:, :, 0], precision=hp)
          + params["b2"][None, :, None])
    s2 = params["bn2_g"] / jnp.sqrt(params["bn2_v"] + BN_EPS)
    main = jnp.maximum(s2[None, :, None] * (z2 - params["bn2_m"][None, :, None])
                       + params["bn2_b"][None, :, None], 0.0)
    x3 = main + jnp.mean(p2, axis=-1)
    x5, gp = _ref_pool_chain(x3.reshape(B * C, w3w))
    return gp.reshape(B, C), x5.reshape(B, C * W5)


# =============================== forward / params ============================
def init_params(key, num_classes, sensor):
    C, S = num_classes, sensor
    ks = jax.random.split(key, 14)

    def n(k, shape, s=1.0):
        return s * jax.random.normal(k, shape, jnp.float32)

    return {
        "w0": 1.0 + n(ks[0], (), 0.5),            # Conv2d(1,1,(1,1)) weight
        "b0": n(ks[1], (), 0.1),                  # and bias
        "w1": n(ks[2], (C, 1, S, K_W), 0.05),     # SSTSC conv
        "b1": n(ks[3], (C,), 0.1),
        "bn1_g": 1.0 + n(ks[4], (C,), 0.1),
        "bn1_b": n(ks[5], (C,), 0.1),
        "bn1_m": n(ks[6], (C,), 0.1),
        "bn1_v": jax.random.uniform(ks[7], (C,), jnp.float32, 0.5, 1.5),
        "w2": n(ks[8], (C, C, 1, K_W), 0.05),     # main-path conv
        "b2": n(ks[9], (C,), 0.1),
        "bn2_g": 1.0 + n(ks[10], (C,), 0.1),
        "bn2_b": n(ks[11], (C,), 0.1),
        "bn2_m": n(ks[12], (C,), 0.1),
        "bn2_v": jax.random.uniform(ks[13], (C,), jnp.float32, 0.5, 1.5),
    }


@functools.partial(jax.jit, static_argnames=("num_classes", "sensor", "use_pallas"))
def mplc_cnn_forward(x, params, num_classes, sensor, use_pallas=True):
    del sensor  # shapes carry it
    if not use_pallas:
        return _ref_forward(x, params)
    B = x.shape[0]
    C = num_classes
    xs = x[:, 0, :, ::5]                # layer0 stride-5 subsample (scale/bias
    w_l = xs.shape[-1]                  # are folded into the conv1 weights)
    w3w = w_l - 2 * (K_W - 1)
    w1k, s1, w2k, s2 = _fold_params(params)
    g5 = _build_g5(w3w)
    hid, gp = _pallas_fused(xs, w1k, s1, w2k, s2, g5)
    out = gp[:, :, 0]                                    # (B, C)
    hidden_feature = hid.reshape(B, C * W5)              # (B, C*186)
    return out, hidden_feature


# ================================== main =====================================
if __name__ == "__main__":
    num_classes, sensor = 4, 6
    B, W_in = 2, 640   # -> Wl=128, conv1 out 80, conv2 out 32 (all non-empty)

    key = jax.random.PRNGKey(0)
    kx, kp = jax.random.split(key)
    x = jax.random.normal(kx, (B, 1, sensor, W_in), jnp.float32)
    params = init_params(kp, num_classes, sensor)

    out, hidden = mplc_cnn_forward(x, params, num_classes=num_classes,
                                   sensor=sensor, use_pallas=True)
    out = jax.block_until_ready(out)
    hidden = jax.block_until_ready(hidden)

    out_ref, hidden_ref = mplc_cnn_forward(x, params, num_classes=num_classes,
                                           sensor=sensor, use_pallas=False)
    assert out.shape == (B, num_classes)
    assert hidden.shape == (B, num_classes * W5)

    if (jnp.allclose(out, out_ref, rtol=1e-3, atol=1e-3)
            and jnp.allclose(hidden, hidden_ref, rtol=1e-3, atol=1e-3)):
        print("KERNEL_OK")
    else:
        print("MISMATCH",
              float(jnp.max(jnp.abs(out - out_ref))),
              float(jnp.max(jnp.abs(hidden - hidden_ref))))
</pallas_src>

<mosaic_0001>
module attributes {stable_mosaic.version = 11 : i64} {
  func.func @_fused_kernel(%arg0: i32, %arg1: memref<1x6x128xf32, #tpu.memory_space<vmem>>, %arg2: memref<49x4x6xf32, #tpu.memory_space<vmem>>, %arg3: memref<4x1xf32, #tpu.memory_space<vmem>>, %arg4: memref<49x4x4xf32, #tpu.memory_space<vmem>>, %arg5: memref<4x1xf32, #tpu.memory_space<vmem>>, %arg6: memref<3x32x186xf32, #tpu.memory_space<vmem>>, %arg7: memref<1x4x186xf32, #tpu.memory_space<vmem>>, %arg8: memref<1x4x1xf32, #tpu.memory_space<vmem>>) attributes {dimension_semantics = [#tpu.dimension_semantics<parallel>], iteration_bounds = array<i64: 2>, scalar_prefetch = 0 : i64, scratch_operands = 0 : i64, tpu.core_type = #tpu.core_type<tc>, window_params = [{transform_indices = @transform_0, window_bounds = array<i64: 1, 6, 128>}, {pipeline_mode = #tpu.pipeline_mode<synchronous>, transform_indices = @transform_1, window_bounds = array<i64: 49, 4, 6>}, {pipeline_mode = #tpu.pipeline_mode<synchronous>, transform_indices = @transform_2, window_bounds = array<i64: 4, 1>}, {pipeline_mode = #tpu.pipeline_mode<synchronous>, transform_indices = @transform_3, window_bounds = array<i64: 49, 4, 4>}, {pipeline_mode = #tpu.pipeline_mode<synchronous>, transform_indices = @transform_4, window_bounds = array<i64: 4, 1>}, {pipeline_mode = #tpu.pipeline_mode<synchronous>, transform_indices = @transform_5, window_bounds = array<i64: 3, 32, 186>}, {transform_indices = @transform_6, window_bounds = array<i64: 1, 4, 186>}, {transform_indices = @transform_7, window_bounds = array<i64: 1, 4, 1>}]} {
    %c0 = arith.constant 0 : index
    %c0_0 = arith.constant 0 : index
    %c0_1 = arith.constant 0 : index
    %0 = vector.load %arg1[%c0, %c0_0, %c0_1] : memref<1x6x128xf32, #tpu.memory_space<vmem>>, vector<1x6x128xf32>
    %1 = vector.shape_cast %0 : vector<1x6x128xf32> to vector<6x128xf32>
    %c0_2 = arith.constant 0 : index
    %c0_3 = arith.constant 0 : index
    %c0_4 = arith.constant 0 : index
    %2 = vector.load %arg2[%c0_2, %c0_3, %c0_4] : memref<49x4x6xf32, #tpu.memory_space<vmem>>, vector<1x4x6xf32>
    %3 = vector.shape_cast %2 : vector<1x4x6xf32> to vector<4x6xf32>
    %4 = vector.extract_strided_slice %1 {offsets = [0, 0], sizes = [6, 80], strides = [1, 1]} : vector<6x128xf32> to vector<6x80xf32>
    %cst = arith.constant dense<0.000000e+00> : vector<4x80xf32>
    %5 = tpu.matmul %3, %4, %cst {dimension_numbers = #tpu.dot_dimension_numbers<[1], [0], [0], [1], [0, 0, 1, 1], [], []>} : vector<4x6xf32>, vector<6x80xf32>, vector<4x80xf32> -> vector<4x80xf32>
    %c1 = arith.constant 1 : index
    %c0_5 = arith.constant 0 : index
    %c0_6 = arith.constant 0 : index
    %6 = vector.load %arg2[%c1, %c0_5, %c0_6] : memref<49x4x6xf32, #tpu.memory_space<vmem>>, vector<1x4x6xf32>
    %7 = vector.shape_cast %6 : vector<1x4x6xf32> to vector<4x6xf32>
    %8 = vector.extract_strided_slice %1 {offsets = [0, 1], sizes = [6, 80], strides = [1, 1]} : vector<6x128xf32> to vector<6x80xf32>
    %cst_7 = arith.constant dense<0.000000e+00> : vector<4x80xf32>
    %9 = tpu.matmul %7, %8, %cst_7 {dimension_numbers = #tpu.dot_dimension_numbers<[1], [0], [0], [1], [0, 0, 1, 1], [], []>} : vector<4x6xf32>, vector<6x80xf32>, vector<4x80xf32> -> vector<4x80xf32>
    %10 = arith.addf %5, %9 : vector<4x80xf32>
    %c2 = arith.constant 2 : index
    %c0_8 = arith.constant 0 : index
    %c0_9 = arith.constant 0 : index
    %11 = vector.load %arg2[%c2, %c0_8, %c0_9] : memref<49x4x6xf32, #tpu.memory_space<vmem>>, vector<1x4x6xf32>
    %12 = vector.shape_cast %11 : vector<1x4x6xf32> to vector<4x6xf32>
    %13 = vector.extract_strided_slice %1 {offsets = [0, 2], sizes = [6, 80], strides = [1, 1]} : vector<6x128xf32> to vector<6x80xf32>
    %cst_10 = arith.constant dense<0.000000e+00> : vector<4x80xf32>
    %14 = tpu.matmul %12, %13, %cst_10 {dimension_numbers = #tpu.dot_dimension_numbers<[1], [0], [0], [1], [0, 0, 1, 1], [], []>} : vector<4x6xf32>, vector<6x80xf32>, vector<4x80xf32> -> vector<4x80xf32>
    %15 = arith.addf %10, %14 : vector<4x80xf32>
    %c3 = arith.constant 3 : index
    %c0_11 = arith.constant 0 : index
    %c0_12 = arith.constant 0 : index
    %16 = vector.load %arg2[%c3, %c0_11, %c0_12] : memref<49x4x6xf32, #tpu.memory_space<vmem>>, vector<1x4x6xf32>
    %17 = vector.shape_cast %16 : vector<1x4x6xf32> to vector<4x6xf32>
    %18 = vector.extract_strided_slice %1 {offsets = [0, 3], sizes = [6, 80], strides = [1, 1]} : vector<6x128xf32> to vector<6x80xf32>
    %cst_13 = arith.constant dense<0.000000e+00> : vector<4x80xf32>
    %19 = tpu.matmul %17, %18, %cst_13 {dimension_numbers = #tpu.dot_dimension_numbers<[1], [0], [0], [1], [0, 0, 1, 1], [], []>} : vector<4x6xf32>, vector<6x80xf32>, vector<4x80xf32> -> vector<4x80xf32>
    %20 = arith.addf %15, %19 : vector<4x80xf32>
    %c4 = arith.constant 4 : index
    %c0_14 = arith.constant 0 : index
    %c0_15 = arith.constant 0 : index
    %21 = vector.load %arg2[%c4, %c0_14, %c0_15] : memref<49x4x6xf32, #tpu.memory_space<vmem>>, vector<1x4x6xf32>
    %22 = vector.shape_cast %21 : vector<1x4x6xf32> to vector<4x6xf32>
    %23 = vector.extract_strided_slice %1 {offsets = [0, 4], sizes = [6, 80], strides = [1, 1]} : vector<6x128xf32> to vector<6x80xf32>
    %cst_16 = arith.constant dense<0.000000e+00> : vector<4x80xf32>
    %24 = tpu.matmul %22, %23, %cst_16 {dimension_numbers = #tpu.dot_dimension_numbers<[1], [0], [0], [1], [0, 0, 1, 1], [], []>} : vector<4x6xf32>, vector<6x80xf32>, vector<4x80xf32> -> vector<4x80xf32>
    %25 = arith.addf %20, %24 : vector<4x80xf32>
    %c5 = arith.constant 5 : index
    %c0_17 = arith.constant 0 : index
    %c0_18 = arith.constant 0 : index
    %26 = vector.load %arg2[%c5, %c0_17, %c0_18] : memref<49x4x6xf32, #tpu.memory_space<vmem>>, vector<1x4x6xf32>
    %27 = vector.shape_cast %26 : vector<1x4x6xf32> to vector<4x6xf32>
    %28 = vector.extract_strided_slice %1 {offsets = [0, 5], sizes = [6, 80], strides = [1, 1]} : vector<6x128xf32> to vector<6x80xf32>
    %cst_19 = arith.constant dense<0.000000e+00> : vector<4x80xf32>
    %29 = tpu.matmul %27, %28, %cst_19 {dimension_numbers = #tpu.dot_dimension_numbers<[1], [0], [0], [1], [0, 0, 1, 1], [], []>} : vector<4x6xf32>, vector<6x80xf32>, vector<4x80xf32> -> vector<4x80xf32>
    %30 = arith.addf %25, %29 : vector<4x80xf32>
    %c6 = arith.constant 6 : index
    %c0_20 = arith.constant 0 : index
    %c0_21 = arith.constant 0 : index
    %31 = vector.load %arg2[%c6, %c0_20, %c0_21] : memref<49x4x6xf32, #tpu.memory_space<vmem>>, vector<1x4x6xf32>
    %32 = vector.shape_cast %31 : vector<1x4x6xf32> to vector<4x6xf32>
    %33 = vector.extract_strided_slice %1 {offsets = [0, 6], sizes = [6, 80], strides = [1, 1]} : vector<6x128xf32> to vector<6x80xf32>
    %cst_22 = arith.constant dense<0.000000e+00> : vector<4x80xf32>
    %34 = tpu.matmul %32, %33, %cst_22 {dimension_numbers = #tpu.dot_dimension_numbers<[1], [0], [0], [1], [0, 0, 1, 1], [], []>} : vector<4x6xf32>, vector<6x80xf32>, vector<4x80xf32> -> vector<4x80xf32>
    %35 = arith.addf %30, %34 : vector<4x80xf32>
    %c7 = arith.constant 7 : index
    %c0_23 = arith.constant 0 : index
    %c0_24 = arith.constant 0 : index
    %36 = vector.load %arg2[%c7, %c0_23, %c0_24] : memref<49x4x6xf32, #tpu.memory_space<vmem>>, vector<1x4x6xf32>
    %37 = vector.shape_cast %36 : vector<1x4x6xf32> to vector<4x6xf32>
    %38 = vector.extract_strided_slice %1 {offsets = [0, 7], sizes = [6, 80], strides = [1, 1]} : vector<6x128xf32> to vector<6x80xf32>
    %cst_25 = arith.constant dense<0.000000e+00> : vector<4x80xf32>
    %39 = tpu.matmul %37, %38, %cst_25 {dimension_numbers = #tpu.dot_dimension_numbers<[1], [0], [0], [1], [0, 0, 1, 1], [], []>} : vector<4x6xf32>, vector<6x80xf32>, vector<4x80xf32> -> vector<4x80xf32>
    %40 = arith.addf %35, %39 : vector<4x80xf32>
    %c8 = arith.constant 8 : index
    %c0_26 = arith.constant 0 : index
    %c0_27 = arith.constant 0 : index
    %41 = vector.load %arg2[%c8, %c0_26, %c0_27] : memref<49x4x6xf32, #tpu.memory_space<vmem>>, vector<1x4x6xf32>
    %42 = vector.shape_cast %41 : vector<1x4x6xf32> to vector<4x6xf32>
    %43 = vector.extract_strided_slice %1 {offsets = [0, 8], sizes = [6, 80], strides = [1, 1]} : vector<6x128xf32> to vector<6x80xf32>
    %cst_28 = arith.constant dense<0.000000e+00> : vector<4x80xf32>
    %44 = tpu.matmul %42, %43, %cst_28 {dimension_numbers = #tpu.dot_dimension_numbers<[1], [0], [0], [1], [0, 0, 1, 1], [], []>} : vector<4x6xf32>, vector<6x80xf32>, vector<4x80xf32> -> vector<4x80xf32>
    %45 = arith.addf %40, %44 : vector<4x80xf32>
    %c9 = arith.constant 9 : index
    %c0_29 = arith.constant 0 : index
    %c0_30 = arith.constant 0 : index
    %46 = vector.load %arg2[%c9, %c0_29, %c0_30] : memref<49x4x6xf32, #tpu.memory_space<vmem>>, vector<1x4x6xf32>
    %47 = vector.shape_cast %46 : vector<1x4x6xf32> to vector<4x6xf32>
    %48 = vector.extract_strided_slice %1 {offsets = [0, 9], sizes = [6, 80], strides = [1, 1]} : vector<6x128xf32> to vector<6x80xf32>
    %cst_31 = arith.constant dense<0.000000e+00> : vector<4x80xf32>
    %49 = tpu.matmul %47, %48, %cst_31 {dimension_numbers = #tpu.dot_dimension_numbers<[1], [0], [0], [1], [0, 0, 1, 1], [], []>} : vector<4x6xf32>, vector<6x80xf32>, vector<4x80xf32> -> vector<4x80xf32>
    %50 = arith.addf %45, %49 : vector<4x80xf32>
    %c10 = arith.constant 10 : index
    %c0_32 = arith.constant 0 : index
    %c0_33 = arith.constant 0 : index
    %51 = vector.load %arg2[%c10, %c0_32, %c0_33] : memref<49x4x6xf32, #tpu.memory_space<vmem>>, vector<1x4x6xf32>
    %52 = vector.shape_cast %51 : vector<1x4x6xf32> to vector<4x6xf32>
    %53 = vector.extract_strided_slice %1 {offsets = [0, 10], sizes = [6, 80], strides = [1, 1]} : vector<6x128xf32> to vector<6x80xf32>
    %cst_34 = arith.constant dense<0.000000e+00> : vector<4x80xf32>
    %54 = tpu.matmul %52, %53, %cst_34 {dimension_numbers = #tpu.dot_dimension_numbers<[1], [0], [0], [1], [0, 0, 1, 1], [], []>} : vector<4x6xf32>, vector<6x80xf32>, vector<4x80xf32> -> vector<4x80xf32>
    %55 = arith.addf %50, %54 : vector<4x80xf32>
    %c11 = arith.constant 11 : index
    %c0_35 = arith.constant 0 : index
    %c0_36 = arith.constant 0 : index
    %56 = vector.load %arg2[%c11, %c0_35, %c0_36] : memref<49x4x6xf32, #tpu.memory_space<vmem>>, vector<1x4x6xf32>
    %57 = vector.shape_cast %56 : vector<1x4x6xf32> to vector<4x6xf32>
    %58 = vector.extract_strided_slice %1 {offsets = [0, 11], sizes = [6, 80], strides = [1, 1]} : vector<6x128xf32> to vector<6x80xf32>
    %cst_37 = arith.constant dense<0.000000e+00> : vector<4x80xf32>
    %59 = tpu.matmul %57, %58, %cst_37 {dimension_numbers = #tpu.dot_dimension_numbers<[1], [0], [0], [1], [0, 0, 1, 1], [], []>} : vector<4x6xf32>, vector<6x80xf32>, vector<4x80xf32> -> vector<4x80xf32>
    %60 = arith.addf %55, %59 : vector<4x80xf32>
    %c12 = arith.constant 12 : index
    %c0_38 = arith.constant 0 : index
    %c0_39 = arith.constant 0 : index
    %61 = vector.load %arg2[%c12, %c0_38, %c0_39] : memref<49x4x6xf32, #tpu.memory_space<vmem>>, vector<1x4x6xf32>
    %62 = vector.shape_cast %61 : vector<1x4x6xf32> to vector<4x6xf32>
    %63 = vector.extract_strided_slice %1 {offsets = [0, 12], sizes = [6, 80], strides = [1, 1]} : vector<6x128xf32> to vector<6x80xf32>
    %cst_40 = arith.constant dense<0.000000e+00> : vector<4x80xf32>
    %64 = tpu.matmul %62, %63, %cst_40 {dimension_numbers = #tpu.dot_dimension_numbers<[1], [0], [0], [1], [0, 0, 1, 1], [], []>} : vector<4x6xf32>, vector<6x80xf32>, vector<4x80xf32> -> vector<4x80xf32>
    %65 = arith.addf %60, %64 : vector<4x80xf32>
    %c13 = arith.constant 13 : index
    %c0_41 = arith.constant 0 : index
    %c0_42 = arith.constant 0 : index
    %66 = vector.load %arg2[%c13, %c0_41, %c0_42] : memref<49x4x6xf32, #tpu.memory_space<vmem>>, vector<1x4x6xf32>
    %67 = vector.shape_cast %66 : vector<1x4x6xf32> to vector<4x6xf32>
    %68 = vector.extract_strided_slice %1 {offsets = [0, 13], sizes = [6, 80], strides = [1, 1]} : vector<6x128xf32> to vector<6x80xf32>
    %cst_43 = arith.constant dense<0.000000e+00> : vector<4x80xf32>
    %69 = tpu.matmul %67, %68, %cst_43 {dimension_numbers = #tpu.dot_dimension_numbers<[1], [0], [0], [1], [0, 0, 1, 1], [], []>} : vector<4x6xf32>, vector<6x80xf32>, vector<4x80xf32> -> vector<4x80xf32>
    %70 = arith.addf %65, %69 : vector<4x80xf32>
    %c14 = arith.constant 14 : index
    %c0_44 = arith.constant 0 : index
    %c0_45 = arith.constant 0 : index
    %71 = vector.load %arg2[%c14, %c0_44, %c0_45] : memref<49x4x6xf32, #tpu.memory_space<vmem>>, vector<1x4x6xf32>
    %72 = vector.shape_cast %71 : vector<1x4x6xf32> to vector<4x6xf32>
    %73 = vector.extract_strided_slice %1 {offsets = [0, 14], sizes = [6, 80], strides = [1, 1]} : vector<6x128xf32> to vector<6x80xf32>
    %cst_46 = arith.constant dense<0.000000e+00> : vector<4x80xf32>
    %74 = tpu.matmul %72, %73, %cst_46 {dimension_numbers = #tpu.dot_dimension_numbers<[1], [0], [0], [1], [0, 0, 1, 1], [], []>} : vector<4x6xf32>, vector<6x80xf32>, vector<4x80xf32> -> vector<4x80xf32>
    %75 = arith.addf %70, %74 : vector<4x80xf32>
    %c15 = arith.constant 15 : index
    %c0_47 = arith.constant 0 : index
    %c0_48 = arith.constant 0 : index
    %76 = vector.load %arg2[%c15, %c0_47, %c0_48] : memref<49x4x6xf32, #tpu.memory_space<vmem>>, vector<1x4x6xf32>
    %77 = vector.shape_cast %76 : vector<1x4x6xf32> to vector<4x6xf32>
    %78 = vector.extract_strided_slice %1 {offsets = [0, 15], sizes = [6, 80], strides = [1, 1]} : vector<6x128xf32> to vector<6x80xf32>
    %cst_49 = arith.constant dense<0.000000e+00> : vector<4x80xf32>
    %79 = tpu.matmul %77, %78, %cst_49 {dimension_numbers = #tpu.dot_dimension_numbers<[1], [0], [0], [1], [0, 0, 1, 1], [], []>} : vector<4x6xf32>, vector<6x80xf32>, vector<4x80xf32> -> vector<4x80xf32>
    %80 = arith.addf %75, %79 : vector<4x80xf32>
    %c16 = arith.constant 16 : index
    %c0_50 = arith.constant 0 : index
    %c0_51 = arith.constant 0 : index
    %81 = vector.load %arg2[%c16, %c0_50, %c0_51] : memref<49x4x6xf32, #tpu.memory_space<vmem>>, vector<1x4x6xf32>
    %82 = vector.shape_cast %81 : vector<1x4x6xf32> to vector<4x6xf32>
    %83 = vector.extract_strided_slice %1 {offsets = [0, 16], sizes = [6, 80], strides = [1, 1]} : vector<6x128xf32> to vector<6x80xf32>
    %cst_52 = arith.constant dense<0.000000e+00> : vector<4x80xf32>
    %84 = tpu.matmul %82, %83, %cst_52 {dimension_numbers = #tpu.dot_dimension_numbers<[1], [0], [0], [1], [0, 0, 1, 1], [], []>} : vector<4x6xf32>, vector<6x80xf32>, vector<4x80xf32> -> vector<4x80xf32>
    %85 = arith.addf %80, %84 : vector<4x80xf32>
    %c17 = arith.constant 17 : index
    %c0_53 = arith.constant 0 : index
    %c0_54 = arith.constant 0 : index
    %86 = vector.load %arg2[%c17, %c0_53, %c0_54] : memref<49x4x6xf32, #tpu.memory_space<vmem>>, vector<1x4x6xf32>
    %87 = vector.shape_cast %86 : vector<1x4x6xf32> to vector<4x6xf32>
    %88 = vector.extract_strided_slice %1 {offsets = [0, 17], sizes = [6, 80], strides = [1, 1]} : vector<6x128xf32> to vector<6x80xf32>
    %cst_55 = arith.constant dense<0.000000e+00> : vector<4x80xf32>
    %89 = tpu.matmul %87, %88, %cst_55 {dimension_numbers = #tpu.dot_dimension_numbers<[1], [0], [0], [1], [0, 0, 1, 1], [], []>} : vector<4x6xf32>, vector<6x80xf32>, vector<4x80xf32> -> vector<4x80xf32>
    %90 = arith.addf %85, %89 : vector<4x80xf32>
    %c18 = arith.constant 18 : index
    %c0_56 = arith.constant 0 : index
    %c0_57 = arith.constant 0 : index
    %91 = vector.load %arg2[%c18, %c0_56, %c0_57] : memref<49x4x6xf32, #tpu.memory_space<vmem>>, vector<1x4x6xf32>
    %92 = vector.shape_cast %91 : vector<1x4x6xf32> to vector<4x6xf32>
    %93 = vector.extract_strided_slice %1 {offsets = [0, 18], sizes = [6, 80], strides = [1, 1]} : vector<6x128xf32> to vector<6x80xf32>
    %cst_58 = arith.constant dense<0.000000e+00> : vector<4x80xf32>
    %94 = tpu.matmul %92, %93, %cst_58 {dimension_numbers = #tpu.dot_dimension_numbers<[1], [0], [0], [1], [0, 0, 1, 1], [], []>} : vector<4x6xf32>, vector<6x80xf32>, vector<4x80xf32> -> vector<4x80xf32>
    %95 = arith.addf %90, %94 : vector<4x80xf32>
    %c19 = arith.constant 19 : index
    %c0_59 = arith.constant 0 : index
    %c0_60 = arith.constant 0 : index
    %96 = vector.load %arg2[%c19, %c0_59, %c0_60] : memref<49x4x6xf32, #tpu.memory_space<vmem>>, vector<1x4x6xf32>
    %97 = vector.shape_cast %96 : vector<1x4x6xf32> to vector<4x6xf32>
    %98 = vector.extract_strided_slice %1 {offsets = [0, 19], sizes = [6, 80], strides = [1, 1]} : vector<6x128xf32> to vector<6x80xf32>
    %cst_61 = arith.constant dense<0.000000e+00> : vector<4x80xf32>
    %99 = tpu.matmul %97, %98, %cst_61 {dimension_numbers = #tpu.dot_dimension_numbers<[1], [0], [0], [1], [0, 0, 1, 1], [], []>} : vector<4x6xf32>, vector<6x80xf32>, vector<4x80xf32> -> vector<4x80xf32>
    %100 = arith.addf %95, %99 : vector<4x80xf32>
    %c20 = arith.constant 20 : index
    %c0_62 = arith.constant 0 : index
    %c0_63 = arith.constant 0 : index
    %101 = vector.load %arg2[%c20, %c0_62, %c0_63] : memref<49x4x6xf32, #tpu.memory_space<vmem>>, vector<1x4x6xf32>
    %102 = vector.shape_cast %101 : vector<1x4x6xf32> to vector<4x6xf32>
    %103 = vector.extract_strided_slice %1 {offsets = [0, 20], sizes = [6, 80], strides = [1, 1]} : vector<6x128xf32> to vector<6x80xf32>
    %cst_64 = arith.constant dense<0.000000e+00> : vector<4x80xf32>
    %104 = tpu.matmul %102, %103, %cst_64 {dimension_numbers = #tpu.dot_dimension_numbers<[1], [0], [0], [1], [0, 0, 1, 1], [], []>} : vector<4x6xf32>, vector<6x80xf32>, vector<4x80xf32> -> vector<4x80xf32>
    %105 = arith.addf %100, %104 : vector<4x80xf32>
    %c21 = arith.constant 21 : index
    %c0_65 = arith.constant 0 : index
    %c0_66 = arith.constant 0 : index
    %106 = vector.load %arg2[%c21, %c0_65, %c0_66] : memref<49x4x6xf32, #tpu.memory_space<vmem>>, vector<1x4x6xf32>
    %107 = vector.shape_cast %106 : vector<1x4x6xf32> to vector<4x6xf32>
    %108 = vector.extract_strided_slice %1 {offsets = [0, 21], sizes = [6, 80], strides = [1, 1]} : vector<6x128xf32> to vector<6x80xf32>
    %cst_67 = arith.constant dense<0.000000e+00> : vector<4x80xf32>
    %109 = tpu.matmul %107, %108, %cst_67 {dimension_numbers = #tpu.dot_dimension_numbers<[1], [0], [0], [1], [0, 0, 1, 1], [], []>} : vector<4x6xf32>, vector<6x80xf32>, vector<4x80xf32> -> vector<4x80xf32>
    %110 = arith.addf %105, %109 : vector<4x80xf32>
    %c22 = arith.constant 22 : index
    %c0_68 = arith.constant 0 : index
    %c0_69 = arith.constant 0 : index
    %111 = vector.load %arg2[%c22, %c0_68, %c0_69] : memref<49x4x6xf32, #tpu.memory_space<vmem>>, vector<1x4x6xf32>
    %112 = vector.shape_cast %111 : vector<1x4x6xf32> to vector<4x6xf32>
    %113 = vector.extract_strided_slice %1 {offsets = [0, 22], sizes = [6, 80], strides = [1, 1]} : vector<6x128xf32> to vector<6x80xf32>
    %cst_70 = arith.constant dense<0.000000e+00> : vector<4x80xf32>
    %114 = tpu.matmul %112, %113, %cst_70 {dimension_numbers = #tpu.dot_dimension_numbers<[1], [0], [0], [1], [0, 0, 1, 1], [], []>} : vector<4x6xf32>, vector<6x80xf32>, vector<4x80xf32> -> vector<4x80xf32>
    %115 = arith.addf %110, %114 : vector<4x80xf32>
    %c23 = arith.constant 23 : index
    %c0_71 = arith.constant 0 : index
    %c0_72 = arith.constant 0 : index
    %116 = vector.load %arg2[%c23, %c0_71, %c0_72] : memref<49x4x6xf32, #tpu.memory_space<vmem>>, vector<1x4x6xf32>
    %117 = vector.shape_cast %116 : vector<1x4x6xf32> to vector<4x6xf32>
    %118 = vector.extract_strided_slice %1 {offsets = [0, 23], sizes = [6, 80], strides = [1, 1]} : vector<6x128xf32> to vector<6x80xf32>
    %cst_73 = arith.constant dense<0.000000e+00> : vector<4x80xf32>
    %119 = tpu.matmul %117, %118, %cst_73 {dimension_numbers = #tpu.dot_dimension_numbers<[1], [0], [0], [1], [0, 0, 1, 1], [], []>} : vector<4x6xf32>, vector<6x80xf32>, vector<4x80xf32> -> vector<4x80xf32>
    %120 = arith.addf %115, %119 : vector<4x80xf32>
    %c24 = arith.constant 24 : index
    %c0_74 = arith.constant 0 : index
    %c0_75 = arith.constant 0 : index
    %121 = vector.load %arg2[%c24, %c0_74, %c0_75] : memref<49x4x6xf32, #tpu.memory_space<vmem>>, vector<1x4x6xf32>
    %122 = vector.shape_cast %121 : vector<1x4x6xf32> to vector<4x6xf32>
    %123 = vector.extract_strided_slice %1 {offsets = [0, 24], sizes = [6, 80], strides = [1, 1]} : vector<6x128xf32> to vector<6x80xf32>
    %cst_76 = arith.constant dense<0.000000e+00> : vector<4x80xf32>
    %124 = tpu.matmul %122, %123, %cst_76 {dimension_numbers = #tpu.dot_dimension_numbers<[1], [0], [0], [1], [0, 0, 1, 1], [], []>} : vector<4x6xf32>, vector<6x80xf32>, vector<4x80xf32> -> vector<4x80xf32>
    %125 = arith.addf %120, %124 : vector<4x80xf32>
    %c25 = arith.constant 25 : index
    %c0_77 = arith.constant 0 : index
    %c0_78 = arith.constant 0 : index
    %126 = vector.load %arg2[%c25, %c0_77, %c0_78] : memref<49x4x6xf32, #tpu.memory_space<vmem>>, vector<1x4x6xf32>
    %127 = vector.shape_cast %126 : vector<1x4x6xf32> to vector<4x6xf32>
    %128 = vector.extract_strided_slice %1 {offsets = [0, 25], sizes = [6, 80], strides = [1, 1]} : vector<6x128xf32> to vector<6x80xf32>
    %cst_79 = arith.constant dense<0.000000e+00> : vector<4x80xf32>
    %129 = tpu.matmul %127, %128, %cst_79 {dimension_numbers = #tpu.dot_dimension_numbers<[1], [0], [0], [1], [0, 0, 1, 1], [], []>} : vector<4x6xf32>, vector<6x80xf32>, vector<4x80xf32> -> vector<4x80xf32>
    %130 = arith.addf %125, %129 : vector<4x80xf32>
    %c26 = arith.constant 26 : index
    %c0_80 = arith.constant 0 : index
    %c0_81 = arith.constant 0 : index
    %131 = vector.load %arg2[%c26, %c0_80, %c0_81] : memref<49x4x6xf32, #tpu.memory_space<vmem>>, vector<1x4x6xf32>
    %132 = vector.shape_cast %131 : vector<1x4x6xf32> to vector<4x6xf32>
    %133 = vector.extract_strided_slice %1 {offsets = [0, 26], sizes = [6, 80], strides = [1, 1]} : vector<6x128xf32> to vector<6x80xf32>
    %cst_82 = arith.constant dense<0.000000e+00> : vector<4x80xf32>
    %134 = tpu.matmul %132, %133, %cst_82 {dimension_numbers = #tpu.dot_dimension_numbers<[1], [0], [0], [1], [0, 0, 1, 1], [], []>} : vector<4x6xf32>, vector<6x80xf32>, vector<4x80xf32> -> vector<4x80xf32>
    %135 = arith.addf %130, %134 : vector<4x80xf32>
    %c27 = arith.constant 27 : index
    %c0_83 = arith.constant 0 : index
    %c0_84 = arith.constant 0 : index
    %136 = vector.load %arg2[%c27, %c0_83, %c0_84] : memref<49x4x6xf32, #tpu.memory_space<vmem>>, vector<1x4x6xf32>
    %137 = vector.shape_cast %136 : vector<1x4x6xf32> to vector<4x6xf32>
    %138 = vector.extract_strided_slice %1 {offsets = [0, 27], sizes = [6, 80], strides = [1, 1]} : vector<6x128xf32> to vector<6x80xf32>
    %cst_85 = arith.constant dense<0.000000e+00> : vector<4x80xf32>
    %139 = tpu.matmul %137, %138, %cst_85 {dimension_numbers = #tpu.dot_dimension_numbers<[1], [0], [0], [1], [0, 0, 1, 1], [], []>} : vector<4x6xf32>, vector<6x80xf32>, vector<4x80xf32> -> vector<4x80xf32>
    %140 = arith.addf %135, %139 : vector<4x80xf32>
    %c28 = arith.constant 28 : index
    %c0_86 = arith.constant 0 : index
    %c0_87 = arith.constant 0 : index
    %141 = vector.load %arg2[%c28, %c0_86, %c0_87] : memref<49x4x6xf32, #tpu.memory_space<vmem>>, vector<1x4x6xf32>
    %142 = vector.shape_cast %141 : vector<1x4x6xf32> to vector<4x6xf32>
    %143 = vector.extract_strided_slice %1 {offsets = [0, 28], sizes = [6, 80], strides = [1, 1]} : vector<6x128xf32> to vector<6x80xf32>
    %cst_88 = arith.constant dense<0.000000e+00> : vector<4x80xf32>
    %144 = tpu.matmul %142, %143, %cst_88 {dimension_numbers = #tpu.dot_dimension_numbers<[1], [0], [0], [1], [0, 0, 1, 1], [], []>} : vector<4x6xf32>, vector<6x80xf32>, vector<4x80xf32> -> vector<4x80xf32>
    %145 = arith.addf %140, %144 : vector<4x80xf32>
    %c29 = arith.constant 29 : index
    %c0_89 = arith.constant 0 : index
    %c0_90 = arith.constant 0 : index
    %146 = vector.load %arg2[%c29, %c0_89, %c0_90] : memref<49x4x6xf32, #tpu.memory_space<vmem>>, vector<1x4x6xf32>
    %147 = vector.shape_cast %146 : vector<1x4x6xf32> to vector<4x6xf32>
    %148 = vector.extract_strided_slice %1 {offsets = [0, 29], sizes = [6, 80], strides = [1, 1]} : vector<6x128xf32> to vector<6x80xf32>
    %cst_91 = arith.constant dense<0.000000e+00> : vector<4x80xf32>
    %149 = tpu.matmul %147, %148, %cst_91 {dimension_numbers = #tpu.dot_dimension_numbers<[1], [0], [0], [1], [0, 0, 1, 1], [], []>} : vector<4x6xf32>, vector<6x80xf32>, vector<4x80xf32> -> vector<4x80xf32>
    %150 = arith.addf %145, %149 : vector<4x80xf32>
    %c30 = arith.constant 30 : index
    %c0_92 = arith.constant 0 : index
    %c0_93 = arith.constant 0 : index
    %151 = vector.load %arg2[%c30, %c0_92, %c0_93] : memref<49x4x6xf32, #tpu.memory_space<vmem>>, vector<1x4x6xf32>
    %152 = vector.shape_cast %151 : vector<1x4x6xf32> to vector<4x6xf32>
    %153 = vector.extract_strided_slice %1 {offsets = [0, 30], sizes = [6, 80], strides = [1, 1]} : vector<6x128xf32> to vector<6x80xf32>
    %cst_94 = arith.constant dense<0.000000e+00> : vector<4x80xf32>
    %154 = tpu.matmul %152, %153, %cst_94 {dimension_numbers = #tpu.dot_dimension_numbers<[1], [0], [0], [1], [0, 0, 1, 1], [], []>} : vector<4x6xf32>, vector<6x80xf32>, vector<4x80xf32> -> vector<4x80xf32>
    %155 = arith.addf %150, %154 : vector<4x80xf32>
    %c31 = arith.constant 31 : index
    %c0_95 = arith.constant 0 : index
    %c0_96 = arith.constant 0 : index
    %156 = vector.load %arg2[%c31, %c0_95, %c0_96] : memref<49x4x6xf32, #tpu.memory_space<vmem>>, vector<1x4x6xf32>
    %157 = vector.shape_cast %156 : vector<1x4x6xf32> to vector<4x6xf32>
    %158 = vector.extract_strided_slice %1 {offsets = [0, 31], sizes = [6, 80], strides = [1, 1]} : vector<6x128xf32> to vector<6x80xf32>
    %cst_97 = arith.constant dense<0.000000e+00> : vector<4x80xf32>
    %159 = tpu.matmul %157, %158, %cst_97 {dimension_numbers = #tpu.dot_dimension_numbers<[1], [0], [0], [1], [0, 0, 1, 1], [], []>} : vector<4x6xf32>, vector<6x80xf32>, vector<4x80xf32> -> vector<4x80xf32>
    %160 = arith.addf %155, %159 : vector<4x80xf32>
    %c32 = arith.constant 32 : index
    %c0_98 = arith.constant 0 : index
    %c0_99 = arith.constant 0 : index
    %161 = vector.load %arg2[%c32, %c0_98, %c0_99] : memref<49x4x6xf32, #tpu.memory_space<vmem>>, vector<1x4x6xf32>
    %162 = vector.shape_cast %161 : vector<1x4x6xf32> to vector<4x6xf32>
    %163 = vector.extract_strided_slice %1 {offsets = [0, 32], sizes = [6, 80], strides = [1, 1]} : vector<6x128xf32> to vector<6x80xf32>
    %cst_100 = arith.constant dense<0.000000e+00> : vector<4x80xf32>
    %164 = tpu.matmul %162, %163, %cst_100 {dimension_numbers = #tpu.dot_dimension_numbers<[1], [0], [0], [1], [0, 0, 1, 1], [], []>} : vector<4x6xf32>, vector<6x80xf32>, vector<4x80xf32> -> vector<4x80xf32>
    %165 = arith.addf %160, %164 : vector<4x80xf32>
    %c33 = arith.constant 33 : index
    %c0_101 = arith.constant 0 : index
    %c0_102 = arith.constant 0 : index
    %166 = vector.load %arg2[%c33, %c0_101, %c0_102] : memref<49x4x6xf32, #tpu.memory_space<vmem>>, vector<1x4x6xf32>
    %167 = vector.shape_cast %166 : vector<1x4x6xf32> to vector<4x6xf32>
    %168 = vector.extract_strided_slice %1 {offsets = [0, 33], sizes = [6, 80], strides = [1, 1]} : vector<6x128xf32> to vector<6x80xf32>
    %cst_103 = arith.constant dense<0.000000e+00> : vector<4x80xf32>
    %169 = tpu.matmul %167, %168, %cst_103 {dimension_numbers = #tpu.dot_dimension_numbers<[1], [0], [0], [1], [0, 0, 1, 1], [], []>} : vector<4x6xf32>, vector<6x80xf32>, vector<4x80xf32> -> vector<4x80xf32>
    %170 = arith.addf %165, %169 : vector<4x80xf32>
    %c34 = arith.constant 34 : index
    %c0_104 = arith.constant 0 : index
    %c0_105 = arith.constant 0 : index
    %171 = vector.load %arg2[%c34, %c0_104, %c0_105] : memref<49x4x6xf32, #tpu.memory_space<vmem>>, vector<1x4x6xf32>
    %172 = vector.shape_cast %171 : vector<1x4x6xf32> to vector<4x6xf32>
    %173 = vector.extract_strided_slice %1 {offsets = [0, 34], sizes = [6, 80], strides = [1, 1]} : vector<6x128xf32> to vector<6x80xf32>
    %cst_106 = arith.constant dense<0.000000e+00> : vector<4x80xf32>
    %174 = tpu.matmul %172, %173, %cst_106 {dimension_numbers = #tpu.dot_dimension_numbers<[1], [0], [0], [1], [0, 0, 1, 1], [], []>} : vector<4x6xf32>, vector<6x80xf32>, vector<4x80xf32> -> vector<4x80xf32>
    %175 = arith.addf %170, %174 : vector<4x80xf32>
    %c35 = arith.constant 35 : index
    %c0_107 = arith.constant 0 : index
    %c0_108 = arith.constant 0 : index
    %176 = vector.load %arg2[%c35, %c0_107, %c0_108] : memref<49x4x6xf32, #tpu.memory_space<vmem>>, vector<1x4x6xf32>
    %177 = vector.shape_cast %176 : vector<1x4x6xf32> to vector<4x6xf32>
    %178 = vector.extract_strided_slice %1 {offsets = [0, 35], sizes = [6, 80], strides = [1, 1]} : vector<6x128xf32> to vector<6x80xf32>
    %cst_109 = arith.constant dense<0.000000e+00> : vector<4x80xf32>
    %179 = tpu.matmul %177, %178, %cst_109 {dimension_numbers = #tpu.dot_dimension_numbers<[1], [0], [0], [1], [0, 0, 1, 1], [], []>} : vector<4x6xf32>, vector<6x80xf32>, vector<4x80xf32> -> vector<4x80xf32>
    %180 = arith.addf %175, %179 : vector<4x80xf32>
    %c36 = arith.constant 36 : index
    %c0_110 = arith.constant 0 : index
    %c0_111 = arith.constant 0 : index
    %181 = vector.load %arg2[%c36, %c0_110, %c0_111] : memref<49x4x6xf32, #tpu.memory_space<vmem>>, vector<1x4x6xf32>
    %182 = vector.shape_cast %181 : vector<1x4x6xf32> to vector<4x6xf32>
    %183 = vector.extract_strided_slice %1 {offsets = [0, 36], sizes = [6, 80], strides = [1, 1]} : vector<6x128xf32> to vector<6x80xf32>
    %cst_112 = arith.constant dense<0.000000e+00> : vector<4x80xf32>
    %184 = tpu.matmul %182, %183, %cst_112 {dimension_numbers = #tpu.dot_dimension_numbers<[1], [0], [0], [1], [0, 0, 1, 1], [], []>} : vector<4x6xf32>, vector<6x80xf32>, vector<4x80xf32> -> vector<4x80xf32>
    %185 = arith.addf %180, %184 : vector<4x80xf32>
    %c37 = arith.constant 37 : index
    %c0_113 = arith.constant 0 : index
    %c0_114 = arith.constant 0 : index
    %186 = vector.load %arg2[%c37, %c0_113, %c0_114] : memref<49x4x6xf32, #tpu.memory_space<vmem>>, vector<1x4x6xf32>
    %187 = vector.shape_cast %186 : vector<1x4x6xf32> to vector<4x6xf32>
    %188 = vector.extract_strided_slice %1 {offsets = [0, 37], sizes = [6, 80], strides = [1, 1]} : vector<6x128xf32> to vector<6x80xf32>
    %cst_115 = arith.constant dense<0.000000e+00> : vector<4x80xf32>
    %189 = tpu.matmul %187, %188, %cst_115 {dimension_numbers = #tpu.dot_dimension_numbers<[1], [0], [0], [1], [0, 0, 1, 1], [], []>} : vector<4x6xf32>, vector<6x80xf32>, vector<4x80xf32> -> vector<4x80xf32>
    %190 = arith.addf %185, %189 : vector<4x80xf32>
    %c38 = arith.constant 38 : index
    %c0_116 = arith.constant 0 : index
    %c0_117 = arith.constant 0 : index
    %191 = vector.load %arg2[%c38, %c0_116, %c0_117] : memref<49x4x6xf32, #tpu.memory_space<vmem>>, vector<1x4x6xf32>
    %192 = vector.shape_cast %191 : vector<1x4x6xf32> to vector<4x6xf32>
    %193 = vector.extract_strided_slice %1 {offsets = [0, 38], sizes = [6, 80], strides = [1, 1]} : vector<6x128xf32> to vector<6x80xf32>
    %cst_118 = arith.constant dense<0.000000e+00> : vector<4x80xf32>
    %194 = tpu.matmul %192, %193, %cst_118 {dimension_numbers = #tpu.dot_dimension_numbers<[1], [0], [0], [1], [0, 0, 1, 1], [], []>} : vector<4x6xf32>, vector<6x80xf32>, vector<4x80xf32> -> vector<4x80xf32>
    %195 = arith.addf %190, %194 : vector<4x80xf32>
    %c39 = arith.constant 39 : index
    %c0_119 = arith.constant 0 : index
    %c0_120 = arith.constant 0 : index
    %196 = vector.load %arg2[%c39, %c0_119, %c0_120] : memref<49x4x6xf32, #tpu.memory_space<vmem>>, vector<1x4x6xf32>
    %197 = vector.shape_cast %196 : vector<1x4x6xf32> to vector<4x6xf32>
    %198 = vector.extract_strided_slice %1 {offsets = [0, 39], sizes = [6, 80], strides = [1, 1]} : vector<6x128xf32> to vector<6x80xf32>
    %cst_121 = arith.constant dense<0.000000e+00> : vector<4x80xf32>
    %199 = tpu.matmul %197, %198, %cst_121 {dimension_numbers = #tpu.dot_dimension_numbers<[1], [0], [0], [1], [0, 0, 1, 1], [], []>} : vector<4x6xf32>, vector<6x80xf32>, vector<4x80xf32> -> vector<4x80xf32>
    %200 = arith.addf %195, %199 : vector<4x80xf32>
    %c40 = arith.constant 40 : index
    %c0_122 = arith.constant 0 : index
    %c0_123 = arith.constant 0 : index
    %201 = vector.load %arg2[%c40, %c0_122, %c0_123] : memref<49x4x6xf32, #tpu.memory_space<vmem>>, vector<1x4x6xf32>
    %202 = vector.shape_cast %201 : vector<1x4x6xf32> to vector<4x6xf32>
    %203 = vector.extract_strided_slice %1 {offsets = [0, 40], sizes = [6, 80], strides = [1, 1]} : vector<6x128xf32> to vector<6x80xf32>
    %cst_124 = arith.constant dense<0.000000e+00> : vector<4x80xf32>
    %204 = tpu.matmul %202, %203, %cst_124 {dimension_numbers = #tpu.dot_dimension_numbers<[1], [0], [0], [1], [0, 0, 1, 1], [], []>} : vector<4x6xf32>, vector<6x80xf32>, vector<4x80xf32> -> vector<4x80xf32>
    %205 = arith.addf %200, %204 : vector<4x80xf32>
    %c41 = arith.constant 41 : index
    %c0_125 = arith.constant 0 : index
    %c0_126 = arith.constant 0 : index
    %206 = vector.load %arg2[%c41, %c0_125, %c0_126] : memref<49x4x6xf32, #tpu.memory_space<vmem>>, vector<1x4x6xf32>
    %207 = vector.shape_cast %206 : vector<1x4x6xf32> to vector<4x6xf32>
    %208 = vector.extract_strided_slice %1 {offsets = [0, 41], sizes = [6, 80], strides = [1, 1]} : vector<6x128xf32> to vector<6x80xf32>
    %cst_127 = arith.constant dense<0.000000e+00> : vector<4x80xf32>
    %209 = tpu.matmul %207, %208, %cst_127 {dimension_numbers = #tpu.dot_dimension_numbers<[1], [0], [0], [1], [0, 0, 1, 1], [], []>} : vector<4x6xf32>, vector<6x80xf32>, vector<4x80xf32> -> vector<4x80xf32>
    %210 = arith.addf %205, %209 : vector<4x80xf32>
    %c42 = arith.constant 42 : index
    %c0_128 = arith.constant 0 : index
    %c0_129 = arith.constant 0 : index
    %211 = vector.load %arg2[%c42, %c0_128, %c0_129] : memref<49x4x6xf32, #tpu.memory_space<vmem>>, vector<1x4x6xf32>
    %212 = vector.shape_cast %211 : vector<1x4x6xf32> to vector<4x6xf32>
    %213 = vector.extract_strided_slice %1 {offsets = [0, 42], sizes = [6, 80], strides = [1, 1]} : vector<6x128xf32> to vector<6x80xf32>
    %cst_130 = arith.constant dense<0.000000e+00> : vector<4x80xf32>
    %214 = tpu.matmul %212, %213, %cst_130 {dimension_numbers = #tpu.dot_dimension_numbers<[1], [0], [0], [1], [0, 0, 1, 1], [], []>} : vector<4x6xf32>, vector<6x80xf32>, vector<4x80xf32> -> vector<4x80xf32>
    %215 = arith.addf %210, %214 : vector<4x80xf32>
    %c43 = arith.constant 43 : index
    %c0_131 = arith.constant 0 : index
    %c0_132 = arith.constant 0 : index
    %216 = vector.load %arg2[%c43, %c0_131, %c0_132] : memref<49x4x6xf32, #tpu.memory_space<vmem>>, vector<1x4x6xf32>
    %217 = vector.shape_cast %216 : vector<1x4x6xf32> to vector<4x6xf32>
    %218 = vector.extract_strided_slice %1 {offsets = [0, 43], sizes = [6, 80], strides = [1, 1]} : vector<6x128xf32> to vector<6x80xf32>
    %cst_133 = arith.constant dense<0.000000e+00> : vector<4x80xf32>
    %219 = tpu.matmul %217, %218, %cst_133 {dimension_numbers = #tpu.dot_dimension_numbers<[1], [0], [0], [1], [0, 0, 1, 1], [], []>} : vector<4x6xf32>, vector<6x80xf32>, vector<4x80xf32> -> vector<4x80xf32>
    %220 = arith.addf %215, %219 : vector<4x80xf32>
    %c44 = arith.constant 44 : index
    %c0_134 = arith.constant 0 : index
    %c0_135 = arith.constant 0 : index
    %221 = vector.load %arg2[%c44, %c0_134, %c0_135] : memref<49x4x6xf32, #tpu.memory_space<vmem>>, vector<1x4x6xf32>
    %222 = vector.shape_cast %221 : vector<1x4x6xf32> to vector<4x6xf32>
    %223 = vector.extract_strided_slice %1 {offsets = [0, 44], sizes = [6, 80], strides = [1, 1]} : vector<6x128xf32> to vector<6x80xf32>
    %cst_136 = arith.constant dense<0.000000e+00> : vector<4x80xf32>
    %224 = tpu.matmul %222, %223, %cst_136 {dimension_numbers = #tpu.dot_dimension_numbers<[1], [0], [0], [1], [0, 0, 1, 1], [], []>} : vector<4x6xf32>, vector<6x80xf32>, vector<4x80xf32> -> vector<4x80xf32>
    %225 = arith.addf %220, %224 : vector<4x80xf32>
    %c45 = arith.constant 45 : index
    %c0_137 = arith.constant 0 : index
    %c0_138 = arith.constant 0 : index
    %226 = vector.load %arg2[%c45, %c0_137, %c0_138] : memref<49x4x6xf32, #tpu.memory_space<vmem>>, vector<1x4x6xf32>
    %227 = vector.shape_cast %226 : vector<1x4x6xf32> to vector<4x6xf32>
    %228 = vector.extract_strided_slice %1 {offsets = [0, 45], sizes = [6, 80], strides = [1, 1]} : vector<6x128xf32> to vector<6x80xf32>
    %cst_139 = arith.constant dense<0.000000e+00> : vector<4x80xf32>
    %229 = tpu.matmul %227, %228, %cst_139 {dimension_numbers = #tpu.dot_dimension_numbers<[1], [0], [0], [1], [0, 0, 1, 1], [], []>} : vector<4x6xf32>, vector<6x80xf32>, vector<4x80xf32> -> vector<4x80xf32>
    %230 = arith.addf %225, %229 : vector<4x80xf32>
    %c46 = arith.constant 46 : index
    %c0_140 = arith.constant 0 : index
    %c0_141 = arith.constant 0 : index
    %231 = vector.load %arg2[%c46, %c0_140, %c0_141] : memref<49x4x6xf32, #tpu.memory_space<vmem>>, vector<1x4x6xf32>
    %232 = vector.shape_cast %231 : vector<1x4x6xf32> to vector<4x6xf32>
    %233 = vector.extract_strided_slice %1 {offsets = [0, 46], sizes = [6, 80], strides = [1, 1]} : vector<6x128xf32> to vector<6x80xf32>
    %cst_142 = arith.constant dense<0.000000e+00> : vector<4x80xf32>
    %234 = tpu.matmul %232, %233, %cst_142 {dimension_numbers = #tpu.dot_dimension_numbers<[1], [0], [0], [1], [0, 0, 1, 1], [], []>} : vector<4x6xf32>, vector<6x80xf32>, vector<4x80xf32> -> vector<4x80xf32>
    %235 = arith.addf %230, %234 : vector<4x80xf32>
    %c47 = arith.constant 47 : index
    %c0_143 = arith.constant 0 : index
    %c0_144 = arith.constant 0 : index
    %236 = vector.load %arg2[%c47, %c0_143, %c0_144] : memref<49x4x6xf32, #tpu.memory_space<vmem>>, vector<1x4x6xf32>
    %237 = vector.shape_cast %236 : vector<1x4x6xf32> to vector<4x6xf32>
    %238 = vector.extract_strided_slice %1 {offsets = [0, 47], sizes = [6, 80], strides = [1, 1]} : vector<6x128xf32> to vector<6x80xf32>
    %cst_145 = arith.constant dense<0.000000e+00> : vector<4x80xf32>
    %239 = tpu.matmul %237, %238, %cst_145 {dimension_numbers = #tpu.dot_dimension_numbers<[1], [0], [0], [1], [0, 0, 1, 1], [], []>} : vector<4x6xf32>, vector<6x80xf32>, vector<4x80xf32> -> vector<4x80xf32>
    %240 = arith.addf %235, %239 : vector<4x80xf32>
    %c48 = arith.constant 48 : index
    %c0_146 = arith.constant 0 : index
    %c0_147 = arith.constant 0 : index
    %241 = vector.load %arg2[%c48, %c0_146, %c0_147] : memref<49x4x6xf32, #tpu.memory_space<vmem>>, vector<1x4x6xf32>
    %242 = vector.shape_cast %241 : vector<1x4x6xf32> to vector<4x6xf32>
    %243 = vector.extract_strided_slice %1 {offsets = [0, 48], sizes = [6, 80], strides = [1, 1]} : vector<6x128xf32> to vector<6x80xf32>
    %cst_148 = arith.constant dense<0.000000e+00> : vector<4x80xf32>
    %244 = tpu.matmul %242, %243, %cst_148 {dimension_numbers = #tpu.dot_dimension_numbers<[1], [0], [0], [1], [0, 0, 1, 1], [], []>} : vector<4x6xf32>, vector<6x80xf32>, vector<4x80xf32> -> vector<4x80xf32>
    %245 = arith.addf %240, %244 : vector<4x80xf32>
    %c0_149 = arith.constant 0 : index
    %c0_150 = arith.constant 0 : index
    %246 = vector.load %arg3[%c0_149, %c0_150] : memref<4x1xf32, #tpu.memory_space<vmem>>, vector<4x1xf32>
    %247 = vector.broadcast %246 : vector<4x1xf32> to vector<4x80xf32>
    %248 = arith.addf %245, %247 : vector<4x80xf32>
    %cst_151 = arith.constant 0.000000e+00 : f32
    %249 = vector.broadcast %cst_151 : f32 to vector<4x80xf32>
    %250 = arith.maximumf %248, %249 : vector<4x80xf32>
    %251 = vector.extract_strided_slice %250 {offsets = [0, 0], sizes = [4, 32], strides = [1, 1]} : vector<4x80xf32> to vector<4x32xf32>
    %c0_152 = arith.constant 0 : index
    %c0_153 = arith.constant 0 : index
    %c0_154 = arith.constant 0 : index
    %252 = vector.load %arg4[%c0_152, %c0_153, %c0_154] : memref<49x4x4xf32, #tpu.memory_space<vmem>>, vector<1x4x4xf32>
    %253 = vector.shape_cast %252 : vector<1x4x4xf32> to vector<4x4xf32>
    %cst_155 = arith.constant dense<0.000000e+00> : vector<4x32xf32>
    %254 = tpu.matmul %253, %251, %cst_155 {dimension_numbers = #tpu.dot_dimension_numbers<[1], [0], [0], [1], [0, 0, 1, 1], [], []>} : vector<4x4xf32>, vector<4x32xf32>, vector<4x32xf32> -> vector<4x32xf32>
    %255 = vector.extract_strided_slice %250 {offsets = [0, 1], sizes = [4, 32], strides = [1, 1]} : vector<4x80xf32> to vector<4x32xf32>
    %c1_156 = arith.constant 1 : index
    %c0_157 = arith.constant 0 : index
    %c0_158 = arith.constant 0 : index
    %256 = vector.load %arg4[%c1_156, %c0_157, %c0_158] : memref<49x4x4xf32, #tpu.memory_space<vmem>>, vector<1x4x4xf32>
    %257 = vector.shape_cast %256 : vector<1x4x4xf32> to vector<4x4xf32>
    %cst_159 = arith.constant dense<0.000000e+00> : vector<4x32xf32>
    %258 = tpu.matmul %257, %255, %cst_159 {dimension_numbers = #tpu.dot_dimension_numbers<[1], [0], [0], [1], [0, 0, 1, 1], [], []>} : vector<4x4xf32>, vector<4x32xf32>, vector<4x32xf32> -> vector<4x32xf32>
    %259 = arith.addf %254, %258 : vector<4x32xf32>
    %260 = arith.addf %251, %255 : vector<4x32xf32>
    %261 = vector.extract_strided_slice %250 {offsets = [0, 2], sizes = [4, 32], strides = [1, 1]} : vector<4x80xf32> to vector<4x32xf32>
    %c2_160 = arith.constant 2 : index
    %c0_161 = arith.constant 0 : index
    %c0_162 = arith.constant 0 : index
    %262 = vector.load %arg4[%c2_160, %c0_161, %c0_162] : memref<49x4x4xf32, #tpu.memory_space<vmem>>, vector<1x4x4xf32>
    %263 = vector.shape_cast %262 : vector<1x4x4xf32> to vector<4x4xf32>
    %cst_163 = arith.constant dense<0.000000e+00> : vector<4x32xf32>
    %264 = tpu.matmul %263, %261, %cst_163 {dimension_numbers = #tpu.dot_dimension_numbers<[1], [0], [0], [1], [0, 0, 1, 1], [], []>} : vector<4x4xf32>, vector<4x32xf32>, vector<4x32xf32> -> vector<4x32xf32>
    %265 = arith.addf %259, %264 : vector<4x32xf32>
    %266 = arith.addf %260, %261 : vector<4x32xf32>
    %267 = vector.extract_strided_slice %250 {offsets = [0, 3], sizes = [4, 32], strides = [1, 1]} : vector<4x80xf32> to vector<4x32xf32>
    %c3_164 = arith.constant 3 : index
    %c0_165 = arith.constant 0 : index
    %c0_166 = arith.constant 0 : index
    %268 = vector.load %arg4[%c3_164, %c0_165, %c0_166] : memref<49x4x4xf32, #tpu.memory_space<vmem>>, vector<1x4x4xf32>
    %269 = vector.shape_cast %268 : vector<1x4x4xf32> to vector<4x4xf32>
    %cst_167 = arith.constant dense<0.000000e+00> : vector<4x32xf32>
    %270 = tpu.matmul %269, %267, %cst_167 {dimension_numbers = #tpu.dot_dimension_numbers<[1], [0], [0], [1], [0, 0, 1, 1], [], []>} : vector<4x4xf32>, vector<4x32xf32>, vector<4x32xf32> -> vector<4x32xf32>
    %271 = arith.addf %265, %270 : vector<4x32xf32>
    %272 = arith.addf %266, %267 : vector<4x32xf32>
    %273 = vector.extract_strided_slice %250 {offsets = [0, 4], sizes = [4, 32], strides = [1, 1]} : vector<4x80xf32> to vector<4x32xf32>
    %c4_168 = arith.constant 4 : index
    %c0_169 = arith.constant 0 : index
    %c0_170 = arith.constant 0 : index
    %274 = vector.load %arg4[%c4_168, %c0_169, %c0_170] : memref<49x4x4xf32, #tpu.memory_space<vmem>>, vector<1x4x4xf32>
    %275 = vector.shape_cast %274 : vector<1x4x4xf32> to vector<4x4xf32>
    %cst_171 = arith.constant dense<0.000000e+00> : vector<4x32xf32>
    %276 = tpu.matmul %275, %273, %cst_171 {dimension_numbers = #tpu.dot_dimension_numbers<[1], [0], [0], [1], [0, 0, 1, 1], [], []>} : vector<4x4xf32>, vector<4x32xf32>, vector<4x32xf32> -> vector<4x32xf32>
    %277 = arith.addf %271, %276 : vector<4x32xf32>
    %278 = arith.addf %272, %273 : vector<4x32xf32>
    %279 = vector.extract_strided_slice %250 {offsets = [0, 5], sizes = [4, 32], strides = [1, 1]} : vector<4x80xf32> to vector<4x32xf32>
    %c5_172 = arith.constant 5 : index
    %c0_173 = arith.constant 0 : index
    %c0_174 = arith.constant 0 : index
    %280 = vector.load %arg4[%c5_172, %c0_173, %c0_174] : memref<49x4x4xf32, #tpu.memory_space<vmem>>, vector<1x4x4xf32>
    %281 = vector.shape_cast %280 : vector<1x4x4xf32> to vector<4x4xf32>
    %cst_175 = arith.constant dense<0.000000e+00> : vector<4x32xf32>
    %282 = tpu.matmul %281, %279, %cst_175 {dimension_numbers = #tpu.dot_dimension_numbers<[1], [0], [0], [1], [0, 0, 1, 1], [], []>} : vector<4x4xf32>, vector<4x32xf32>, vector<4x32xf32> -> vector<4x32xf32>
    %283 = arith.addf %277, %282 : vector<4x32xf32>
    %284 = arith.addf %278, %279 : vector<4x32xf32>
    %285 = vector.extract_strided_slice %250 {offsets = [0, 6], sizes = [4, 32], strides = [1, 1]} : vector<4x80xf32> to vector<4x32xf32>
    %c6_176 = arith.constant 6 : index
    %c0_177 = arith.constant 0 : index
    %c0_178 = arith.constant 0 : index
    %286 = vector.load %arg4[%c6_176, %c0_177, %c0_178] : memref<49x4x4xf32, #tpu.memory_space<vmem>>, vector<1x4x4xf32>
    %287 = vector.shape_cast %286 : vector<1x4x4xf32> to vector<4x4xf32>
    %cst_179 = arith.constant dense<0.000000e+00> : vector<4x32xf32>
    %288 = tpu.matmul %287, %285, %cst_179 {dimension_numbers = #tpu.dot_dimension_numbers<[1], [0], [0], [1], [0, 0, 1, 1], [], []>} : vector<4x4xf32>, vector<4x32xf32>, vector<4x32xf32> -> vector<4x32xf32>
    %289 = arith.addf %283, %288 : vector<4x32xf32>
    %290 = arith.addf %284, %285 : vector<4x32xf32>
    %291 = vector.extract_strided_slice %250 {offsets = [0, 7], sizes = [4, 32], strides = [1, 1]} : vector<4x80xf32> to vector<4x32xf32>
    %c7_180 = arith.constant 7 : index
    %c0_181 = arith.constant 0 : index
    %c0_182 = arith.constant 0 : index
    %292 = vector.load %arg4[%c7_180, %c0_181, %c0_182] : memref<49x4x4xf32, #tpu.memory_space<vmem>>, vector<1x4x4xf32>
    %293 = vector.shape_cast %292 : vector<1x4x4xf32> to vector<4x4xf32>
    %cst_183 = arith.constant dense<0.000000e+00> : vector<4x32xf32>
    %294 = tpu.matmul %293, %291, %cst_183 {dimension_numbers = #tpu.dot_dimension_numbers<[1], [0], [0], [1], [0, 0, 1, 1], [], []>} : vector<4x4xf32>, vector<4x32xf32>, vector<4x32xf32> -> vector<4x32xf32>
    %295 = arith.addf %289, %294 : vector<4x32xf32>
    %296 = arith.addf %290, %291 : vector<4x32xf32>
    %297 = vector.extract_strided_slice %250 {offsets = [0, 8], sizes = [4, 32], strides = [1, 1]} : vector<4x80xf32> to vector<4x32xf32>
    %c8_184 = arith.constant 8 : index
    %c0_185 = arith.constant 0 : index
    %c0_186 = arith.constant 0 : index
    %298 = vector.load %arg4[%c8_184, %c0_185, %c0_186] : memref<49x4x4xf32, #tpu.memory_space<vmem>>, vector<1x4x4xf32>
    %299 = vector.shape_cast %298 : vector<1x4x4xf32> to vector<4x4xf32>
    %cst_187 = arith.constant dense<0.000000e+00> : vector<4x32xf32>
    %300 = tpu.matmul %299, %297, %cst_187 {dimension_numbers = #tpu.dot_dimension_numbers<[1], [0], [0], [1], [0, 0, 1, 1], [], []>} : vector<4x4xf32>, vector<4x32xf32>, vector<4x32xf32> -> vector<4x32xf32>
    %301 = arith.addf %295, %300 : vector<4x32xf32>
    %302 = arith.addf %296, %297 : vector<4x32xf32>
    %303 = vector.extract_strided_slice %250 {offsets = [0, 9], sizes = [4, 32], strides = [1, 1]} : vector<4x80xf32> to vector<4x32xf32>
    %c9_188 = arith.constant 9 : index
    %c0_189 = arith.constant 0 : index
    %c0_190 = arith.constant 0 : index
    %304 = vector.load %arg4[%c9_188, %c0_189, %c0_190] : memref<49x4x4xf32, #tpu.memory_space<vmem>>, vector<1x4x4xf32>
    %305 = vector.shape_cast %304 : vector<1x4x4xf32> to vector<4x4xf32>
    %cst_191 = arith.constant dense<0.000000e+00> : vector<4x32xf32>
    %306 = tpu.matmul %305, %303, %cst_191 {dimension_numbers = #tpu.dot_dimension_numbers<[1], [0], [0], [1], [0, 0, 1, 1], [], []>} : vector<4x4xf32>, vector<4x32xf32>, vector<4x32xf32> -> vector<4x32xf32>
    %307 = arith.addf %301, %306 : vector<4x32xf32>
    %308 = arith.addf %302, %303 : vector<4x32xf32>
    %309 = vector.extract_strided_slice %250 {offsets = [0, 10], sizes = [4, 32], strides = [1, 1]} : vector<4x80xf32> to vector<4x32xf32>
    %c10_192 = arith.constant 10 : index
    %c0_193 = arith.constant 0 : index
    %c0_194 = arith.constant 0 : index
    %310 = vector.load %arg4[%c10_192, %c0_193, %c0_194] : memref<49x4x4xf32, #tpu.memory_space<vmem>>, vector<1x4x4xf32>
    %311 = vector.shape_cast %310 : vector<1x4x4xf32> to vector<4x4xf32>
    %cst_195 = arith.constant dense<0.000000e+00> : vector<4x32xf32>
    %312 = tpu.matmul %311, %309, %cst_195 {dimension_numbers = #tpu.dot_dimension_numbers<[1], [0], [0], [1], [0, 0, 1, 1], [], []>} : vector<4x4xf32>, vector<4x32xf32>, vector<4x32xf32> -> vector<4x32xf32>
    %313 = arith.addf %307, %312 : vector<4x32xf32>
    %314 = arith.addf %308, %309 : vector<4x32xf32>
    %315 = vector.extract_strided_slice %250 {offsets = [0, 11], sizes = [4, 32], strides = [1, 1]} : vector<4x80xf32> to vector<4x32xf32>
    %c11_196 = arith.constant 11 : index
    %c0_197 = arith.constant 0 : index
    %c0_198 = arith.constant 0 : index
    %316 = vector.load %arg4[%c11_196, %c0_197, %c0_198] : memref<49x4x4xf32, #tpu.memory_space<vmem>>, vector<1x4x4xf32>
    %317 = vector.shape_cast %316 : vector<1x4x4xf32> to vector<4x4xf32>
    %cst_199 = arith.constant dense<0.000000e+00> : vector<4x32xf32>
    %318 = tpu.matmul %317, %315, %cst_199 {dimension_numbers = #tpu.dot_dimension_numbers<[1], [0], [0], [1], [0, 0, 1, 1], [], []>} : vector<4x4xf32>, vector<4x32xf32>, vector<4x32xf32> -> vector<4x32xf32>
    %319 = arith.addf %313, %318 : vector<4x32xf32>
    %320 = arith.addf %314, %315 : vector<4x32xf32>
    %321 = vector.extract_strided_slice %250 {offsets = [0, 12], sizes = [4, 32], strides = [1, 1]} : vector<4x80xf32> to vector<4x32xf32>
    %c12_200 = arith.constant 12 : index
    %c0_201 = arith.constant 0 : index
    %c0_202 = arith.constant 0 : index
    %322 = vector.load %arg4[%c12_200, %c0_201, %c0_202] : memref<49x4x4xf32, #tpu.memory_space<vmem>>, vector<1x4x4xf32>
    %323 = vector.shape_cast %322 : vector<1x4x4xf32> to vector<4x4xf32>
    %cst_203 = arith.constant dense<0.000000e+00> : vector<4x32xf32>
    %324 = tpu.matmul %323, %321, %cst_203 {dimension_numbers = #tpu.dot_dimension_numbers<[1], [0], [0], [1], [0, 0, 1, 1], [], []>} : vector<4x4xf32>, vector<4x32xf32>, vector<4x32xf32> -> vector<4x32xf32>
    %325 = arith.addf %319, %324 : vector<4x32xf32>
    %326 = arith.addf %320, %321 : vector<4x32xf32>
    %327 = vector.extract_strided_slice %250 {offsets = [0, 13], sizes = [4, 32], strides = [1, 1]} : vector<4x80xf32> to vector<4x32xf32>
    %c13_204 = arith.constant 13 : index
    %c0_205 = arith.constant 0 : index
    %c0_206 = arith.constant 0 : index
    %328 = vector.load %arg4[%c13_204, %c0_205, %c0_206] : memref<49x4x4xf32, #tpu.memory_space<vmem>>, vector<1x4x4xf32>
    %329 = vector.shape_cast %328 : vector<1x4x4xf32> to vector<4x4xf32>
    %cst_207 = arith.constant dense<0.000000e+00> : vector<4x32xf32>
    %330 = tpu.matmul %329, %327, %cst_207 {dimension_numbers = #tpu.dot_dimension_numbers<[1], [0], [0], [1], [0, 0, 1, 1], [], []>} : vector<4x4xf32>, vector<4x32xf32>, vector<4x32xf32> -> vector<4x32xf32>
    %331 = arith.addf %325, %330 : vector<4x32xf32>
    %332 = arith.addf %326, %327 : vector<4x32xf32>
    %333 = vector.extract_strided_slice %250 {offsets = [0, 14], sizes = [4, 32], strides = [1, 1]} : vector<4x80xf32> to vector<4x32xf32>
    %c14_208 = arith.constant 14 : index
    %c0_209 = arith.constant 0 : index
    %c0_210 = arith.constant 0 : index
    %334 = vector.load %arg4[%c14_208, %c0_209, %c0_210] : memref<49x4x4xf32, #tpu.memory_space<vmem>>, vector<1x4x4xf32>
    %335 = vector.shape_cast %334 : vector<1x4x4xf32> to vector<4x4xf32>
    %cst_211 = arith.constant dense<0.000000e+00> : vector<4x32xf32>
    %336 = tpu.matmul %335, %333, %cst_211 {dimension_numbers = #tpu.dot_dimension_numbers<[1], [0], [0], [1], [0, 0, 1, 1], [], []>} : vector<4x4xf32>, vector<4x32xf32>, vector<4x32xf32> -> vector<4x32xf32>
    %337 = arith.addf %331, %336 : vector<4x32xf32>
    %338 = arith.addf %332, %333 : vector<4x32xf32>
    %339 = vector.extract_strided_slice %250 {offsets = [0, 15], sizes = [4, 32], strides = [1, 1]} : vector<4x80xf32> to vector<4x32xf32>
    %c15_212 = arith.constant 15 : index
    %c0_213 = arith.constant 0 : index
    %c0_214 = arith.constant 0 : index
    %340 = vector.load %arg4[%c15_212, %c0_213, %c0_214] : memref<49x4x4xf32, #tpu.memory_space<vmem>>, vector<1x4x4xf32>
    %341 = vector.shape_cast %340 : vector<1x4x4xf32> to vector<4x4xf32>
    %cst_215 = arith.constant dense<0.000000e+00> : vector<4x32xf32>
    %342 = tpu.matmul %341, %339, %cst_215 {dimension_numbers = #tpu.dot_dimension_numbers<[1], [0], [0], [1], [0, 0, 1, 1], [], []>} : vector<4x4xf32>, vector<4x32xf32>, vector<4x32xf32> -> vector<4x32xf32>
    %343 = arith.addf %337, %342 : vector<4x32xf32>
    %344 = arith.addf %338, %339 : vector<4x32xf32>
    %345 = vector.extract_strided_slice %250 {offsets = [0, 16], sizes = [4, 32], strides = [1, 1]} : vector<4x80xf32> to vector<4x32xf32>
    %c16_216 = arith.constant 16 : index
    %c0_217 = arith.constant 0 : index
    %c0_218 = arith.constant 0 : index
    %346 = vector.load %arg4[%c16_216, %c0_217, %c0_218] : memref<49x4x4xf32, #tpu.memory_space<vmem>>, vector<1x4x4xf32>
    %347 = vector.shape_cast %346 : vector<1x4x4xf32> to vector<4x4xf32>
    %cst_219 = arith.constant dense<0.000000e+00> : vector<4x32xf32>
    %348 = tpu.matmul %347, %345, %cst_219 {dimension_numbers = #tpu.dot_dimension_numbers<[1], [0], [0], [1], [0, 0, 1, 1], [], []>} : vector<4x4xf32>, vector<4x32xf32>, vector<4x32xf32> -> vector<4x32xf32>
    %349 = arith.addf %343, %348 : vector<4x32xf32>
    %350 = arith.addf %344, %345 : vector<4x32xf32>
    %351 = vector.extract_strided_slice %250 {offsets = [0, 17], sizes = [4, 32], strides = [1, 1]} : vector<4x80xf32> to vector<4x32xf32>
    %c17_220 = arith.constant 17 : index
    %c0_221 = arith.constant 0 : index
    %c0_222 = arith.constant 0 : index
    %352 = vector.load %arg4[%c17_220, %c0_221, %c0_222] : memref<49x4x4xf32, #tpu.memory_space<vmem>>, vector<1x4x4xf32>
    %353 = vector.shape_cast %352 : vector<1x4x4xf32> to vector<4x4xf32>
    %cst_223 = arith.constant dense<0.000000e+00> : vector<4x32xf32>
    %354 = tpu.matmul %353, %351, %cst_223 {dimension_numbers = #tpu.dot_dimension_numbers<[1], [0], [0], [1], [0, 0, 1, 1], [], []>} : vector<4x4xf32>, vector<4x32xf32>, vector<4x32xf32> -> vector<4x32xf32>
    %355 = arith.addf %349, %354 : vector<4x32xf32>
    %356 = arith.addf %350, %351 : vector<4x32xf32>
    %357 = vector.extract_strided_slice %250 {offsets = [0, 18], sizes = [4, 32], strides = [1, 1]} : vector<4x80xf32> to vector<4x32xf32>
    %c18_224 = arith.constant 18 : index
    %c0_225 = arith.constant 0 : index
    %c0_226 = arith.constant 0 : index
    %358 = vector.load %arg4[%c18_224, %c0_225, %c0_226] : memref<49x4x4xf32, #tpu.memory_space<vmem>>, vector<1x4x4xf32>
    %359 = vector.shape_cast %358 : vector<1x4x4xf32> to vector<4x4xf32>
    %cst_227 = arith.constant dense<0.000000e+00> : vector<4x32xf32>
    %360 = tpu.matmul %359, %357, %cst_227 {dimension_numbers = #tpu.dot_dimension_numbers<[1], [0], [0], [1], [0, 0, 1, 1], [], []>} : vector<4x4xf32>, vector<4x32xf32>, vector<4x32xf32> -> vector<4x32xf32>
    %361 = arith.addf %355, %360 : vector<4x32xf32>
    %362 = arith.addf %356, %357 : vector<4x32xf32>
    %363 = vector.extract_strided_slice %250 {offsets = [0, 19], sizes = [4, 32], strides = [1, 1]} : vector<4x80xf32> to vector<4x32xf32>
    %c19_228 = arith.constant 19 : index
    %c0_229 = arith.constant 0 : index
    %c0_230 = arith.constant 0 : index
    %364 = vector.load %arg4[%c19_228, %c0_229, %c0_230] : memref<49x4x4xf32, #tpu.memory_space<vmem>>, vector<1x4x4xf32>
    %365 = vector.shape_cast %364 : vector<1x4x4xf32> to vector<4x4xf32>
    %cst_231 = arith.constant dense<0.000000e+00> : vector<4x32xf32>
    %366 = tpu.matmul %365, %363, %cst_231 {dimension_numbers = #tpu.dot_dimension_numbers<[1], [0], [0], [1], [0, 0, 1, 1], [], []>} : vector<4x4xf32>, vector<4x32xf32>, vector<4x32xf32> -> vector<4x32xf32>
    %367 = arith.addf %361, %366 : vector<4x32xf32>
    %368 = arith.addf %362, %363 : vector<4x32xf32>
    %369 = vector.extract_strided_slice %250 {offsets = [0, 20], sizes = [4, 32], strides = [1, 1]} : vector<4x80xf32> to vector<4x32xf32>
    %c20_232 = arith.constant 20 : index
    %c0_233 = arith.constant 0 : index
    %c0_234 = arith.constant 0 : index
    %370 = vector.load %arg4[%c20_232, %c0_233, %c0_234] : memref<49x4x4xf32, #tpu.memory_space<vmem>>, vector<1x4x4xf32>
    %371 = vector.shape_cast %370 : vector<1x4x4xf32> to vector<4x4xf32>
    %cst_235 = arith.constant dense<0.000000e+00> : vector<4x32xf32>
    %372 = tpu.matmul %371, %369, %cst_235 {dimension_numbers = #tpu.dot_dimension_numbers<[1], [0], [0], [1], [0, 0, 1, 1], [], []>} : vector<4x4xf32>, vector<4x32xf32>, vector<4x32xf32> -> vector<4x32xf32>
    %373 = arith.addf %367, %372 : vector<4x32xf32>
    %374 = arith.addf %368, %369 : vector<4x32xf32>
    %375 = vector.extract_strided_slice %250 {offsets = [0, 21], sizes = [4, 32], strides = [1, 1]} : vector<4x80xf32> to vector<4x32xf32>
    %c21_236 = arith.constant 21 : index
    %c0_237 = arith.constant 0 : index
    %c0_238 = arith.constant 0 : index
    %376 = vector.load %arg4[%c21_236, %c0_237, %c0_238] : memref<49x4x4xf32, #tpu.memory_space<vmem>>, vector<1x4x4xf32>
    %377 = vector.shape_cast %376 : vector<1x4x4xf32> to vector<4x4xf32>
    %cst_239 = arith.constant dense<0.000000e+00> : vector<4x32xf32>
    %378 = tpu.matmul %377, %375, %cst_239 {dimension_numbers = #tpu.dot_dimension_numbers<[1], [0], [0], [1], [0, 0, 1, 1], [], []>} : vector<4x4xf32>, vector<4x32xf32>, vector<4x32xf32> -> vector<4x32xf32>
    %379 = arith.addf %373, %378 : vector<4x32xf32>
    %380 = arith.addf %374, %375 : vector<4x32xf32>
    %381 = vector.extract_strided_slice %250 {offsets = [0, 22], sizes = [4, 32], strides = [1, 1]} : vector<4x80xf32> to vector<4x32xf32>
    %c22_240 = arith.constant 22 : index
    %c0_241 = arith.constant 0 : index
    %c0_242 = arith.constant 0 : index
    %382 = vector.load %arg4[%c22_240, %c0_241, %c0_242] : memref<49x4x4xf32, #tpu.memory_space<vmem>>, vector<1x4x4xf32>
    %383 = vector.shape_cast %382 : vector<1x4x4xf32> to vector<4x4xf32>
    %cst_243 = arith.constant dense<0.000000e+00> : vector<4x32xf32>
    %384 = tpu.matmul %383, %381, %cst_243 {dimension_numbers = #tpu.dot_dimension_numbers<[1], [0], [0], [1], [0, 0, 1, 1], [], []>} : vector<4x4xf32>, vector<4x32xf32>, vector<4x32xf32> -> vector<4x32xf32>
    %385 = arith.addf %379, %384 : vector<4x32xf32>
    %386 = arith.addf %380, %381 : vector<4x32xf32>
    %387 = vector.extract_strided_slice %250 {offsets = [0, 23], sizes = [4, 32], strides = [1, 1]} : vector<4x80xf32> to vector<4x32xf32>
    %c23_244 = arith.constant 23 : index
    %c0_245 = arith.constant 0 : index
    %c0_246 = arith.constant 0 : index
    %388 = vector.load %arg4[%c23_244, %c0_245, %c0_246] : memref<49x4x4xf32, #tpu.memory_space<vmem>>, vector<1x4x4xf32>
    %389 = vector.shape_cast %388 : vector<1x4x4xf32> to vector<4x4xf32>
    %cst_247 = arith.constant dense<0.000000e+00> : vector<4x32xf32>
    %390 = tpu.matmul %389, %387, %cst_247 {dimension_numbers = #tpu.dot_dimension_numbers<[1], [0], [0], [1], [0, 0, 1, 1], [], []>} : vector<4x4xf32>, vector<4x32xf32>, vector<4x32xf32> -> vector<4x32xf32>
    %391 = arith.addf %385, %390 : vector<4x32xf32>
    %392 = arith.addf %386, %387 : vector<4x32xf32>
    %393 = vector.extract_strided_slice %250 {offsets = [0, 24], sizes = [4, 32], strides = [1, 1]} : vector<4x80xf32> to vector<4x32xf32>
    %c24_248 = arith.constant 24 : index
    %c0_249 = arith.constant 0 : index
    %c0_250 = arith.constant 0 : index
    %394 = vector.load %arg4[%c24_248, %c0_249, %c0_250] : memref<49x4x4xf32, #tpu.memory_space<vmem>>, vector<1x4x4xf32>
    %395 = vector.shape_cast %394 : vector<1x4x4xf32> to vector<4x4xf32>
    %cst_251 = arith.constant dense<0.000000e+00> : vector<4x32xf32>
    %396 = tpu.matmul %395, %393, %cst_251 {dimension_numbers = #tpu.dot_dimension_numbers<[1], [0], [0], [1], [0, 0, 1, 1], [], []>} : vector<4x4xf32>, vector<4x32xf32>, vector<4x32xf32> -> vector<4x32xf32>
    %397 = arith.addf %391, %396 : vector<4x32xf32>
    %398 = arith.addf %392, %393 : vector<4x32xf32>
    %399 = vector.extract_strided_slice %250 {offsets = [0, 25], sizes = [4, 32], strides = [1, 1]} : vector<4x80xf32> to vector<4x32xf32>
    %c25_252 = arith.constant 25 : index
    %c0_253 = arith.constant 0 : index
    %c0_254 = arith.constant 0 : index
    %400 = vector.load %arg4[%c25_252, %c0_253, %c0_254] : memref<49x4x4xf32, #tpu.memory_space<vmem>>, vector<1x4x4xf32>
    %401 = vector.shape_cast %400 : vector<1x4x4xf32> to vector<4x4xf32>
    %cst_255 = arith.constant dense<0.000000e+00> : vector<4x32xf32>
    %402 = tpu.matmul %401, %399, %cst_255 {dimension_numbers = #tpu.dot_dimension_numbers<[1], [0], [0], [1], [0, 0, 1, 1], [], []>} : vector<4x4xf32>, vector<4x32xf32>, vector<4x32xf32> -> vector<4x32xf32>
    %403 = arith.addf %397, %402 : vector<4x32xf32>
    %404 = arith.addf %398, %399 : vector<4x32xf32>
    %405 = vector.extract_strided_slice %250 {offsets = [0, 26], sizes = [4, 32], strides = [1, 1]} : vector<4x80xf32> to vector<4x32xf32>
    %c26_256 = arith.constant 26 : index
    %c0_257 = arith.constant 0 : index
    %c0_258 = arith.constant 0 : index
    %406 = vector.load %arg4[%c26_256, %c0_257, %c0_258] : memref<49x4x4xf32, #tpu.memory_space<vmem>>, vector<1x4x4xf32>
    %407 = vector.shape_cast %406 : vector<1x4x4xf32> to vector<4x4xf32>
    %cst_259 = arith.constant dense<0.000000e+00> : vector<4x32xf32>
    %408 = tpu.matmul %407, %405, %cst_259 {dimension_numbers = #tpu.dot_dimension_numbers<[1], [0], [0], [1], [0, 0, 1, 1], [], []>} : vector<4x4xf32>, vector<4x32xf32>, vector<4x32xf32> -> vector<4x32xf32>
    %409 = arith.addf %403, %408 : vector<4x32xf32>
    %410 = arith.addf %404, %405 : vector<4x32xf32>
    %411 = vector.extract_strided_slice %250 {offsets = [0, 27], sizes = [4, 32], strides = [1, 1]} : vector<4x80xf32> to vector<4x32xf32>
    %c27_260 = arith.constant 27 : index
    %c0_261 = arith.constant 0 : index
    %c0_262 = arith.constant 0 : index
    %412 = vector.load %arg4[%c27_260, %c0_261, %c0_262] : memref<49x4x4xf32, #tpu.memory_space<vmem>>, vector<1x4x4xf32>
    %413 = vector.shape_cast %412 : vector<1x4x4xf32> to vector<4x4xf32>
    %cst_263 = arith.constant dense<0.000000e+00> : vector<4x32xf32>
    %414 = tpu.matmul %413, %411, %cst_263 {dimension_numbers = #tpu.dot_dimension_numbers<[1], [0], [0], [1], [0, 0, 1, 1], [], []>} : vector<4x4xf32>, vector<4x32xf32>, vector<4x32xf32> -> vector<4x32xf32>
    %415 = arith.addf %409, %414 : vector<4x32xf32>
    %416 = arith.addf %410, %411 : vector<4x32xf32>
    %417 = vector.extract_strided_slice %250 {offsets = [0, 28], sizes = [4, 32], strides = [1, 1]} : vector<4x80xf32> to vector<4x32xf32>
    %c28_264 = arith.constant 28 : index
    %c0_265 = arith.constant 0 : index
    %c0_266 = arith.constant 0 : index
    %418 = vector.load %arg4[%c28_264, %c0_265, %c0_266] : memref<49x4x4xf32, #tpu.memory_space<vmem>>, vector<1x4x4xf32>
    %419 = vector.shape_cast %418 : vector<1x4x4xf32> to vector<4x4xf32>
    %cst_267 = arith.constant dense<0.000000e+00> : vector<4x32xf32>
    %420 = tpu.matmul %419, %417, %cst_267 {dimension_numbers = #tpu.dot_dimension_numbers<[1], [0], [0], [1], [0, 0, 1, 1], [], []>} : vector<4x4xf32>, vector<4x32xf32>, vector<4x32xf32> -> vector<4x32xf32>
    %421 = arith.addf %415, %420 : vector<4x32xf32>
    %422 = arith.addf %416, %417 : vector<4x32xf32>
    %423 = vector.extract_strided_slice %250 {offsets = [0, 29], sizes = [4, 32], strides = [1, 1]} : vector<4x80xf32> to vector<4x32xf32>
    %c29_268 = arith.constant 29 : index
    %c0_269 = arith.constant 0 : index
    %c0_270 = arith.constant 0 : index
    %424 = vector.load %arg4[%c29_268, %c0_269, %c0_270] : memref<49x4x4xf32, #tpu.memory_space<vmem>>, vector<1x4x4xf32>
    %425 = vector.shape_cast %424 : vector<1x4x4xf32> to vector<4x4xf32>
    %cst_271 = arith.constant dense<0.000000e+00> : vector<4x32xf32>
    %426 = tpu.matmul %425, %423, %cst_271 {dimension_numbers = #tpu.dot_dimension_numbers<[1], [0], [0], [1], [0, 0, 1, 1], [], []>} : vector<4x4xf32>, vector<4x32xf32>, vector<4x32xf32> -> vector<4x32xf32>
    %427 = arith.addf %421, %426 : vector<4x32xf32>
    %428 = arith.addf %422, %423 : vector<4x32xf32>
    %429 = vector.extract_strided_slice %250 {offsets = [0, 30], sizes = [4, 32], strides = [1, 1]} : vector<4x80xf32> to vector<4x32xf32>
    %c30_272 = arith.constant 30 : index
    %c0_273 = arith.constant 0 : index
    %c0_274 = arith.constant 0 : index
    %430 = vector.load %arg4[%c30_272, %c0_273, %c0_274] : memref<49x4x4xf32, #tpu.memory_space<vmem>>, vector<1x4x4xf32>
    %431 = vector.shape_cast %430 : vector<1x4x4xf32> to vector<4x4xf32>
    %cst_275 = arith.constant dense<0.000000e+00> : vector<4x32xf32>
    %432 = tpu.matmul %431, %429, %cst_275 {dimension_numbers = #tpu.dot_dimension_numbers<[1], [0], [0], [1], [0, 0, 1, 1], [], []>} : vector<4x4xf32>, vector<4x32xf32>, vector<4x32xf32> -> vector<4x32xf32>
    %433 = arith.addf %427, %432 : vector<4x32xf32>
    %434 = arith.addf %428, %429 : vector<4x32xf32>
    %435 = vector.extract_strided_slice %250 {offsets = [0, 31], sizes = [4, 32], strides = [1, 1]} : vector<4x80xf32> to vector<4x32xf32>
    %c31_276 = arith.constant 31 : index
    %c0_277 = arith.constant 0 : index
    %c0_278 = arith.constant 0 : index
    %436 = vector.load %arg4[%c31_276, %c0_277, %c0_278] : memref<49x4x4xf32, #tpu.memory_space<vmem>>, vector<1x4x4xf32>
    %437 = vector.shape_cast %436 : vector<1x4x4xf32> to vector<4x4xf32>
    %cst_279 = arith.constant dense<0.000000e+00> : vector<4x32xf32>
    %438 = tpu.matmul %437, %435, %cst_279 {dimension_numbers = #tpu.dot_dimension_numbers<[1], [0], [0], [1], [0, 0, 1, 1], [], []>} : vector<4x4xf32>, vector<4x32xf32>, vector<4x32xf32> -> vector<4x32xf32>
    %439 = arith.addf %433, %438 : vector<4x32xf32>
    %440 = arith.addf %434, %435 : vector<4x32xf32>
    %441 = vector.extract_strided_slice %250 {offsets = [0, 32], sizes = [4, 32], strides = [1, 1]} : vector<4x80xf32> to vector<4x32xf32>
    %c32_280 = arith.constant 32 : index
    %c0_281 = arith.constant 0 : index
    %c0_282 = arith.constant 0 : index
    %442 = vector.load %arg4[%c32_280, %c0_281, %c0_282] : memref<49x4x4xf32, #tpu.memory_space<vmem>>, vector<1x4x4xf32>
    %443 = vector.shape_cast %442 : vector<1x4x4xf32> to vector<4x4xf32>
    %cst_283 = arith.constant dense<0.000000e+00> : vector<4x32xf32>
    %444 = tpu.matmul %443, %441, %cst_283 {dimension_numbers = #tpu.dot_dimension_numbers<[1], [0], [0], [1], [0, 0, 1, 1], [], []>} : vector<4x4xf32>, vector<4x32xf32>, vector<4x32xf32> -> vector<4x32xf32>
    %445 = arith.addf %439, %444 : vector<4x32xf32>
    %446 = arith.addf %440, %441 : vector<4x32xf32>
    %447 = vector.extract_strided_slice %250 {offsets = [0, 33], sizes = [4, 32], strides = [1, 1]} : vector<4x80xf32> to vector<4x32xf32>
    %c33_284 = arith.constant 33 : index
    %c0_285 = arith.constant 0 : index
    %c0_286 = arith.constant 0 : index
    %448 = vector.load %arg4[%c33_284, %c0_285, %c0_286] : memref<49x4x4xf32, #tpu.memory_space<vmem>>, vector<1x4x4xf32>
    %449 = vector.shape_cast %448 : vector<1x4x4xf32> to vector<4x4xf32>
    %cst_287 = arith.constant dense<0.000000e+00> : vector<4x32xf32>
    %450 = tpu.matmul %449, %447, %cst_287 {dimension_numbers = #tpu.dot_dimension_numbers<[1], [0], [0], [1], [0, 0, 1, 1], [], []>} : vector<4x4xf32>, vector<4x32xf32>, vector<4x32xf32> -> vector<4x32xf32>
    %451 = arith.addf %445, %450 : vector<4x32xf32>
    %452 = arith.addf %446, %447 : vector<4x32xf32>
    %453 = vector.extract_strided_slice %250 {offsets = [0, 34], sizes = [4, 32], strides = [1, 1]} : vector<4x80xf32> to vector<4x32xf32>
    %c34_288 = arith.constant 34 : index
    %c0_289 = arith.constant 0 : index
    %c0_290 = arith.constant 0 : index
    %454 = vector.load %arg4[%c34_288, %c0_289, %c0_290] : memref<49x4x4xf32, #tpu.memory_space<vmem>>, vector<1x4x4xf32>
    %455 = vector.shape_cast %454 : vector<1x4x4xf32> to vector<4x4xf32>
    %cst_291 = arith.constant dense<0.000000e+00> : vector<4x32xf32>
    %456 = tpu.matmul %455, %453, %cst_291 {dimension_numbers = #tpu.dot_dimension_numbers<[1], [0], [0], [1], [0, 0, 1, 1], [], []>} : vector<4x4xf32>, vector<4x32xf32>, vector<4x32xf32> -> vector<4x32xf32>
    %457 = arith.addf %451, %456 : vector<4x32xf32>
    %458 = arith.addf %452, %453 : vector<4x32xf32>
    %459 = vector.extract_strided_slice %250 {offsets = [0, 35], sizes = [4, 32], strides = [1, 1]} : vector<4x80xf32> to vector<4x32xf32>
    %c35_292 = arith.constant 35 : index
    %c0_293 = arith.constant 0 : index
    %c0_294 = arith.constant 0 : index
    %460 = vector.load %arg4[%c35_292, %c0_293, %c0_294] : memref<49x4x4xf32, #tpu.memory_space<vmem>>, vector<1x4x4xf32>
    %461 = vector.shape_cast %460 : vector<1x4x4xf32> to vector<4x4xf32>
    %cst_295 = arith.constant dense<0.000000e+00> : vector<4x32xf32>
    %462 = tpu.matmul %461, %459, %cst_295 {dimension_numbers = #tpu.dot_dimension_numbers<[1], [0], [0], [1], [0, 0, 1, 1], [], []>} : vector<4x4xf32>, vector<4x32xf32>, vector<4x32xf32> -> vector<4x32xf32>
    %463 = arith.addf %457, %462 : vector<4x32xf32>
    %464 = arith.addf %458, %459 : vector<4x32xf32>
    %465 = vector.extract_strided_slice %250 {offsets = [0, 36], sizes = [4, 32], strides = [1, 1]} : vector<4x80xf32> to vector<4x32xf32>
    %c36_296 = arith.constant 36 : index
    %c0_297 = arith.constant 0 : index
    %c0_298 = arith.constant 0 : index
    %466 = vector.load %arg4[%c36_296, %c0_297, %c0_298] : memref<49x4x4xf32, #tpu.memory_space<vmem>>, vector<1x4x4xf32>
    %467 = vector.shape_cast %466 : vector<1x4x4xf32> to vector<4x4xf32>
    %cst_299 = arith.constant dense<0.000000e+00> : vector<4x32xf32>
    %468 = tpu.matmul %467, %465, %cst_299 {dimension_numbers = #tpu.dot_dimension_numbers<[1], [0], [0], [1], [0, 0, 1, 1], [], []>} : vector<4x4xf32>, vector<4x32xf32>, vector<4x32xf32> -> vector<4x32xf32>
    %469 = arith.addf %463, %468 : vector<4x32xf32>
    %470 = arith.addf %464, %465 : vector<4x32xf32>
    %471 = vector.extract_strided_slice %250 {offsets = [0, 37], sizes = [4, 32], strides = [1, 1]} : vector<4x80xf32> to vector<4x32xf32>
    %c37_300 = arith.constant 37 : index
    %c0_301 = arith.constant 0 : index
    %c0_302 = arith.constant 0 : index
    %472 = vector.load %arg4[%c37_300, %c0_301, %c0_302] : memref<49x4x4xf32, #tpu.memory_space<vmem>>, vector<1x4x4xf32>
    %473 = vector.shape_cast %472 : vector<1x4x4xf32> to vector<4x4xf32>
    %cst_303 = arith.constant dense<0.000000e+00> : vector<4x32xf32>
    %474 = tpu.matmul %473, %471, %cst_303 {dimension_numbers = #tpu.dot_dimension_numbers<[1], [0], [0], [1], [0, 0, 1, 1], [], []>} : vector<4x4xf32>, vector<4x32xf32>, vector<4x32xf32> -> vector<4x32xf32>
    %475 = arith.addf %469, %474 : vector<4x32xf32>
    %476 = arith.addf %470, %471 : vector<4x32xf32>
    %477 = vector.extract_strided_slice %250 {offsets = [0, 38], sizes = [4, 32], strides = [1, 1]} : vector<4x80xf32> to vector<4x32xf32>
    %c38_304 = arith.constant 38 : index
    %c0_305 = arith.constant 0 : index
    %c0_306 = arith.constant 0 : index
    %478 = vector.load %arg4[%c38_304, %c0_305, %c0_306] : memref<49x4x4xf32, #tpu.memory_space<vmem>>, vector<1x4x4xf32>
    %479 = vector.shape_cast %478 : vector<1x4x4xf32> to vector<4x4xf32>
    %cst_307 = arith.constant dense<0.000000e+00> : vector<4x32xf32>
    %480 = tpu.matmul %479, %477, %cst_307 {dimension_numbers = #tpu.dot_dimension_numbers<[1], [0], [0], [1], [0, 0, 1, 1], [], []>} : vector<4x4xf32>, vector<4x32xf32>, vector<4x32xf32> -> vector<4x32xf32>
    %481 = arith.addf %475, %480 : vector<4x32xf32>
    %482 = arith.addf %476, %477 : vector<4x32xf32>
    %483 = vector.extract_strided_slice %250 {offsets = [0, 39], sizes = [4, 32], strides = [1, 1]} : vector<4x80xf32> to vector<4x32xf32>
    %c39_308 = arith.constant 39 : index
    %c0_309 = arith.constant 0 : index
    %c0_310 = arith.constant 0 : index
    %484 = vector.load %arg4[%c39_308, %c0_309, %c0_310] : memref<49x4x4xf32, #tpu.memory_space<vmem>>, vector<1x4x4xf32>
    %485 = vector.shape_cast %484 : vector<1x4x4xf32> to vector<4x4xf32>
    %cst_311 = arith.constant dense<0.000000e+00> : vector<4x32xf32>
    %486 = tpu.matmul %485, %483, %cst_311 {dimension_numbers = #tpu.dot_dimension_numbers<[1], [0], [0], [1], [0, 0, 1, 1], [], []>} : vector<4x4xf32>, vector<4x32xf32>, vector<4x32xf32> -> vector<4x32xf32>
    %487 = arith.addf %481, %486 : vector<4x32xf32>
    %488 = arith.addf %482, %483 : vector<4x32xf32>
    %489 = vector.extract_strided_slice %250 {offsets = [0, 40], sizes = [4, 32], strides = [1, 1]} : vector<4x80xf32> to vector<4x32xf32>
    %c40_312 = arith.constant 40 : index
    %c0_313 = arith.constant 0 : index
    %c0_314 = arith.constant 0 : index
    %490 = vector.load %arg4[%c40_312, %c0_313, %c0_314] : memref<49x4x4xf32, #tpu.memory_space<vmem>>, vector<1x4x4xf32>
    %491 = vector.shape_cast %490 : vector<1x4x4xf32> to vector<4x4xf32>
    %cst_315 = arith.constant dense<0.000000e+00> : vector<4x32xf32>
    %492 = tpu.matmul %491, %489, %cst_315 {dimension_numbers = #tpu.dot_dimension_numbers<[1], [0], [0], [1], [0, 0, 1, 1], [], []>} : vector<4x4xf32>, vector<4x32xf32>, vector<4x32xf32> -> vector<4x32xf32>
    %493 = arith.addf %487, %492 : vector<4x32xf32>
    %494 = arith.addf %488, %489 : vector<4x32xf32>
    %495 = vector.extract_strided_slice %250 {offsets = [0, 41], sizes = [4, 32], strides = [1, 1]} : vector<4x80xf32> to vector<4x32xf32>
    %c41_316 = arith.constant 41 : index
    %c0_317 = arith.constant 0 : index
    %c0_318 = arith.constant 0 : index
    %496 = vector.load %arg4[%c41_316, %c0_317, %c0_318] : memref<49x4x4xf32, #tpu.memory_space<vmem>>, vector<1x4x4xf32>
    %497 = vector.shape_cast %496 : vector<1x4x4xf32> to vector<4x4xf32>
    %cst_319 = arith.constant dense<0.000000e+00> : vector<4x32xf32>
    %498 = tpu.matmul %497, %495, %cst_319 {dimension_numbers = #tpu.dot_dimension_numbers<[1], [0], [0], [1], [0, 0, 1, 1], [], []>} : vector<4x4xf32>, vector<4x32xf32>, vector<4x32xf32> -> vector<4x32xf32>
    %499 = arith.addf %493, %498 : vector<4x32xf32>
    %500 = arith.addf %494, %495 : vector<4x32xf32>
    %501 = vector.extract_strided_slice %250 {offsets = [0, 42], sizes = [4, 32], strides = [1, 1]} : vector<4x80xf32> to vector<4x32xf32>
    %c42_320 = arith.constant 42 : index
    %c0_321 = arith.constant 0 : index
    %c0_322 = arith.constant 0 : index
    %502 = vector.load %arg4[%c42_320, %c0_321, %c0_322] : memref<49x4x4xf32, #tpu.memory_space<vmem>>, vector<1x4x4xf32>
    %503 = vector.shape_cast %502 : vector<1x4x4xf32> to vector<4x4xf32>
    %cst_323 = arith.constant dense<0.000000e+00> : vector<4x32xf32>
    %504 = tpu.matmul %503, %501, %cst_323 {dimension_numbers = #tpu.dot_dimension_numbers<[1], [0], [0], [1], [0, 0, 1, 1], [], []>} : vector<4x4xf32>, vector<4x32xf32>, vector<4x32xf32> -> vector<4x32xf32>
    %505 = arith.addf %499, %504 : vector<4x32xf32>
    %506 = arith.addf %500, %501 : vector<4x32xf32>
    %507 = vector.extract_strided_slice %250 {offsets = [0, 43], sizes = [4, 32], strides = [1, 1]} : vector<4x80xf32> to vector<4x32xf32>
    %c43_324 = arith.constant 43 : index
    %c0_325 = arith.constant 0 : index
    %c0_326 = arith.constant 0 : index
    %508 = vector.load %arg4[%c43_324, %c0_325, %c0_326] : memref<49x4x4xf32, #tpu.memory_space<vmem>>, vector<1x4x4xf32>
    %509 = vector.shape_cast %508 : vector<1x4x4xf32> to vector<4x4xf32>
    %cst_327 = arith.constant dense<0.000000e+00> : vector<4x32xf32>
    %510 = tpu.matmul %509, %507, %cst_327 {dimension_numbers = #tpu.dot_dimension_numbers<[1], [0], [0], [1], [0, 0, 1, 1], [], []>} : vector<4x4xf32>, vector<4x32xf32>, vector<4x32xf32> -> vector<4x32xf32>
    %511 = arith.addf %505, %510 : vector<4x32xf32>
    %512 = arith.addf %506, %507 : vector<4x32xf32>
    %513 = vector.extract_strided_slice %250 {offsets = [0, 44], sizes = [4, 32], strides = [1, 1]} : vector<4x80xf32> to vector<4x32xf32>
    %c44_328 = arith.constant 44 : index
    %c0_329 = arith.constant 0 : index
    %c0_330 = arith.constant 0 : index
    %514 = vector.load %arg4[%c44_328, %c0_329, %c0_330] : memref<49x4x4xf32, #tpu.memory_space<vmem>>, vector<1x4x4xf32>
    %515 = vector.shape_cast %514 : vector<1x4x4xf32> to vector<4x4xf32>
    %cst_331 = arith.constant dense<0.000000e+00> : vector<4x32xf32>
    %516 = tpu.matmul %515, %513, %cst_331 {dimension_numbers = #tpu.dot_dimension_numbers<[1], [0], [0], [1], [0, 0, 1, 1], [], []>} : vector<4x4xf32>, vector<4x32xf32>, vector<4x32xf32> -> vector<4x32xf32>
    %517 = arith.addf %511, %516 : vector<4x32xf32>
    %518 = arith.addf %512, %513 : vector<4x32xf32>
    %519 = vector.extract_strided_slice %250 {offsets = [0, 45], sizes = [4, 32], strides = [1, 1]} : vector<4x80xf32> to vector<4x32xf32>
    %c45_332 = arith.constant 45 : index
    %c0_333 = arith.constant 0 : index
    %c0_334 = arith.constant 0 : index
    %520 = vector.load %arg4[%c45_332, %c0_333, %c0_334] : memref<49x4x4xf32, #tpu.memory_space<vmem>>, vector<1x4x4xf32>
    %521 = vector.shape_cast %520 : vector<1x4x4xf32> to vector<4x4xf32>
    %cst_335 = arith.constant dense<0.000000e+00> : vector<4x32xf32>
    %522 = tpu.matmul %521, %519, %cst_335 {dimension_numbers = #tpu.dot_dimension_numbers<[1], [0], [0], [1], [0, 0, 1, 1], [], []>} : vector<4x4xf32>, vector<4x32xf32>, vector<4x32xf32> -> vector<4x32xf32>
    %523 = arith.addf %517, %522 : vector<4x32xf32>
    %524 = arith.addf %518, %519 : vector<4x32xf32>
    %525 = vector.extract_strided_slice %250 {offsets = [0, 46], sizes = [4, 32], strides = [1, 1]} : vector<4x80xf32> to vector<4x32xf32>
    %c46_336 = arith.constant 46 : index
    %c0_337 = arith.constant 0 : index
    %c0_338 = arith.constant 0 : index
    %526 = vector.load %arg4[%c46_336, %c0_337, %c0_338] : memref<49x4x4xf32, #tpu.memory_space<vmem>>, vector<1x4x4xf32>
    %527 = vector.shape_cast %526 : vector<1x4x4xf32> to vector<4x4xf32>
    %cst_339 = arith.constant dense<0.000000e+00> : vector<4x32xf32>
    %528 = tpu.matmul %527, %525, %cst_339 {dimension_numbers = #tpu.dot_dimension_numbers<[1], [0], [0], [1], [0, 0, 1, 1], [], []>} : vector<4x4xf32>, vector<4x32xf32>, vector<4x32xf32> -> vector<4x32xf32>
    %529 = arith.addf %523, %528 : vector<4x32xf32>
    %530 = arith.addf %524, %525 : vector<4x32xf32>
    %531 = vector.extract_strided_slice %250 {offsets = [0, 47], sizes = [4, 32], strides = [1, 1]} : vector<4x80xf32> to vector<4x32xf32>
    %c47_340 = arith.constant 47 : index
    %c0_341 = arith.constant 0 : index
    %c0_342 = arith.constant 0 : index
    %532 = vector.load %arg4[%c47_340, %c0_341, %c0_342] : memref<49x4x4xf32, #tpu.memory_space<vmem>>, vector<1x4x4xf32>
    %533 = vector.shape_cast %532 : vector<1x4x4xf32> to vector<4x4xf32>
    %cst_343 = arith.constant dense<0.000000e+00> : vector<4x32xf32>
    %534 = tpu.matmul %533, %531, %cst_343 {dimension_numbers = #tpu.dot_dimension_numbers<[1], [0], [0], [1], [0, 0, 1, 1], [], []>} : vector<4x4xf32>, vector<4x32xf32>, vector<4x32xf32> -> vector<4x32xf32>
    %535 = arith.addf %529, %534 : vector<4x32xf32>
    %536 = arith.addf %530, %531 : vector<4x32xf32>
    %537 = vector.extract_strided_slice %250 {offsets = [0, 48], sizes = [4, 32], strides = [1, 1]} : vector<4x80xf32> to vector<4x32xf32>
    %c48_344 = arith.constant 48 : index
    %c0_345 = arith.constant 0 : index
    %c0_346 = arith.constant 0 : index
    %538 = vector.load %arg4[%c48_344, %c0_345, %c0_346] : memref<49x4x4xf32, #tpu.memory_space<vmem>>, vector<1x4x4xf32>
    %539 = vector.shape_cast %538 : vector<1x4x4xf32> to vector<4x4xf32>
    %cst_347 = arith.constant dense<0.000000e+00> : vector<4x32xf32>
    %540 = tpu.matmul %539, %537, %cst_347 {dimension_numbers = #tpu.dot_dimension_numbers<[1], [0], [0], [1], [0, 0, 1, 1], [], []>} : vector<4x4xf32>, vector<4x32xf32>, vector<4x32xf32> -> vector<4x32xf32>
    %541 = arith.addf %535, %540 : vector<4x32xf32>
    %542 = arith.addf %536, %537 : vector<4x32xf32>
    %c0_348 = arith.constant 0 : index
    %c0_349 = arith.constant 0 : index
    %543 = vector.load %arg5[%c0_348, %c0_349] : memref<4x1xf32, #tpu.memory_space<vmem>>, vector<4x1xf32>
    %544 = vector.broadcast %543 : vector<4x1xf32> to vector<4x32xf32>
    %545 = arith.addf %541, %544 : vector<4x32xf32>
    %cst_350 = arith.constant 0.000000e+00 : f32
    %546 = vector.broadcast %cst_350 : f32 to vector<4x32xf32>
    %547 = arith.maximumf %545, %546 : vector<4x32xf32>
    %cst_351 = arith.constant 0.0204081628 : f32
    %548 = vector.broadcast %cst_351 : f32 to vector<4x32xf32>
    %549 = arith.mulf %542, %548 : vector<4x32xf32>
    %550 = arith.addf %547, %549 : vector<4x32xf32>
    %c0_352 = arith.constant 0 : index
    %c0_353 = arith.constant 0 : index
    %c0_354 = arith.constant 0 : index
    %551 = vector.load %arg6[%c0_352, %c0_353, %c0_354] : memref<3x32x186xf32, #tpu.memory_space<vmem>>, vector<1x32x186xf32>
    %552 = vector.shape_cast %551 : vector<1x32x186xf32> to vector<32x186xf32>
    %cst_355 = arith.constant dense<0.000000e+00> : vector<4x186xf32>
    %553 = tpu.matmul %550, %552, %cst_355 {dimension_numbers = #tpu.dot_dimension_numbers<[1], [0], [0], [1], [0, 0, 1, 1], [], []>} : vector<4x32xf32>, vector<32x186xf32>, vector<4x186xf32> -> vector<4x186xf32>
    %c1_356 = arith.constant 1 : index
    %c0_357 = arith.constant 0 : index
    %c0_358 = arith.constant 0 : index
    %554 = vector.load %arg6[%c1_356, %c0_357, %c0_358] : memref<3x32x186xf32, #tpu.memory_space<vmem>>, vector<1x32x186xf32>
    %555 = vector.shape_cast %554 : vector<1x32x186xf32> to vector<32x186xf32>
    %cst_359 = arith.constant dense<0.000000e+00> : vector<4x186xf32>
    %556 = tpu.matmul %550, %555, %cst_359 {dimension_numbers = #tpu.dot_dimension_numbers<[1], [0], [0], [1], [0, 0, 1, 1], [], []>} : vector<4x32xf32>, vector<32x186xf32>, vector<4x186xf32> -> vector<4x186xf32>
    %557 = arith.maximumf %553, %556 : vector<4x186xf32>
    %c2_360 = arith.constant 2 : index
    %c0_361 = arith.constant 0 : index
    %c0_362 = arith.constant 0 : index
    %558 = vector.load %arg6[%c2_360, %c0_361, %c0_362] : memref<3x32x186xf32, #tpu.memory_space<vmem>>, vector<1x32x186xf32>
    %559 = vector.shape_cast %558 : vector<1x32x186xf32> to vector<32x186xf32>
    %cst_363 = arith.constant dense<0.000000e+00> : vector<4x186xf32>
    %560 = tpu.matmul %550, %559, %cst_363 {dimension_numbers = #tpu.dot_dimension_numbers<[1], [0], [0], [1], [0, 0, 1, 1], [], []>} : vector<4x32xf32>, vector<32x186xf32>, vector<4x186xf32> -> vector<4x186xf32>
    %561 = arith.maximumf %557, %560 : vector<4x186xf32>
    %562 = vector.shape_cast %561 : vector<4x186xf32> to vector<1x4x186xf32>
    %c0_364 = arith.constant 0 : index
    %c0_365 = arith.constant 0 : index
    %c0_366 = arith.constant 0 : index
    %563 = vector.load %arg7[%c0_364, %c0_365, %c0_366] : memref<1x4x186xf32, #tpu.memory_space<vmem>>, vector<1x4x186xf32>
    tpu.vector_store %arg7[%c0_364, %c0_365, %c0_366], %562 {strides = array<i32>} : memref<1x4x186xf32, #tpu.memory_space<vmem>>, vector<1x4x186xf32>,
    %564 = tpu.iota {dimensions = array<i32: 0>} : vector<9x186xi32>
    %565 = tpu.iota {dimensions = array<i32: 1>} : vector<9x186xi32>
    %c10_i32 = arith.constant 10 : i32
    %566 = vector.broadcast %c10_i32 : i32 to vector<9x186xi32>
    %567 = arith.muli %566, %564 : vector<9x186xi32>
    %568 = arith.cmpi sge, %565, %567 : vector<9x186xi32>
    %c10_i32_367 = arith.constant 10 : i32
    %569 = vector.broadcast %c10_i32_367 : i32 to vector<9x186xi32>
    %570 = arith.muli %569, %564 : vector<9x186xi32>
    %c100_i32 = arith.constant 100 : i32
    %571 = vector.broadcast %c100_i32 : i32 to vector<9x186xi32>
    %572 = arith.addi %570, %571 : vector<9x186xi32>
    %573 = arith.cmpi slt, %565, %572 : vector<9x186xi32>
    %574 = arith.andi %568, %573 : vector<9x186xi1>
    %575 = vector.shape_cast %574 : vector<9x186xi1> to vector<1x9x186xi1>
    %576 = vector.shape_cast %561 : vector<4x186xf32> to vector<4x1x186xf32>
    %cst_368 = arith.constant 0xFF800000 : f32
    %577 = vector.shape_cast %575 : vector<1x9x186xi1> to vector<1x9x186xi1>
    %578 = vector.broadcast %577 : vector<1x9x186xi1> to vector<4x9x186xi1>
    %579 = vector.shape_cast %576 : vector<4x1x186xf32> to vector<4x1x186xf32>
    %580 = vector.broadcast %579 : vector<4x1x186xf32> to vector<4x9x186xf32>
    %581 = vector.broadcast %cst_368 : f32 to vector<4x9x186xf32>
    %582 = arith.select %578, %580, %581 : vector<4x9x186xi1>, vector<4x9x186xf32>
    %cst_369 = arith.constant dense<0xFF800000> : vector<4x9xf32>
    %583 = vector.multi_reduction <maximumf>, %582, %cst_369 [2] : vector<4x9x186xf32> to vector<4x9xf32>
    %cst_370 = arith.constant dense<0.000000e+00> : vector<4xf32>
    %584 = vector.multi_reduction <add>, %583, %cst_370 [1] : vector<4x9xf32> to vector<4xf32>
    %585 = vector.shape_cast %584 : vector<4xf32> to vector<4x1xf32>
    %cst_371 = arith.constant 9.000000e+00 : f32
    %586 = vector.broadcast %cst_371 : f32 to vector<4x1xf32>
    %587 = arith.divf %585, %586 : vector<4x1xf32>
    %588 = vector.shape_cast %587 : vector<4x1xf32> to vector<1x4x1xf32>
    %c0_372 = arith.constant 0 : index
    %c0_373 = arith.constant 0 : index
    %c0_374 = arith.constant 0 : index
    %589 = vector.load %arg8[%c0_372, %c0_373, %c0_374] : memref<1x4x1xf32, #tpu.memory_space<vmem>>, vector<1x4x1xf32>
    tpu.vector_store %arg8[%c0_372, %c0_373, %c0_374], %588 {strides = array<i32>} : memref<1x4x1xf32, #tpu.memory_space<vmem>>, vector<1x4x1xf32>,
    return
  }
  func.func @transform_0(%arg0: i32) -> (i32, i32, i32) {
    %c0_i32 = arith.constant 0 : i32
    %c0_i32_0 = arith.constant 0 : i32
    %c0_i32_1 = arith.constant 0 : i32
    return %arg0, %c0_i32, %c0_i32_0 : i32, i32, i32
  }
  func.func @transform_1(%arg0: i32) -> (i32, i32, i32) {
    %c0_i32 = arith.constant 0 : i32
    %c0_i32_0 = arith.constant 0 : i32
    %c0_i32_1 = arith.constant 0 : i32
    %c0_i32_2 = arith.constant 0 : i32
    return %c0_i32, %c0_i32_0, %c0_i32_1 : i32, i32, i32
  }
  func.func @transform_2(%arg0: i32) -> (i32, i32) {
    %c0_i32 = arith.constant 0 : i32
    %c0_i32_0 = arith.constant 0 : i32
    %c0_i32_1 = arith.constant 0 : i32
    return %c0_i32, %c0_i32_0 : i32, i32
  }
  func.func @transform_3(%arg0: i32) -> (i32, i32, i32) {
    %c0_i32 = arith.constant 0 : i32
    %c0_i32_0 = arith.constant 0 : i32
    %c0_i32_1 = arith.constant 0 : i32
    %c0_i32_2 = arith.constant 0 : i32
    return %c0_i32, %c0_i32_0, %c0_i32_1 : i32, i32, i32
  }
  func.func @transform_4(%arg0: i32) -> (i32, i32) {
    %c0_i32 = arith.constant 0 : i32
    %c0_i32_0 = arith.constant 0 : i32
    %c0_i32_1 = arith.constant 0 : i32
    return %c0_i32, %c0_i32_0 : i32, i32
  }
  func.func @transform_5(%arg0: i32) -> (i32, i32, i32) {
    %c0_i32 = arith.constant 0 : i32
    %c0_i32_0 = arith.constant 0 : i32
    %c0_i32_1 = arith.constant 0 : i32
    %c0_i32_2 = arith.constant 0 : i32
    return %c0_i32, %c0_i32_0, %c0_i32_1 : i32, i32, i32
  }
  func.func @transform_6(%arg0: i32) -> (i32, i32, i32) {
    %c0_i32 = arith.constant 0 : i32
    %c0_i32_0 = arith.constant 0 : i32
    %c0_i32_1 = arith.constant 0 : i32
    return %arg0, %c0_i32, %c0_i32_0 : i32, i32, i32
  }
  func.func @transform_7(%arg0: i32) -> (i32, i32, i32) {
    %c0_i32 = arith.constant 0 : i32
    %c0_i32_0 = arith.constant 0 : i32
    %c0_i32_1 = arith.constant 0 : i32
    return %arg0, %c0_i32, %c0_i32_0 : i32, i32, i32
  }
}

</mosaic_0001>

<llo_original>
// kernel: mplc_cnn_forward.1
$region0: #{mplc_cnn_forward.1}
  #allocation0 [shape = 'u32[]', space=smem, size = 0x4, offset = 0x4, fixed_abs, tag = 'smem constant byte address 0x4 - core index']
  #allocation1 [shape = 'u32[72,128]{1,0:T(1,128)}', space=vmem, size = 0x9000, scoped, tag = 'internal scratch']
  %s0 = inlined_call_operand.vmem [shape: f32[2,6,128], index: 0, kind: input, shape index: {}]
  %s1 = inlined_call_operand.vmem [shape: f32[49,4,6], index: 1, kind: input, shape index: {}]
  %s2 = inlined_call_operand.vmem [shape: f32[4,1], index: 2, kind: input, shape index: {}]
  %s3 = inlined_call_operand.vmem [shape: f32[49,4,4], index: 3, kind: input, shape index: {}]
  %s4 = inlined_call_operand.vmem [shape: f32[4,1], index: 4, kind: input, shape index: {}]
  %s5 = inlined_call_operand.vmem [shape: f32[3,32,186], index: 5, kind: input, shape index: {}]
  %s6 = inlined_call_operand.vmem [shape: f32[2,4,186], index: 6, kind: output, shape index: {0}]
  %s7 = inlined_call_operand.vmem [shape: f32[2,4,1], index: 7, kind: output, shape index: {1}]
  %8 = xla_tuple %s6, %s7
  %s9 = sld [smem:[#allocation0]]
  $region65: #{mplc_cnn_forward.1} parent=0
    _
  %s11 = ssub.s32 1, %s9
  %s12 = scalar_select 0, %s11, %s9
  loop: start=0, step=1, limit=4
  $region2: #{mplc_cnn_forward.1} parent=0 // loop_pre_header
    _
  $region3: #{mplc_cnn_forward.1} parent=0 // loop_header
    %s14 = sphi 0, %s18
    %p15 = scmp.ge.s32.totalorder %s14, 4
    %s24 = sphi 0, %s26
    %s27 = sphi 0, %s24
    %s28 = sphi 0, %s27
    %s44 = sphi 0, %s28
    %s48 = sphi 0, %s48
    %s50 = sphi 0, %s48
    %s51 = sphi 0, %s50
    %s65 = sphi 0, %s51
    %s69 = sphi 0, %s69
    %s71 = sphi 0, %s69
    %s72 = sphi 0, %s71
    %s86 = sphi 0, %s72
    %s90 = sphi 0, %s90
    %s92 = sphi 0, %s90
    %s93 = sphi 0, %s92
    %s107 = sphi 0, %s93
    %s111 = sphi 0, %s111
    %s113 = sphi 0, %s111
    %s114 = sphi 0, %s113
    %s128 = sphi 0, %s114
    %s132 = sphi 0, %s132
    %s134 = sphi 0, %s132
    %s135 = sphi 0, %s134
    %s149 = sphi 0, %s135
    %s155 = sphi 0, %s157
    %s158 = sphi 0, %s155
    %s159 = sphi 0, %s158
    %s175 = sphi 0, %s159
    %s181 = sphi 0, %s183
    %s184 = sphi 0, %s181
    %s185 = sphi 0, %s184
    %s201 = sphi 0, %s185
  $region4: #{mplc_cnn_forward.1} parent=0 // loop_header_branch
    %17 = sbr.rel (%p15) target = $region8
  $region5: #{mplc_cnn_forward.1} parent=0 // loop_body
    %s19 = ssub.s32 %s14, 1
    %s20 = ssub.s32 %s14, 2
    %s21 = sadd.s32 %s14, 1
    %s22 = ssub.s32 %s14, %s21
    %p23 = scmp.eq.s32.totalorder %s22, 0
    %s25 = sadd.s32 %s24, 1
    %s26 = scalar_select %p23, %s24, %s25
    %p29 = pneg %p23
    %p30 = scmp.eq.s32.totalorder %s14, 1
    %p31 = por %p29, %p30
    %p32 = scmp.ne.s32.totalorder %s24, %s27
    %p33 = scmp.eq.s32.totalorder %s14, 0
    %p34 = por %p32, %p33
    %p35 = scmp.ne.s32.totalorder %s24, %s27
    %p36 = scmp.eq.s32.totalorder %s19, 1
    %p37 = por %p35, %p36
    %p38 = scmp.ne.s32.totalorder %s27, %s28
    %p39 = scmp.eq.s32.totalorder %s19, 0
    %p40 = por %p38, %p39
    %p41 = scmp.ne.s32.totalorder %s27, %s28
    %p42 = scmp.eq.s32.totalorder %s20, 1
    %p43 = por %p41, %p42
    %p45 = scmp.ne.s32.totalorder %s28, %s44
    %p46 = scmp.eq.s32.totalorder %s20, 0
    %p47 = por %p45, %p46
    %s49 = sadd.s32 %s48, 1
    %p52 = scmp.eq.s32.totalorder %s14, 1
    %p53 = scmp.ne.s32.totalorder %s48, %s50
    %p54 = scmp.eq.s32.totalorder %s14, 0
    %p55 = por %p53, %p54
    %p56 = scmp.ne.s32.totalorder %s48, %s50
    %p57 = scmp.eq.s32.totalorder %s19, 1
    %p58 = por %p56, %p57
    %p59 = scmp.ne.s32.totalorder %s50, %s51
    %p60 = scmp.eq.s32.totalorder %s19, 0
    %p61 = por %p59, %p60
    %p62 = scmp.ne.s32.totalorder %s50, %s51
    %p63 = scmp.eq.s32.totalorder %s20, 1
    %p64 = por %p62, %p63
    %p66 = scmp.ne.s32.totalorder %s51, %s65
    %p67 = scmp.eq.s32.totalorder %s20, 0
    %p68 = por %p66, %p67
    %s70 = sadd.s32 %s69, 1
    %p73 = scmp.eq.s32.totalorder %s14, 1
    %p74 = scmp.ne.s32.totalorder %s69, %s71
    %p75 = scmp.eq.s32.totalorder %s14, 0
    %p76 = por %p74, %p75
    %p77 = scmp.ne.s32.totalorder %s69, %s71
    %p78 = scmp.eq.s32.totalorder %s19, 1
    %p79 = por %p77, %p78
    %p80 = scmp.ne.s32.totalorder %s71, %s72
    %p81 = scmp.eq.s32.totalorder %s19, 0
    %p82 = por %p80, %p81
    %p83 = scmp.ne.s32.totalorder %s71, %s72
    %p84 = scmp.eq.s32.totalorder %s20, 1
    %p85 = por %p83, %p84
    %p87 = scmp.ne.s32.totalorder %s72, %s86
    %p88 = scmp.eq.s32.totalorder %s20, 0
    %p89 = por %p87, %p88
    %s91 = sadd.s32 %s90, 1
    %p94 = scmp.eq.s32.totalorder %s14, 1
    %p95 = scmp.ne.s32.totalorder %s90, %s92
    %p96 = scmp.eq.s32.totalorder %s14, 0
    %p97 = por %p95, %p96
    %p98 = scmp.ne.s32.totalorder %s90, %s92
    %p99 = scmp.eq.s32.totalorder %s19, 1
    %p100 = por %p98, %p99
    %p101 = scmp.ne.s32.totalorder %s92, %s93
    %p102 = scmp.eq.s32.totalorder %s19, 0
    %p103 = por %p101, %p102
    %p104 = scmp.ne.s32.totalorder %s92, %s93
    %p105 = scmp.eq.s32.totalorder %s20, 1
    %p106 = por %p104, %p105
    %p108 = scmp.ne.s32.totalorder %s93, %s107
    %p109 = scmp.eq.s32.totalorder %s20, 0
    %p110 = por %p108, %p109
    %s112 = sadd.s32 %s111, 1
    %p115 = scmp.eq.s32.totalorder %s14, 1
    %p116 = scmp.ne.s32.totalorder %s111, %s113
    %p117 = scmp.eq.s32.totalorder %s14, 0
    %p118 = por %p116, %p117
    %p119 = scmp.ne.s32.totalorder %s111, %s113
    %p120 = scmp.eq.s32.totalorder %s19, 1
    %p121 = por %p119, %p120
    %p122 = scmp.ne.s32.totalorder %s113, %s114
    %p123 = scmp.eq.s32.totalorder %s19, 0
    %p124 = por %p122, %p123
    %p125 = scmp.ne.s32.totalorder %s113, %s114
    %p126 = scmp.eq.s32.totalorder %s20, 1
    %p127 = por %p125, %p126
    %p129 = scmp.ne.s32.totalorder %s114, %s128
    %p130 = scmp.eq.s32.totalorder %s20, 0
    %p131 = por %p129, %p130
    %s133 = sadd.s32 %s132, 1
    %p136 = scmp.eq.s32.totalorder %s14, 1
    %p137 = scmp.ne.s32.totalorder %s132, %s134
    %p138 = scmp.eq.s32.totalorder %s14, 0
    %p139 = por %p137, %p138
    %p140 = scmp.ne.s32.totalorder %s132, %s134
    %p141 = scmp.eq.s32.totalorder %s19, 1
    %p142 = por %p140, %p141
    %p143 = scmp.ne.s32.totalorder %s134, %s135
    %p144 = scmp.eq.s32.totalorder %s19, 0
    %p145 = por %p143, %p144
    %p146 = scmp.ne.s32.totalorder %s134, %s135
    %p147 = scmp.eq.s32.totalorder %s20, 1
    %p148 = por %p146, %p147
    %p150 = scmp.ne.s32.totalorder %s135, %s149
    %p151 = scmp.eq.s32.totalorder %s20, 0
    %p152 = por %p150, %p151
    %s153 = ssub.s32 %s14, %s21
    %p154 = scmp.eq.s32.totalorder %s153, 0
    %s156 = sadd.s32 %s155, 1
    %s157 = scalar_select %p154, %s155, %s156
    %p160 = pneg %p154
    %p161 = scmp.eq.s32.totalorder %s14, 1
    %p162 = por %p160, %p161
    %p163 = scmp.ne.s32.totalorder %s155, %s158
    %p164 = scmp.eq.s32.totalorder %s14, 0
    %p165 = por %p163, %p164
    %p166 = scmp.ne.s32.totalorder %s155, %s158
    %p167 = scmp.eq.s32.totalorder %s19, 1
    %p168 = por %p166, %p167
    %p169 = scmp.ne.s32.totalorder %s158, %s159
    %p170 = scmp.eq.s32.totalorder %s19, 0
    %p171 = por %p169, %p170
    %p172 = scmp.ne.s32.totalorder %s158, %s159
    %p173 = scmp.eq.s32.totalorder %s20, 1
    %p174 = por %p172, %p173
    %p176 = scmp.ne.s32.totalorder %s159, %s175
    %p177 = scmp.eq.s32.totalorder %s20, 0
    %p178 = por %p176, %p177
    %s179 = ssub.s32 %s14, %s21
    %p180 = scmp.eq.s32.totalorder %s179, 0
    %s182 = sadd.s32 %s181, 1
    %s183 = scalar_select %p180, %s181, %s182
    %p186 = pneg %p180
    %p187 = scmp.eq.s32.totalorder %s14, 1
    %p188 = por %p186, %p187
    %p189 = scmp.ne.s32.totalorder %s181, %s184
    %p190 = scmp.eq.s32.totalorder %s14, 0
    %p191 = por %p189, %p190
    %p192 = scmp.ne.s32.totalorder %s181, %s184
    %p193 = scmp.eq.s32.totalorder %s19, 1
    %p194 = por %p192, %p193
    %p195 = scmp.ne.s32.totalorder %s184, %s185
    %p196 = scmp.eq.s32.totalorder %s19, 0
    %p197 = por %p195, %p196
    %p198 = scmp.ne.s32.totalorder %s184, %s185
    %p199 = scmp.eq.s32.totalorder %s20, 1
    %p200 = por %p198, %p199
    %p202 = scmp.ne.s32.totalorder %s185, %s201
    %p203 = scmp.eq.s32.totalorder %s20, 0
    %p204 = por %p202, %p203
    %p205 = scmp.le.s32.totalorder 1, %s14
    %p206 = scmp.lt.s32.totalorder %s14, 3
    %p207 = pnand %p205, %p206
    %p208 = pneg %p207
    // Predicated region
    $region9: #{mplc_cnn_forward.1} parent=5 // pred_check
      _
    $region10: #{mplc_cnn_forward.1} parent=5 // pred_check_branch
      %210 = sbr.rel (%p207) target = $region12
    $region11: #{mplc_cnn_forward.1} parent=5 // pred_region
      %s211 = ssub.s32 %s14, 1
      // Predicated region
      $region13: #{mplc_cnn_forward.1} parent=11 // pred_check
        %p212 = pneg %p61
      $region14: #{mplc_cnn_forward.1} parent=11 // pred_check_branch
        %214 = sbr.rel (%p212) target = $region16
      $region15: #{mplc_cnn_forward.1} parent=11 // pred_region
        _
      $region16: #{mplc_cnn_forward.1} parent=11 // pred_fallthru
        _
      // Predicated region
      $region17: #{mplc_cnn_forward.1} parent=11 // pred_check
        %p215 = pneg %p82
      $region18: #{mplc_cnn_forward.1} parent=11 // pred_check_branch
        %217 = sbr.rel (%p215) target = $region20
      $region19: #{mplc_cnn_forward.1} parent=11 // pred_region
        _
      $region20: #{mplc_cnn_forward.1} parent=11 // pred_fallthru
        _
      // Predicated region
      $region21: #{mplc_cnn_forward.1} parent=11 // pred_check
        %p218 = pneg %p103
      $region22: #{mplc_cnn_forward.1} parent=11 // pred_check_branch
        %220 = sbr.rel (%p218) target = $region24
      $region23: #{mplc_cnn_forward.1} parent=11 // pred_region
        _
      $region24: #{mplc_cnn_forward.1} parent=11 // pred_fallthru
        _
      // Predicated region
      $region25: #{mplc_cnn_forward.1} parent=11 // pred_check
        %p221 = pneg %p124
      $region26: #{mplc_cnn_forward.1} parent=11 // pred_check_branch
        %223 = sbr.rel (%p221) target = $region28
      $region27: #{mplc_cnn_forward.1} parent=11 // pred_region
        _
      $region28: #{mplc_cnn_forward.1} parent=11 // pred_fallthru
        _
      // Predicated region
      $region29: #{mplc_cnn_forward.1} parent=11 // pred_check
        %p224 = pneg %p145
      $region30: #{mplc_cnn_forward.1} parent=11 // pred_check_branch
        %226 = sbr.rel (%p224) target = $region32
      $region31: #{mplc_cnn_forward.1} parent=11 // pred_region
        _
      $region32: #{mplc_cnn_forward.1} parent=11 // pred_fallthru
        _
    $region12: #{mplc_cnn_forward.1} parent=5 // pred_fallthru
      _
    %p227 = scmp.lt.s32.totalorder %s14, 2
    // Predicated region
    $region33: #{mplc_cnn_forward.1} parent=5 // pred_check
      %p228 = pneg %p227
    $region34: #{mplc_cnn_forward.1} parent=5 // pred_check_branch
      %230 = sbr.rel (%p228) target = $region36
    $region35: #{mplc_cnn_forward.1} parent=5 // pred_region
      // Predicated region
      $region37: #{mplc_cnn_forward.1} parent=35 // pred_check
        %p231 = pneg %p34
      $region38: #{mplc_cnn_forward.1} parent=35 // pred_check_branch
        %233 = sbr.rel (%p231) target = $region40
      $region39: #{mplc_cnn_forward.1} parent=35 // pred_region
        %p234 = scmp.lt.s32.totalorder %s14, 1
        %s235 = scalar_select %p234, %s14, 1
        %s236 = smul.addr %s235, 8
        %s237 = scalar_lea.vmem %s0, %s236
      $region40: #{mplc_cnn_forward.1} parent=35 // pred_fallthru
        _
    $region36: #{mplc_cnn_forward.1} parent=5 // pred_fallthru
      _
    %p238 = scmp.le.s32.totalorder 1, %s14
    %p239 = scmp.lt.s32.totalorder %s14, 3
    %p240 = pnand %p238, %p239
    %p241 = pneg %p240
    // Predicated region
    $region41: #{mplc_cnn_forward.1} parent=5 // pred_check
      _
    $region42: #{mplc_cnn_forward.1} parent=5 // pred_check_branch
      %243 = sbr.rel (%p240) target = $region44
    $region43: #{mplc_cnn_forward.1} parent=5 // pred_region
      %s244 = ssub.s32 %s14, 1
      %p245 = scmp.lt.s32.totalorder %s19, 1
      %s246 = scalar_select %p245, %s19, 1
      %s247 = smul.addr %s246, 8
      %s248 = scalar_lea.vmem %s0, %s247
      %p249 = pneg %p40
      %p250 = pneg %p37
      %p251 = pneg %p61
      %p252 = pneg %p58
      %p253 = pneg %p82
      %p254 = pneg %p79
      %p255 = pneg %p103
      %p256 = pneg %p100
      %p257 = pneg %p124
      %p258 = pneg %p121
      %p259 = pneg %p145
      %p260 = pneg %p142
      %p261 = pneg %p171
      %p262 = pneg %p168
      %p263 = scmp.lt.s32.totalorder %s19, 1
      %s264 = scalar_select %p263, %s19, 1
      %s265 = smul.addr %s264, 2
      %s266 = smul.addr %s265, 4
      %s267 = scalar_lea.vmem %s6, %s266
      %p268 = pneg %p197
      %p269 = pneg %p194
      %p270 = scmp.lt.s32.totalorder %s19, 1
      %s271 = scalar_select %p270, %s19, 1
      %s272 = smul.addr %s271, 4
      %s273 = scalar_lea.vmem %s7, %s272
      %p274 = scmp.lt.s32.totalorder %s19, 1
      %s275 = scalar_select %p274, %s19, 1
      %s276 = smul.addr %s275, 8
      %s277 = scalar_lea.vmem %s0, %s276
      %p278 = scmp.lt.s32.totalorder %s19, 1
      %s279 = scalar_select %p278, %s19, 1
      %s280 = smul.addr %s279, 2
      %s281 = smul.addr %s280, 4
      %s282 = scalar_lea.vmem %s6, %s281
      %p283 = scmp.lt.s32.totalorder %s19, 1
      %s284 = scalar_select %p283, %s19, 1
      %s285 = smul.addr %s284, 4
      %s286 = scalar_lea.vmem %s7, %s285
      %v287 = vld [vmem:[%s277] sm:$0x3f]
      %v288 = vld [vmem:[%s1] sm:$0xf]
      %s289 = scalar_lea.vmem %s1, 4
      %v290 = vld [vmem:[%s289] sm:$0xf]
      %292 = vrot.lane.b32.xlu0 %v287, 127
      %v293 = vpop.permute.xlu0 %292
      %vm294 = vcmask 48128
      %v296 = vsel %vm294, %v290, 0
      %vm298 = vcmask 1045504
      %v299 = vsel %vm298, %v293, 0
      %301 = vmatpush.msra.mxu0 0.0
      %302 = vmatpush.msra.mxu0 0.0
      %303 = vmatpush.msra.mxu0 0.0
      %304 = vmatpush.msra.mxu0 0.0
      %305 = vmatpush.msra.mxu0 0.0
      %306 = vmatpush.msra.mxu0 0.0
      %307 = vmatpush.msra.mxu0 0.0
      %308 = vmatpush.msra.mxu0 0.0
      %309 = vmatpush.msra.mxu0 0.0
      %310 = vmatpush.msra.mxu0 0.0
      %311 = vmatpush.msra.mxu0 0.0
      %312 = vmatpush.msra.mxu0 0.0
      %313 = vmatpush.msra.mxu0 0.0
      %314 = vmatpush.msra.mxu0 0.0
      %315 = vmatpush.msra.mxu0 0.0
      %316 = vmatpush.msra.mxu0 %v299
      %317 = vmatmul.f32.gmra.mxu0 %v296
      %v318 = vpop.f32.mrf.mxu0
      %v319 = vadd.f32 0.0, %v318
      %320 = vdwg.mxu0
      %v322 = vsel %vm294, %v288, 0
      %v324 = vsel %vm298, %v287, 0
      %326 = vmatpush.msra.mxu0 0.0
      %327 = vmatpush.msra.mxu0 0.0
      %328 = vmatpush.msra.mxu0 0.0
      %329 = vmatpush.msra.mxu0 0.0
      %330 = vmatpush.msra.mxu0 0.0
      %331 = vmatpush.msra.mxu0 0.0
      %332 = vmatpush.msra.mxu0 0.0
      %333 = vmatpush.msra.mxu0 0.0
      %334 = vmatpush.msra.mxu0 0.0
      %335 = vmatpush.msra.mxu0 0.0
      %336 = vmatpush.msra.mxu0 0.0
      %337 = vmatpush.msra.mxu0 0.0
      %338 = vmatpush.msra.mxu0 0.0
      %339 = vmatpush.msra.mxu0 0.0
      %340 = vmatpush.msra.mxu0 0.0
      %341 = vmatpush.msra.mxu0 %v324
      %342 = vmatmul.f32.gmra.mxu0 %v322
      %v343 = vpop.f32.mrf.mxu0
      %v344 = vadd.f32 %v319, %v343
      %345 = vdwg.mxu0
      %s346 = scalar_lea.vmem %s1, 8
      %v347 = vld [vmem:[%s346] sm:$0xf]
      %348 = vrot.lane.b32.xlu0 %v287, 126
      %v349 = vpop.permute.xlu0 %348
      %v351 = vsel %vm294, %v347, 0
      %v353 = vsel %vm298, %v349, 0
      %355 = vmatpush.msra.mxu0 0.0
      %356 = vmatpush.msra.mxu0 0.0
      %357 = vmatpush.msra.mxu0 0.0
      %358 = vmatpush.msra.mxu0 0.0
      %359 = vmatpush.msra.mxu0 0.0
      %360 = vmatpush.msra.mxu0 0.0
      %361 = vmatpush.msra.mxu0 0.0
      %362 = vmatpush.msra.mxu0 0.0
      %363 = vmatpush.msra.mxu0 0.0
      %364 = vmatpush.msra.mxu0 0.0
      %365 = vmatpush.msra.mxu0 0.0
      %366 = vmatpush.msra.mxu0 0.0
      %367 = vmatpush.msra.mxu0 0.0
      %368 = vmatpush.msra.mxu0 0.0
      %369 = vmatpush.msra.mxu0 0.0
      %370 = vmatpush.msra.mxu0 %v353
      %371 = vmatmul.f32.gmra.mxu0 %v351
      %v372 = vpop.f32.mrf.mxu0
      %v373 = vadd.f32 0.0, %v372
      %374 = vdwg.mxu0
      %v375 = vadd.f32 %v344, %v373
      %s376 = scalar_lea.vmem %s1, 12
      %v377 = vld [vmem:[%s376] sm:$0xf]
      %378 = vrot.lane.b32.xlu0 %v287, 125
      %v379 = vpop.permute.xlu0 %378
      %v381 = vsel %vm294, %v377, 0
      %v383 = vsel %vm298, %v379, 0
      %385 = vmatpush.msra.mxu0 0.0
      %386 = vmatpush.msra.mxu0 0.0
      %387 = vmatpush.msra.mxu0 0.0
      %388 = vmatpush.msra.mxu0 0.0
      %389 = vmatpush.msra.mxu0 0.0
      %390 = vmatpush.msra.mxu0 0.0
      %391 = vmatpush.msra.mxu0 0.0
      %392 = vmatpush.msra.mxu0 0.0
      %393 = vmatpush.msra.mxu0 0.0
      %394 = vmatpush.msra.mxu0 0.0
      %395 = vmatpush.msra.mxu0 0.0
      %396 = vmatpush.msra.mxu0 0.0
      %397 = vmatpush.msra.mxu0 0.0
      %398 = vmatpush.msra.mxu0 0.0
      %399 = vmatpush.msra.mxu0 0.0
      %400 = vmatpush.msra.mxu0 %v383
      %401 = vmatmul.f32.gmra.mxu0 %v381
      %v402 = vpop.f32.mrf.mxu0
      %v403 = vadd.f32 0.0, %v402
      %404 = vdwg.mxu0
      %v405 = vadd.f32 %v375, %v403
      %s406 = scalar_lea.vmem %s1, 16
      %v407 = vld [vmem:[%s406] sm:$0xf]
      %408 = vrot.lane.b32.xlu0 %v287, 124
      %v409 = vpop.permute.xlu0 %408
      %v411 = vsel %vm294, %v407, 0
      %v413 = vsel %vm298, %v409, 0
      %415 = vmatpush.msra.mxu0 0.0
      %416 = vmatpush.msra.mxu0 0.0
      %417 = vmatpush.msra.mxu0 0.0
      %418 = vmatpush.msra.mxu0 0.0
      %419 = vmatpush.msra.mxu0 0.0
      %420 = vmatpush.msra.mxu0 0.0
      %421 = vmatpush.msra.mxu0 0.0
      %422 = vmatpush.msra.mxu0 0.0
      %423 = vmatpush.msra.mxu0 0.0
      %424 = vmatpush.msra.mxu0 0.0
      %425 = vmatpush.msra.mxu0 0.0
      %426 = vmatpush.msra.mxu0 0.0
      %427 = vmatpush.msra.mxu0 0.0
      %428 = vmatpush.msra.mxu0 0.0
      %429 = vmatpush.msra.mxu0 0.0
      %430 = vmatpush.msra.mxu0 %v413
      %431 = vmatmul.f32.gmra.mxu0 %v411
      %v432 = vpop.f32.mrf.mxu0
      %v433 = vadd.f32 0.0, %v432
      %434 = vdwg.mxu0
      %v435 = vadd.f32 %v405, %v433
      %s436 = scalar_lea.vmem %s1, 20
      %v437 = vld [vmem:[%s436] sm:$0xf]
      %438 = vrot.lane.b32.xlu0 %v287, 123
      %v439 = vpop.permute.xlu0 %438
      %v441 = vsel %vm294, %v437, 0
      %v443 = vsel %vm298, %v439, 0
      %445 = vmatpush.msra.mxu0 0.0
      %446 = vmatpush.msra.mxu0 0.0
      %447 = vmatpush.msra.mxu0 0.0
      %448 = vmatpush.msra.mxu0 0.0
      %449 = vmatpush.msra.mxu0 0.0
      %450 = vmatpush.msra.mxu0 0.0
      %451 = vmatpush.msra.mxu0 0.0
      %452 = vmatpush.msra.mxu0 0.0
      %453 = vmatpush.msra.mxu0 0.0
      %454 = vmatpush.msra.mxu0 0.0
      %455 = vmatpush.msra.mxu0 0.0
      %456 = vmatpush.msra.mxu0 0.0
      %457 = vmatpush.msra.mxu0 0.0
      %458 = vmatpush.msra.mxu0 0.0
      %459 = vmatpush.msra.mxu0 0.0
      %460 = vmatpush.msra.mxu0 %v443
      %461 = vmatmul.f32.gmra.mxu0 %v441
      %v462 = vpop.f32.mrf.mxu0
      %v463 = vadd.f32 0.0, %v462
      %464 = vdwg.mxu0
      %v465 = vadd.f32 %v435, %v463
      %s466 = scalar_lea.vmem %s1, 24
      %v467 = vld [vmem:[%s466] sm:$0xf]
      %468 = vrot.lane.b32.xlu0 %v287, 122
      %v469 = vpop.permute.xlu0 %468
      %v471 = vsel %vm294, %v467, 0
      %v473 = vsel %vm298, %v469, 0
      %475 = vmatpush.msra.mxu0 0.0
      %476 = vmatpush.msra.mxu0 0.0
      %477 = vmatpush.msra.mxu0 0.0
      %478 = vmatpush.msra.mxu0 0.0
      %479 = vmatpush.msra.mxu0 0.0
      %480 = vmatpush.msra.mxu0 0.0
      %481 = vmatpush.msra.mxu0 0.0
      %482 = vmatpush.msra.mxu0 0.0
      %483 = vmatpush.msra.mxu0 0.0
      %484 = vmatpush.msra.mxu0 0.0
      %485 = vmatpush.msra.mxu0 0.0
      %486 = vmatpush.msra.mxu0 0.0
      %487 = vmatpush.msra.mxu0 0.0
      %488 = vmatpush.msra.mxu0 0.0
      %489 = vmatpush.msra.mxu0 0.0
      %490 = vmatpush.msra.mxu0 %v473
      %491 = vmatmul.f32.gmra.mxu0 %v471
      %v492 = vpop.f32.mrf.mxu0
      %v493 = vadd.f32 0.0, %v492
      %494 = vdwg.mxu0
      %v495 = vadd.f32 %v465, %v493
      %s496 = scalar_lea.vmem %s1, 28
      %v497 = vld [vmem:[%s496] sm:$0xf]
      %498 = vrot.lane.b32.xlu0 %v287, 121
      %v499 = vpop.permute.xlu0 %498
      %v501 = vsel %vm294, %v497, 0
      %v503 = vsel %vm298, %v499, 0
      %505 = vmatpush.msra.mxu0 0.0
      %506 = vmatpush.msra.mxu0 0.0
      %507 = vmatpush.msra.mxu0 0.0
      %508 = vmatpush.msra.mxu0 0.0
      %509 = vmatpush.msra.mxu0 0.0
      %510 = vmatpush.msra.mxu0 0.0
      %511 = vmatpush.msra.mxu0 0.0
      %512 = vmatpush.msra.mxu0 0.0
      %513 = vmatpush.msra.mxu0 0.0
      %514 = vmatpush.msra.mxu0 0.0
      %515 = vmatpush.msra.mxu0 0.0
      %516 = vmatpush.msra.mxu0 0.0
      %517 = vmatpush.msra.mxu0 0.0
      %518 = vmatpush.msra.mxu0 0.0
      %519 = vmatpush.msra.mxu0 0.0
      %520 = vmatpush.msra.mxu0 %v503
      %521 = vmatmul.f32.gmra.mxu0 %v501
      %v522 = vpop.f32.mrf.mxu0
      %v523 = vadd.f32 0.0, %v522
      %524 = vdwg.mxu0
      %v525 = vadd.f32 %v495, %v523
      %s526 = scalar_lea.vmem %s1, 32
      %v527 = vld [vmem:[%s526] sm:$0xf]
      %528 = vrot.lane.b32.xlu0 %v287, 120
      %v529 = vpop.permute.xlu0 %528
      %v531 = vsel %vm294, %v527, 0
      %v533 = vsel %vm298, %v529, 0
      %535 = vmatpush.msra.mxu0 0.0
      %536 = vmatpush.msra.mxu0 0.0
      %537 = vmatpush.msra.mxu0 0.0
      %538 = vmatpush.msra.mxu0 0.0
      %539 = vmatpush.msra.mxu0 0.0
      %540 = vmatpush.msra.mxu0 0.0
      %541 = vmatpush.msra.mxu0 0.0
      %542 = vmatpush.msra.mxu0 0.0
      %543 = vmatpush.msra.mxu0 0.0
      %544 = vmatpush.msra.mxu0 0.0
      %545 = vmatpush.msra.mxu0 0.0
      %546 = vmatpush.msra.mxu0 0.0
      %547 = vmatpush.msra.mxu0 0.0
      %548 = vmatpush.msra.mxu0 0.0
      %549 = vmatpush.msra.mxu0 0.0
      %550 = vmatpush.msra.mxu0 %v533
      %551 = vmatmul.f32.gmra.mxu0 %v531
      %v552 = vpop.f32.mrf.mxu0
      %v553 = vadd.f32 0.0, %v552
      %554 = vdwg.mxu0
      %v555 = vadd.f32 %v525, %v553
      %s556 = scalar_lea.vmem %s1, 36
      %v557 = vld [vmem:[%s556] sm:$0xf]
      %558 = vrot.lane.b32.xlu0 %v287, 119
      %v559 = vpop.permute.xlu0 %558
      %v561 = vsel %vm294, %v557, 0
      %v563 = vsel %vm298, %v559, 0
      %565 = vmatpush.msra.mxu0 0.0
      %566 = vmatpush.msra.mxu0 0.0
      %567 = vmatpush.msra.mxu0 0.0
      %568 = vmatpush.msra.mxu0 0.0
      %569 = vmatpush.msra.mxu0 0.0
      %570 = vmatpush.msra.mxu0 0.0
      %571 = vmatpush.msra.mxu0 0.0
      %572 = vmatpush.msra.mxu0 0.0
      %573 = vmatpush.msra.mxu0 0.0
      %574 = vmatpush.msra.mxu0 0.0
      %575 = vmatpush.msra.mxu0 0.0
      %576 = vmatpush.msra.mxu0 0.0
      %577 = vmatpush.msra.mxu0 0.0
      %578 = vmatpush.msra.mxu0 0.0
      %579 = vmatpush.msra.mxu0 0.0
      %580 = vmatpush.msra.mxu0 %v563
      %581 = vmatmul.f32.gmra.mxu0 %v561
      %v582 = vpop.f32.mrf.mxu0
      %v583 = vadd.f32 0.0, %v582
      %584 = vdwg.mxu0
      %v585 = vadd.f32 %v555, %v583
      %s586 = scalar_lea.vmem %s1, 40
      %v587 = vld [vmem:[%s586] sm:$0xf]
      %588 = vrot.lane.b32.xlu0 %v287, 118
      %v589 = vpop.permute.xlu0 %588
      %v591 = vsel %vm294, %v587, 0
      %v593 = vsel %vm298, %v589, 0
      %595 = vmatpush.msra.mxu0 0.0
      %596 = vmatpush.msra.mxu0 0.0
      %597 = vmatpush.msra.mxu0 0.0
      %598 = vmatpush.msra.mxu0 0.0
      %599 = vmatpush.msra.mxu0 0.0
      %600 = vmatpush.msra.mxu0 0.0
      %601 = vmatpush.msra.mxu0 0.0
      %602 = vmatpush.msra.mxu0 0.0
      %603 = vmatpush.msra.mxu0 0.0
      %604 = vmatpush.msra.mxu0 0.0
      %605 = vmatpush.msra.mxu0 0.0
      %606 = vmatpush.msra.mxu0 0.0
      %607 = vmatpush.msra.mxu0 0.0
      %608 = vmatpush.msra.mxu0 0.0
      %609 = vmatpush.msra.mxu0 0.0
      %610 = vmatpush.msra.mxu0 %v593
      %611 = vmatmul.f32.gmra.mxu0 %v591
      %v612 = vpop.f32.mrf.mxu0
      %v613 = vadd.f32 0.0, %v612
      %614 = vdwg.mxu0
      %v615 = vadd.f32 %v585, %v613
      %s616 = scalar_lea.vmem %s1, 44
      %v617 = vld [vmem:[%s616] sm:$0xf]
      %618 = vrot.lane.b32.xlu0 %v287, 117
      %v619 = vpop.permute.xlu0 %618
      %v621 = vsel %vm294, %v617, 0
      %v623 = vsel %vm298, %v619, 0
      %625 = vmatpush.msra.mxu0 0.0
      %626 = vmatpush.msra.mxu0 0.0
      %627 = vmatpush.msra.mxu0 0.0
      %628 = vmatpush.msra.mxu0 0.0
      %629 = vmatpush.msra.mxu0 0.0
      %630 = vmatpush.msra.mxu0 0.0
      %631 = vmatpush.msra.mxu0 0.0
      %632 = vmatpush.msra.mxu0 0.0
      %633 = vmatpush.msra.mxu0 0.0
      %634 = vmatpush.msra.mxu0 0.0
      %635 = vmatpush.msra.mxu0 0.0
      %636 = vmatpush.msra.mxu0 0.0
      %637 = vmatpush.msra.mxu0 0.0
      %638 = vmatpush.msra.mxu0 0.0
      %639 = vmatpush.msra.mxu0 0.0
      %640 = vmatpush.msra.mxu0 %v623
      %641 = vmatmul.f32.gmra.mxu0 %v621
      %v642 = vpop.f32.mrf.mxu0
      %v643 = vadd.f32 0.0, %v642
      %644 = vdwg.mxu0
      %v645 = vadd.f32 %v615, %v643
      %s646 = scalar_lea.vmem %s1, 48
      %v647 = vld [vmem:[%s646] sm:$0xf]
      %648 = vrot.lane.b32.xlu0 %v287, 116
      %v649 = vpop.permute.xlu0 %648
      %v651 = vsel %vm294, %v647, 0
      %v653 = vsel %vm298, %v649, 0
      %655 = vmatpush.msra.mxu0 0.0
      %656 = vmatpush.msra.mxu0 0.0
      %657 = vmatpush.msra.mxu0 0.0
      %658 = vmatpush.msra.mxu0 0.0
      %659 = vmatpush.msra.mxu0 0.0
      %660 = vmatpush.msra.mxu0 0.0
      %661 = vmatpush.msra.mxu0 0.0
      %662 = vmatpush.msra.mxu0 0.0
      %663 = vmatpush.msra.mxu0 0.0
      %664 = vmatpush.msra.mxu0 0.0
      %665 = vmatpush.msra.mxu0 0.0
      %666 = vmatpush.msra.mxu0 0.0
      %667 = vmatpush.msra.mxu0 0.0
      %668 = vmatpush.msra.mxu0 0.0
      %669 = vmatpush.msra.mxu0 0.0
      %670 = vmatpush.msra.mxu0 %v653
      %671 = vmatmul.f32.gmra.mxu0 %v651
      %v672 = vpop.f32.mrf.mxu0
      %v673 = vadd.f32 0.0, %v672
      %674 = vdwg.mxu0
      %v675 = vadd.f32 %v645, %v673
      %s676 = scalar_lea.vmem %s1, 52
      %v677 = vld [vmem:[%s676] sm:$0xf]
      %678 = vrot.lane.b32.xlu0 %v287, 115
      %v679 = vpop.permute.xlu0 %678
      %v681 = vsel %vm294, %v677, 0
      %v683 = vsel %vm298, %v679, 0
      %685 = vmatpush.msra.mxu0 0.0
      %686 = vmatpush.msra.mxu0 0.0
      %687 = vmatpush.msra.mxu0 0.0
      %688 = vmatpush.msra.mxu0 0.0
      %689 = vmatpush.msra.mxu0 0.0
      %690 = vmatpush.msra.mxu0 0.0
      %691 = vmatpush.msra.mxu0 0.0
      %692 = vmatpush.msra.mxu0 0.0
      %693 = vmatpush.msra.mxu0 0.0
      %694 = vmatpush.msra.mxu0 0.0
      %695 = vmatpush.msra.mxu0 0.0
      %696 = vmatpush.msra.mxu0 0.0
      %697 = vmatpush.msra.mxu0 0.0
      %698 = vmatpush.msra.mxu0 0.0
      %699 = vmatpush.msra.mxu0 0.0
      %700 = vmatpush.msra.mxu0 %v683
      %701 = vmatmul.f32.gmra.mxu0 %v681
      %v702 = vpop.f32.mrf.mxu0
      %v703 = vadd.f32 0.0, %v702
      %704 = vdwg.mxu0
      %v705 = vadd.f32 %v675, %v703
      %s706 = scalar_lea.vmem %s1, 56
      %v707 = vld [vmem:[%s706] sm:$0xf]
      %708 = vrot.lane.b32.xlu0 %v287, 114
      %v709 = vpop.permute.xlu0 %708
      %v711 = vsel %vm294, %v707, 0
      %v713 = vsel %vm298, %v709, 0
      %715 = vmatpush.msra.mxu0 0.0
      %716 = vmatpush.msra.mxu0 0.0
      %717 = vmatpush.msra.mxu0 0.0
      %718 = vmatpush.msra.mxu0 0.0
      %719 = vmatpush.msra.mxu0 0.0
      %720 = vmatpush.msra.mxu0 0.0
      %721 = vmatpush.msra.mxu0 0.0
      %722 = vmatpush.msra.mxu0 0.0
      %723 = vmatpush.msra.mxu0 0.0
      %724 = vmatpush.msra.mxu0 0.0
      %725 = vmatpush.msra.mxu0 0.0
      %726 = vmatpush.msra.mxu0 0.0
      %727 = vmatpush.msra.mxu0 0.0
      %728 = vmatpush.msra.mxu0 0.0
      %729 = vmatpush.msra.mxu0 0.0
      %730 = vmatpush.msra.mxu0 %v713
      %731 = vmatmul.f32.gmra.mxu0 %v711
      %v732 = vpop.f32.mrf.mxu0
      %v733 = vadd.f32 0.0, %v732
      %734 = vdwg.mxu0
      %v735 = vadd.f32 %v705, %v733
      %s736 = scalar_lea.vmem %s1, 60
      %v737 = vld [vmem:[%s736] sm:$0xf]
      %738 = vrot.lane.b32.xlu0 %v287, 113
      %v739 = vpop.permute.xlu0 %738
      %v741 = vsel %vm294, %v737, 0
      %v743 = vsel %vm298, %v739, 0
      %745 = vmatpush.msra.mxu0 0.0
      %746 = vmatpush.msra.mxu0 0.0
      %747 = vmatpush.msra.mxu0 0.0
      %748 = vmatpush.msra.mxu0 0.0
      %749 = vmatpush.msra.mxu0 0.0
      %750 = vmatpush.msra.mxu0 0.0
      %751 = vmatpush.msra.mxu0 0.0
      %752 = vmatpush.msra.mxu0 0.0
      %753 = vmatpush.msra.mxu0 0.0
      %754 = vmatpush.msra.mxu0 0.0
      %755 = vmatpush.msra.mxu0 0.0
      %756 = vmatpush.msra.mxu0 0.0
      %757 = vmatpush.msra.mxu0 0.0
      %758 = vmatpush.msra.mxu0 0.0
      %759 = vmatpush.msra.mxu0 0.0
      %760 = vmatpush.msra.mxu0 %v743
      %761 = vmatmul.f32.gmra.mxu0 %v741
      %v762 = vpop.f32.mrf.mxu0
      %v763 = vadd.f32 0.0, %v762
      %764 = vdwg.mxu0
      %v765 = vadd.f32 %v735, %v763
      %s766 = scalar_lea.vmem %s1, 64
      %v767 = vld [vmem:[%s766] sm:$0xf]
      %768 = vrot.lane.b32.xlu0 %v287, 112
      %v769 = vpop.permute.xlu0 %768
      %v771 = vsel %vm294, %v767, 0
      %v773 = vsel %vm298, %v769, 0
      %775 = vmatpush.msra.mxu0 0.0
      %776 = vmatpush.msra.mxu0 0.0
      %777 = vmatpush.msra.mxu0 0.0
      %778 = vmatpush.msra.mxu0 0.0
      %779 = vmatpush.msra.mxu0 0.0
      %780 = vmatpush.msra.mxu0 0.0
      %781 = vmatpush.msra.mxu0 0.0
      %782 = vmatpush.msra.mxu0 0.0
      %783 = vmatpush.msra.mxu0 0.0
      %784 = vmatpush.msra.mxu0 0.0
      %785 = vmatpush.msra.mxu0 0.0
      %786 = vmatpush.msra.mxu0 0.0
      %787 = vmatpush.msra.mxu0 0.0
      %788 = vmatpush.msra.mxu0 0.0
      %789 = vmatpush.msra.mxu0 0.0
      %790 = vmatpush.msra.mxu0 %v773
      %791 = vmatmul.f32.gmra.mxu0 %v771
      %v792 = vpop.f32.mrf.mxu0
      %v793 = vadd.f32 0.0, %v792
      %794 = vdwg.mxu0
      %v795 = vadd.f32 %v765, %v793
      %s796 = scalar_lea.vmem %s1, 68
      %v797 = vld [vmem:[%s796] sm:$0xf]
      %798 = vrot.lane.b32.xlu0 %v287, 111
      %v799 = vpop.permute.xlu0 %798
      %v801 = vsel %vm294, %v797, 0
      %v803 = vsel %vm298, %v799, 0
      %805 = vmatpush.msra.mxu0 0.0
      %806 = vmatpush.msra.mxu0 0.0
      %807 = vmatpush.msra.mxu0 0.0
      %808 = vmatpush.msra.mxu0 0.0
      %809 = vmatpush.msra.mxu0 0.0
      %810 = vmatpush.msra.mxu0 0.0
      %811 = vmatpush.msra.mxu0 0.0
      %812 = vmatpush.msra.mxu0 0.0
      %813 = vmatpush.msra.mxu0 0.0
      %814 = vmatpush.msra.mxu0 0.0
      %815 = vmatpush.msra.mxu0 0.0
      %816 = vmatpush.msra.mxu0 0.0
      %817 = vmatpush.msra.mxu0 0.0
      %818 = vmatpush.msra.mxu0 0.0
      %819 = vmatpush.msra.mxu0 0.0
      %820 = vmatpush.msra.mxu0 %v803
      %821 = vmatmul.f32.gmra.mxu0 %v801
      %v822 = vpop.f32.mrf.mxu0
      %v823 = vadd.f32 0.0, %v822
      %824 = vdwg.mxu0
      %v825 = vadd.f32 %v795, %v823
      %s826 = scalar_lea.vmem %s1, 72
      %v827 = vld [vmem:[%s826] sm:$0xf]
      %828 = vrot.lane.b32.xlu0 %v287, 110
      %v829 = vpop.permute.xlu0 %828
      %v831 = vsel %vm294, %v827, 0
      %v833 = vsel %vm298, %v829, 0
      %835 = vmatpush.msra.mxu0 0.0
      %836 = vmatpush.msra.mxu0 0.0
      %837 = vmatpush.msra.mxu0 0.0
      %838 = vmatpush.msra.mxu0 0.0
      %839 = vmatpush.msra.mxu0 0.0
      %840 = vmatpush.msra.mxu0 0.0
      %841 = vmatpush.msra.mxu0 0.0
      %842 = vmatpush.msra.mxu0 0.0
      %843 = vmatpush.msra.mxu0 0.0
      %844 = vmatpush.msra.mxu0 0.0
      %845 = vmatpush.msra.mxu0 0.0
      %846 = vmatpush.msra.mxu0 0.0
      %847 = vmatpush.msra.mxu0 0.0
      %848 = vmatpush.msra.mxu0 0.0
      %849 = vmatpush.msra.mxu0 0.0
      %850 = vmatpush.msra.mxu0 %v833
      %851 = vmatmul.f32.gmra.mxu0 %v831
      %v852 = vpop.f32.mrf.mxu0
      %v853 = vadd.f32 0.0, %v852
      %854 = vdwg.mxu0
      %v855 = vadd.f32 %v825, %v853
      %s856 = scalar_lea.vmem %s1, 76
      %v857 = vld [vmem:[%s856] sm:$0xf]
      %858 = vrot.lane.b32.xlu0 %v287, 109
      %v859 = vpop.permute.xlu0 %858
      %v861 = vsel %vm294, %v857, 0
      %v863 = vsel %vm298, %v859, 0
      %865 = vmatpush.msra.mxu0 0.0
      %866 = vmatpush.msra.mxu0 0.0
      %867 = vmatpush.msra.mxu0 0.0
      %868 = vmatpush.msra.mxu0 0.0
      %869 = vmatpush.msra.mxu0 0.0
      %870 = vmatpush.msra.mxu0 0.0
      %871 = vmatpush.msra.mxu0 0.0
      %872 = vmatpush.msra.mxu0 0.0
      %873 = vmatpush.msra.mxu0 0.0
      %874 = vmatpush.msra.mxu0 0.0
      %875 = vmatpush.msra.mxu0 0.0
      %876 = vmatpush.msra.mxu0 0.0
      %877 = vmatpush.msra.mxu0 0.0
      %878 = vmatpush.msra.mxu0 0.0
      %879 = vmatpush.msra.mxu0 0.0
      %880 = vmatpush.msra.mxu0 %v863
      %881 = vmatmul.f32.gmra.mxu0 %v861
      %v882 = vpop.f32.mrf.mxu0
      %v883 = vadd.f32 0.0, %v882
      %884 = vdwg.mxu0
      %v885 = vadd.f32 %v855, %v883
      %s886 = scalar_lea.vmem %s1, 80
      %v887 = vld [vmem:[%s886] sm:$0xf]
      %888 = vrot.lane.b32.xlu0 %v287, 108
      %v889 = vpop.permute.xlu0 %888
      %v891 = vsel %vm294, %v887, 0
      %v893 = vsel %vm298, %v889, 0
      %895 = vmatpush.msra.mxu0 0.0
      %896 = vmatpush.msra.mxu0 0.0
      %897 = vmatpush.msra.mxu0 0.0
      %898 = vmatpush.msra.mxu0 0.0
      %899 = vmatpush.msra.mxu0 0.0
      %900 = vmatpush.msra.mxu0 0.0
      %901 = vmatpush.msra.mxu0 0.0
      %902 = vmatpush.msra.mxu0 0.0
      %903 = vmatpush.msra.mxu0 0.0
      %904 = vmatpush.msra.mxu0 0.0
      %905 = vmatpush.msra.mxu0 0.0
      %906 = vmatpush.msra.mxu0 0.0
      %907 = vmatpush.msra.mxu0 0.0
      %908 = vmatpush.msra.mxu0 0.0
      %909 = vmatpush.msra.mxu0 0.0
      %910 = vmatpush.msra.mxu0 %v893
      %911 = vmatmul.f32.gmra.mxu0 %v891
      %v912 = vpop.f32.mrf.mxu0
      %v913 = vadd.f32 0.0, %v912
      %914 = vdwg.mxu0
      %v915 = vadd.f32 %v885, %v913
      %s916 = scalar_lea.vmem %s1, 84
      %v917 = vld [vmem:[%s916] sm:$0xf]
      %918 = vrot.lane.b32.xlu0 %v287, 107
      %v919 = vpop.permute.xlu0 %918
      %v921 = vsel %vm294, %v917, 0
      %v923 = vsel %vm298, %v919, 0
      %925 = vmatpush.msra.mxu0 0.0
      %926 = vmatpush.msra.mxu0 0.0
      %927 = vmatpush.msra.mxu0 0.0
      %928 = vmatpush.msra.mxu0 0.0
      %929 = vmatpush.msra.mxu0 0.0
      %930 = vmatpush.msra.mxu0 0.0
      %931 = vmatpush.msra.mxu0 0.0
      %932 = vmatpush.msra.mxu0 0.0
      %933 = vmatpush.msra.mxu0 0.0
      %934 = vmatpush.msra.mxu0 0.0
      %935 = vmatpush.msra.mxu0 0.0
      %936 = vmatpush.msra.mxu0 0.0
      %937 = vmatpush.msra.mxu0 0.0
      %938 = vmatpush.msra.mxu0 0.0
      %939 = vmatpush.msra.mxu0 0.0
      %940 = vmatpush.msra.mxu0 %v923
      %941 = vmatmul.f32.gmra.mxu0 %v921
      %v942 = vpop.f32.mrf.mxu0
      %v943 = vadd.f32 0.0, %v942
      %944 = vdwg.mxu0
      %v945 = vadd.f32 %v915, %v943
      %s946 = scalar_lea.vmem %s1, 88
      %v947 = vld [vmem:[%s946] sm:$0xf]
      %948 = vrot.lane.b32.xlu0 %v287, 106
      %v949 = vpop.permute.xlu0 %948
      %v951 = vsel %vm294, %v947, 0
      %v953 = vsel %vm298, %v949, 0
      %955 = vmatpush.msra.mxu0 0.0
      %956 = vmatpush.msra.mxu0 0.0
      %957 = vmatpush.msra.mxu0 0.0
      %958 = vmatpush.msra.mxu0 0.0
      %959 = vmatpush.msra.mxu0 0.0
      %960 = vmatpush.msra.mxu0 0.0
      %961 = vmatpush.msra.mxu0 0.0
      %962 = vmatpush.msra.mxu0 0.0
      %963 = vmatpush.msra.mxu0 0.0
      %964 = vmatpush.msra.mxu0 0.0
      %965 = vmatpush.msra.mxu0 0.0
      %966 = vmatpush.msra.mxu0 0.0
      %967 = vmatpush.msra.mxu0 0.0
      %968 = vmatpush.msra.mxu0 0.0
      %969 = vmatpush.msra.mxu0 0.0
      %970 = vmatpush.msra.mxu0 %v953
      %971 = vmatmul.f32.gmra.mxu0 %v951
      %v972 = vpop.f32.mrf.mxu0
      %v973 = vadd.f32 0.0, %v972
      %974 = vdwg.mxu0
      %v975 = vadd.f32 %v945, %v973
      %s976 = scalar_lea.vmem %s1, 92
      %v977 = vld [vmem:[%s976] sm:$0xf]
      %978 = vrot.lane.b32.xlu0 %v287, 105
      %v979 = vpop.permute.xlu0 %978
      %v981 = vsel %vm294, %v977, 0
      %v983 = vsel %vm298, %v979, 0
      %985 = vmatpush.msra.mxu0 0.0
      %986 = vmatpush.msra.mxu0 0.0
      %987 = vmatpush.msra.mxu0 0.0
      %988 = vmatpush.msra.mxu0 0.0
      %989 = vmatpush.msra.mxu0 0.0
      %990 = vmatpush.msra.mxu0 0.0
      %991 = vmatpush.msra.mxu0 0.0
      %992 = vmatpush.msra.mxu0 0.0
      %993 = vmatpush.msra.mxu0 0.0
      %994 = vmatpush.msra.mxu0 0.0
      %995 = vmatpush.msra.mxu0 0.0
      %996 = vmatpush.msra.mxu0 0.0
      %997 = vmatpush.msra.mxu0 0.0
      %998 = vmatpush.msra.mxu0 0.0
      %999 = vmatpush.msra.mxu0 0.0
      %1000 = vmatpush.msra.mxu0 %v983
      %1001 = vmatmul.f32.gmra.mxu0 %v981
      %v1002 = vpop.f32.mrf.mxu0
      %v1003 = vadd.f32 0.0, %v1002
      %1004 = vdwg.mxu0
      %v1005 = vadd.f32 %v975, %v1003
      %s1006 = scalar_lea.vmem %s1, 96
      %v1007 = vld [vmem:[%s1006] sm:$0xf]
      %1008 = vrot.lane.b32.xlu0 %v287, 104
      %v1009 = vpop.permute.xlu0 %1008
      %v1011 = vsel %vm294, %v1007, 0
      %v1013 = vsel %vm298, %v1009, 0
      %1015 = vmatpush.msra.mxu0 0.0
      %1016 = vmatpush.msra.mxu0 0.0
      %1017 = vmatpush.msra.mxu0 0.0
      %1018 = vmatpush.msra.mxu0 0.0
      %1019 = vmatpush.msra.mxu0 0.0
      %1020 = vmatpush.msra.mxu0 0.0
      %1021 = vmatpush.msra.mxu0 0.0
      %1022 = vmatpush.msra.mxu0 0.0
      %1023 = vmatpush.msra.mxu0 0.0
      %1024 = vmatpush.msra.mxu0 0.0
      %1025 = vmatpush.msra.mxu0 0.0
      %1026 = vmatpush.msra.mxu0 0.0
      %1027 = vmatpush.msra.mxu0 0.0
      %1028 = vmatpush.msra.mxu0 0.0
      %1029 = vmatpush.msra.mxu0 0.0
      %1030 = vmatpush.msra.mxu0 %v1013
      %1031 = vmatmul.f32.gmra.mxu0 %v1011
      %v1032 = vpop.f32.mrf.mxu0
      %v1033 = vadd.f32 0.0, %v1032
      %1034 = vdwg.mxu0
      %v1035 = vadd.f32 %v1005, %v1033
      %s1036 = scalar_lea.vmem %s1, 100
      %v1037 = vld [vmem:[%s1036] sm:$0xf]
      %1038 = vrot.lane.b32.xlu0 %v287, 103
      %v1039 = vpop.permute.xlu0 %1038
      %v1041 = vsel %vm294, %v1037, 0
      %v1043 = vsel %vm298, %v1039, 0
      %1045 = vmatpush.msra.mxu0 0.0
      %1046 = vmatpush.msra.mxu0 0.0
      %1047 = vmatpush.msra.mxu0 0.0
      %1048 = vmatpush.msra.mxu0 0.0
      %1049 = vmatpush.msra.mxu0 0.0
      %1050 = vmatpush.msra.mxu0 0.0
      %1051 = vmatpush.msra.mxu0 0.0
      %1052 = vmatpush.msra.mxu0 0.0
      %1053 = vmatpush.msra.mxu0 0.0
      %1054 = vmatpush.msra.mxu0 0.0
      %1055 = vmatpush.msra.mxu0 0.0
      %1056 = vmatpush.msra.mxu0 0.0
      %1057 = vmatpush.msra.mxu0 0.0
      %1058 = vmatpush.msra.mxu0 0.0
      %1059 = vmatpush.msra.mxu0 0.0
      %1060 = vmatpush.msra.mxu0 %v1043
      %1061 = vmatmul.f32.gmra.mxu0 %v1041
      %v1062 = vpop.f32.mrf.mxu0
      %v1063 = vadd.f32 0.0, %v1062
      %1064 = vdwg.mxu0
      %v1065 = vadd.f32 %v1035, %v1063
      %s1066 = scalar_lea.vmem %s1, 104
      %v1067 = vld [vmem:[%s1066] sm:$0xf]
      %1068 = vrot.lane.b32.xlu0 %v287, 102
      %v1069 = vpop.permute.xlu0 %1068
      %v1071 = vsel %vm294, %v1067, 0
      %v1073 = vsel %vm298, %v1069, 0
      %1075 = vmatpush.msra.mxu0 0.0
      %1076 = vmatpush.msra.mxu0 0.0
      %1077 = vmatpush.msra.mxu0 0.0
      %1078 = vmatpush.msra.mxu0 0.0
      %1079 = vmatpush.msra.mxu0 0.0
      %1080 = vmatpush.msra.mxu0 0.0
      %1081 = vmatpush.msra.mxu0 0.0
      %1082 = vmatpush.msra.mxu0 0.0
      %1083 = vmatpush.msra.mxu0 0.0
      %1084 = vmatpush.msra.mxu0 0.0
      %1085 = vmatpush.msra.mxu0 0.0
      %1086 = vmatpush.msra.mxu0 0.0
      %1087 = vmatpush.msra.mxu0 0.0
      %1088 = vmatpush.msra.mxu0 0.0
      %1089 = vmatpush.msra.mxu0 0.0
      %1090 = vmatpush.msra.mxu0 %v1073
      %1091 = vmatmul.f32.gmra.mxu0 %v1071
      %v1092 = vpop.f32.mrf.mxu0
      %v1093 = vadd.f32 0.0, %v1092
      %1094 = vdwg.mxu0
      %v1095 = vadd.f32 %v1065, %v1093
      %s1096 = scalar_lea.vmem %s1, 108
      %v1097 = vld [vmem:[%s1096] sm:$0xf]
      %1098 = vrot.lane.b32.xlu0 %v287, 101
      %v1099 = vpop.permute.xlu0 %1098
      %v1101 = vsel %vm294, %v1097, 0
      %v1103 = vsel %vm298, %v1099, 0
      %1105 = vmatpush.msra.mxu0 0.0
      %1106 = vmatpush.msra.mxu0 0.0
      %1107 = vmatpush.msra.mxu0 0.0
      %1108 = vmatpush.msra.mxu0 0.0
      %1109 = vmatpush.msra.mxu0 0.0
      %1110 = vmatpush.msra.mxu0 0.0
      %1111 = vmatpush.msra.mxu0 0.0
      %1112 = vmatpush.msra.mxu0 0.0
      %1113 = vmatpush.msra.mxu0 0.0
      %1114 = vmatpush.msra.mxu0 0.0
      %1115 = vmatpush.msra.mxu0 0.0
      %1116 = vmatpush.msra.mxu0 0.0
      %1117 = vmatpush.msra.mxu0 0.0
      %1118 = vmatpush.msra.mxu0 0.0
      %1119 = vmatpush.msra.mxu0 0.0
      %1120 = vmatpush.msra.mxu0 %v1103
      %1121 = vmatmul.f32.gmra.mxu0 %v1101
      %v1122 = vpop.f32.mrf.mxu0
      %v1123 = vadd.f32 0.0, %v1122
      %1124 = vdwg.mxu0
      %v1125 = vadd.f32 %v1095, %v1123
      %s1126 = scalar_lea.vmem %s1, 112
      %v1127 = vld [vmem:[%s1126] sm:$0xf]
      %1128 = vrot.lane.b32.xlu0 %v287, 100
      %v1129 = vpop.permute.xlu0 %1128
      %v1131 = vsel %vm294, %v1127, 0
      %v1133 = vsel %vm298, %v1129, 0
      %1135 = vmatpush.msra.mxu0 0.0
      %1136 = vmatpush.msra.mxu0 0.0
      %1137 = vmatpush.msra.mxu0 0.0
      %1138 = vmatpush.msra.mxu0 0.0
      %1139 = vmatpush.msra.mxu0 0.0
      %1140 = vmatpush.msra.mxu0 0.0
      %1141 = vmatpush.msra.mxu0 0.0
      %1142 = vmatpush.msra.mxu0 0.0
      %1143 = vmatpush.msra.mxu0 0.0
      %1144 = vmatpush.msra.mxu0 0.0
      %1145 = vmatpush.msra.mxu0 0.0
      %1146 = vmatpush.msra.mxu0 0.0
      %1147 = vmatpush.msra.mxu0 0.0
      %1148 = vmatpush.msra.mxu0 0.0
      %1149 = vmatpush.msra.mxu0 0.0
      %1150 = vmatpush.msra.mxu0 %v1133
      %1151 = vmatmul.f32.gmra.mxu0 %v1131
      %v1152 = vpop.f32.mrf.mxu0
      %v1153 = vadd.f32 0.0, %v1152
      %1154 = vdwg.mxu0
      %v1155 = vadd.f32 %v1125, %v1153
      %s1156 = scalar_lea.vmem %s1, 116
      %v1157 = vld [vmem:[%s1156] sm:$0xf]
      %1158 = vrot.lane.b32.xlu0 %v287, 99
      %v1159 = vpop.permute.xlu0 %1158
      %v1161 = vsel %vm294, %v1157, 0
      %v1163 = vsel %vm298, %v1159, 0
      %1165 = vmatpush.msra.mxu0 0.0
      %1166 = vmatpush.msra.mxu0 0.0
      %1167 = vmatpush.msra.mxu0 0.0
      %1168 = vmatpush.msra.mxu0 0.0
      %1169 = vmatpush.msra.mxu0 0.0
      %1170 = vmatpush.msra.mxu0 0.0
      %1171 = vmatpush.msra.mxu0 0.0
      %1172 = vmatpush.msra.mxu0 0.0
      %1173 = vmatpush.msra.mxu0 0.0
      %1174 = vmatpush.msra.mxu0 0.0
      %1175 = vmatpush.msra.mxu0 0.0
      %1176 = vmatpush.msra.mxu0 0.0
      %1177 = vmatpush.msra.mxu0 0.0
      %1178 = vmatpush.msra.mxu0 0.0
      %1179 = vmatpush.msra.mxu0 0.0
      %1180 = vmatpush.msra.mxu0 %v1163
      %1181 = vmatmul.f32.gmra.mxu0 %v1161
      %v1182 = vpop.f32.mrf.mxu0
      %v1183 = vadd.f32 0.0, %v1182
      %1184 = vdwg.mxu0
      %v1185 = vadd.f32 %v1155, %v1183
      %s1186 = scalar_lea.vmem %s1, 120
      %v1187 = vld [vmem:[%s1186] sm:$0xf]
      %1188 = vrot.lane.b32.xlu0 %v287, 98
      %v1189 = vpop.permute.xlu0 %1188
      %v1191 = vsel %vm294, %v1187, 0
      %v1193 = vsel %vm298, %v1189, 0
      %1195 = vmatpush.msra.mxu0 0.0
      %1196 = vmatpush.msra.mxu0 0.0
      %1197 = vmatpush.msra.mxu0 0.0
      %1198 = vmatpush.msra.mxu0 0.0
      %1199 = vmatpush.msra.mxu0 0.0
      %1200 = vmatpush.msra.mxu0 0.0
      %1201 = vmatpush.msra.mxu0 0.0
      %1202 = vmatpush.msra.mxu0 0.0
      %1203 = vmatpush.msra.mxu0 0.0
      %1204 = vmatpush.msra.mxu0 0.0
      %1205 = vmatpush.msra.mxu0 0.0
      %1206 = vmatpush.msra.mxu0 0.0
      %1207 = vmatpush.msra.mxu0 0.0
      %1208 = vmatpush.msra.mxu0 0.0
      %1209 = vmatpush.msra.mxu0 0.0
      %1210 = vmatpush.msra.mxu0 %v1193
      %1211 = vmatmul.f32.gmra.mxu0 %v1191
      %v1212 = vpop.f32.mrf.mxu0
      %v1213 = vadd.f32 0.0, %v1212
      %1214 = vdwg.mxu0
      %v1215 = vadd.f32 %v1185, %v1213
      %s1216 = scalar_lea.vmem %s1, 124
      %v1217 = vld [vmem:[%s1216] sm:$0xf]
      %1218 = vrot.lane.b32.xlu0 %v287, 97
      %v1219 = vpop.permute.xlu0 %1218
      %v1221 = vsel %vm294, %v1217, 0
      %v1223 = vsel %vm298, %v1219, 0
      %1225 = vmatpush.msra.mxu0 0.0
      %1226 = vmatpush.msra.mxu0 0.0
      %1227 = vmatpush.msra.mxu0 0.0
      %1228 = vmatpush.msra.mxu0 0.0
      %1229 = vmatpush.msra.mxu0 0.0
      %1230 = vmatpush.msra.mxu0 0.0
      %1231 = vmatpush.msra.mxu0 0.0
      %1232 = vmatpush.msra.mxu0 0.0
      %1233 = vmatpush.msra.mxu0 0.0
      %1234 = vmatpush.msra.mxu0 0.0
      %1235 = vmatpush.msra.mxu0 0.0
      %1236 = vmatpush.msra.mxu0 0.0
      %1237 = vmatpush.msra.mxu0 0.0
      %1238 = vmatpush.msra.mxu0 0.0
      %1239 = vmatpush.msra.mxu0 0.0
      %1240 = vmatpush.msra.mxu0 %v1223
      %1241 = vmatmul.f32.gmra.mxu0 %v1221
      %v1242 = vpop.f32.mrf.mxu0
      %v1243 = vadd.f32 0.0, %v1242
      %1244 = vdwg.mxu0
      %v1245 = vadd.f32 %v1215, %v1243
      %s1246 = scalar_lea.vmem %s1, 128
      %v1247 = vld [vmem:[%s1246] sm:$0xf]
      %1248 = vrot.lane.b32.xlu0 %v287, 96
      %v1249 = vpop.permute.xlu0 %1248
      %v1251 = vsel %vm294, %v1247, 0
      %v1253 = vsel %vm298, %v1249, 0
      %1255 = vmatpush.msra.mxu0 0.0
      %1256 = vmatpush.msra.mxu0 0.0
      %1257 = vmatpush.msra.mxu0 0.0
      %1258 = vmatpush.msra.mxu0 0.0
      %1259 = vmatpush.msra.mxu0 0.0
      %1260 = vmatpush.msra.mxu0 0.0
      %1261 = vmatpush.msra.mxu0 0.0
      %1262 = vmatpush.msra.mxu0 0.0
      %1263 = vmatpush.msra.mxu0 0.0
      %1264 = vmatpush.msra.mxu0 0.0
      %1265 = vmatpush.msra.mxu0 0.0
      %1266 = vmatpush.msra.mxu0 0.0
      %1267 = vmatpush.msra.mxu0 0.0
      %1268 = vmatpush.msra.mxu0 0.0
      %1269 = vmatpush.msra.mxu0 0.0
      %1270 = vmatpush.msra.mxu0 %v1253
      %1271 = vmatmul.f32.gmra.mxu0 %v1251
      %v1272 = vpop.f32.mrf.mxu0
      %v1273 = vadd.f32 0.0, %v1272
      %1274 = vdwg.mxu0
      %v1275 = vadd.f32 %v1245, %v1273
      %s1276 = scalar_lea.vmem %s1, 132
      %v1277 = vld [vmem:[%s1276] sm:$0xf]
      %1278 = vrot.lane.b32.xlu0 %v287, 95
      %v1279 = vpop.permute.xlu0 %1278
      %v1281 = vsel %vm294, %v1277, 0
      %v1283 = vsel %vm298, %v1279, 0
      %1285 = vmatpush.msra.mxu0 0.0
      %1286 = vmatpush.msra.mxu0 0.0
      %1287 = vmatpush.msra.mxu0 0.0
      %1288 = vmatpush.msra.mxu0 0.0
      %1289 = vmatpush.msra.mxu0 0.0
      %1290 = vmatpush.msra.mxu0 0.0
      %1291 = vmatpush.msra.mxu0 0.0
      %1292 = vmatpush.msra.mxu0 0.0
      %1293 = vmatpush.msra.mxu0 0.0
      %1294 = vmatpush.msra.mxu0 0.0
      %1295 = vmatpush.msra.mxu0 0.0
      %1296 = vmatpush.msra.mxu0 0.0
      %1297 = vmatpush.msra.mxu0 0.0
      %1298 = vmatpush.msra.mxu0 0.0
      %1299 = vmatpush.msra.mxu0 0.0
      %1300 = vmatpush.msra.mxu0 %v1283
      %1301 = vmatmul.f32.gmra.mxu0 %v1281
      %v1302 = vpop.f32.mrf.mxu0
      %v1303 = vadd.f32 0.0, %v1302
      %1304 = vdwg.mxu0
      %v1305 = vadd.f32 %v1275, %v1303
      %s1306 = scalar_lea.vmem %s1, 136
      %v1307 = vld [vmem:[%s1306] sm:$0xf]
      %1308 = vrot.lane.b32.xlu0 %v287, 94
      %v1309 = vpop.permute.xlu0 %1308
      %v1311 = vsel %vm294, %v1307, 0
      %v1313 = vsel %vm298, %v1309, 0
      %1315 = vmatpush.msra.mxu0 0.0
      %1316 = vmatpush.msra.mxu0 0.0
      %1317 = vmatpush.msra.mxu0 0.0
      %1318 = vmatpush.msra.mxu0 0.0
      %1319 = vmatpush.msra.mxu0 0.0
      %1320 = vmatpush.msra.mxu0 0.0
      %1321 = vmatpush.msra.mxu0 0.0
      %1322 = vmatpush.msra.mxu0 0.0
      %1323 = vmatpush.msra.mxu0 0.0
      %1324 = vmatpush.msra.mxu0 0.0
      %1325 = vmatpush.msra.mxu0 0.0
      %1326 = vmatpush.msra.mxu0 0.0
      %1327 = vmatpush.msra.mxu0 0.0
      %1328 = vmatpush.msra.mxu0 0.0
      %1329 = vmatpush.msra.mxu0 0.0
      %1330 = vmatpush.msra.mxu0 %v1313
      %1331 = vmatmul.f32.gmra.mxu0 %v1311
      %v1332 = vpop.f32.mrf.mxu0
      %v1333 = vadd.f32 0.0, %v1332
      %1334 = vdwg.mxu0
      %v1335 = vadd.f32 %v1305, %v1333
      %s1336 = scalar_lea.vmem %s1, 140
      %v1337 = vld [vmem:[%s1336] sm:$0xf]
      %1338 = vrot.lane.b32.xlu0 %v287, 93
      %v1339 = vpop.permute.xlu0 %1338
      %v1341 = vsel %vm294, %v1337, 0
      %v1343 = vsel %vm298, %v1339, 0
      %1345 = vmatpush.msra.mxu0 0.0
      %1346 = vmatpush.msra.mxu0 0.0
      %1347 = vmatpush.msra.mxu0 0.0
      %1348 = vmatpush.msra.mxu0 0.0
      %1349 = vmatpush.msra.mxu0 0.0
      %1350 = vmatpush.msra.mxu0 0.0
      %1351 = vmatpush.msra.mxu0 0.0
      %1352 = vmatpush.msra.mxu0 0.0
      %1353 = vmatpush.msra.mxu0 0.0
      %1354 = vmatpush.msra.mxu0 0.0
      %1355 = vmatpush.msra.mxu0 0.0
      %1356 = vmatpush.msra.mxu0 0.0
      %1357 = vmatpush.msra.mxu0 0.0
      %1358 = vmatpush.msra.mxu0 0.0
      %1359 = vmatpush.msra.mxu0 0.0
      %1360 = vmatpush.msra.mxu0 %v1343
      %1361 = vmatmul.f32.gmra.mxu0 %v1341
      %v1362 = vpop.f32.mrf.mxu0
      %v1363 = vadd.f32 0.0, %v1362
      %1364 = vdwg.mxu0
      %v1365 = vadd.f32 %v1335, %v1363
      %s1366 = scalar_lea.vmem %s1, 144
      %v1367 = vld [vmem:[%s1366] sm:$0xf]
      %1368 = vrot.lane.b32.xlu0 %v287, 92
      %v1369 = vpop.permute.xlu0 %1368
      %v1371 = vsel %vm294, %v1367, 0
      %v1373 = vsel %vm298, %v1369, 0
      %1375 = vmatpush.msra.mxu0 0.0
      %1376 = vmatpush.msra.mxu0 0.0
      %1377 = vmatpush.msra.mxu0 0.0
      %1378 = vmatpush.msra.mxu0 0.0
      %1379 = vmatpush.msra.mxu0 0.0
      %1380 = vmatpush.msra.mxu0 0.0
      %1381 = vmatpush.msra.mxu0 0.0
      %1382 = vmatpush.msra.mxu0 0.0
      %1383 = vmatpush.msra.mxu0 0.0
      %1384 = vmatpush.msra.mxu0 0.0
      %1385 = vmatpush.msra.mxu0 0.0
      %1386 = vmatpush.msra.mxu0 0.0
      %1387 = vmatpush.msra.mxu0 0.0
      %1388 = vmatpush.msra.mxu0 0.0
      %1389 = vmatpush.msra.mxu0 0.0
      %1390 = vmatpush.msra.mxu0 %v1373
      %1391 = vmatmul.f32.gmra.mxu0 %v1371
      %v1392 = vpop.f32.mrf.mxu0
      %v1393 = vadd.f32 0.0, %v1392
      %1394 = vdwg.mxu0
      %v1395 = vadd.f32 %v1365, %v1393
      %s1396 = scalar_lea.vmem %s1, 148
      %v1397 = vld [vmem:[%s1396] sm:$0xf]
      %1398 = vrot.lane.b32.xlu0 %v287, 91
      %v1399 = vpop.permute.xlu0 %1398
      %v1401 = vsel %vm294, %v1397, 0
      %v1403 = vsel %vm298, %v1399, 0
      %1405 = vmatpush.msra.mxu0 0.0
      %1406 = vmatpush.msra.mxu0 0.0
      %1407 = vmatpush.msra.mxu0 0.0
      %1408 = vmatpush.msra.mxu0 0.0
      %1409 = vmatpush.msra.mxu0 0.0
      %1410 = vmatpush.msra.mxu0 0.0
      %1411 = vmatpush.msra.mxu0 0.0
      %1412 = vmatpush.msra.mxu0 0.0
      %1413 = vmatpush.msra.mxu0 0.0
      %1414 = vmatpush.msra.mxu0 0.0
      %1415 = vmatpush.msra.mxu0 0.0
      %1416 = vmatpush.msra.mxu0 0.0
      %1417 = vmatpush.msra.mxu0 0.0
      %1418 = vmatpush.msra.mxu0 0.0
      %1419 = vmatpush.msra.mxu0 0.0
      %1420 = vmatpush.msra.mxu0 %v1403
      %1421 = vmatmul.f32.gmra.mxu0 %v1401
      %v1422 = vpop.f32.mrf.mxu0
      %v1423 = vadd.f32 0.0, %v1422
      %1424 = vdwg.mxu0
      %v1425 = vadd.f32 %v1395, %v1423
      %s1426 = scalar_lea.vmem %s1, 152
      %v1427 = vld [vmem:[%s1426] sm:$0xf]
      %1428 = vrot.lane.b32.xlu0 %v287, 90
      %v1429 = vpop.permute.xlu0 %1428
      %v1431 = vsel %vm294, %v1427, 0
      %v1433 = vsel %vm298, %v1429, 0
      %1435 = vmatpush.msra.mxu0 0.0
      %1436 = vmatpush.msra.mxu0 0.0
      %1437 = vmatpush.msra.mxu0 0.0
      %1438 = vmatpush.msra.mxu0 0.0
      %1439 = vmatpush.msra.mxu0 0.0
      %1440 = vmatpush.msra.mxu0 0.0
      %1441 = vmatpush.msra.mxu0 0.0
      %1442 = vmatpush.msra.mxu0 0.0
      %1443 = vmatpush.msra.mxu0 0.0
      %1444 = vmatpush.msra.mxu0 0.0
      %1445 = vmatpush.msra.mxu0 0.0
      %1446 = vmatpush.msra.mxu0 0.0
      %1447 = vmatpush.msra.mxu0 0.0
      %1448 = vmatpush.msra.mxu0 0.0
      %1449 = vmatpush.msra.mxu0 0.0
      %1450 = vmatpush.msra.mxu0 %v1433
      %1451 = vmatmul.f32.gmra.mxu0 %v1431
      %v1452 = vpop.f32.mrf.mxu0
      %v1453 = vadd.f32 0.0, %v1452
      %1454 = vdwg.mxu0
      %v1455 = vadd.f32 %v1425, %v1453
      %s1456 = scalar_lea.vmem %s1, 156
      %v1457 = vld [vmem:[%s1456] sm:$0xf]
      %1458 = vrot.lane.b32.xlu0 %v287, 89
      %v1459 = vpop.permute.xlu0 %1458
      %v1461 = vsel %vm294, %v1457, 0
      %v1463 = vsel %vm298, %v1459, 0
      %1465 = vmatpush.msra.mxu0 0.0
      %1466 = vmatpush.msra.mxu0 0.0
      %1467 = vmatpush.msra.mxu0 0.0
      %1468 = vmatpush.msra.mxu0 0.0
      %1469 = vmatpush.msra.mxu0 0.0
      %1470 = vmatpush.msra.mxu0 0.0
      %1471 = vmatpush.msra.mxu0 0.0
      %1472 = vmatpush.msra.mxu0 0.0
      %1473 = vmatpush.msra.mxu0 0.0
      %1474 = vmatpush.msra.mxu0 0.0
      %1475 = vmatpush.msra.mxu0 0.0
      %1476 = vmatpush.msra.mxu0 0.0
      %1477 = vmatpush.msra.mxu0 0.0
      %1478 = vmatpush.msra.mxu0 0.0
      %1479 = vmatpush.msra.mxu0 0.0
      %1480 = vmatpush.msra.mxu0 %v1463
      %1481 = vmatmul.f32.gmra.mxu0 %v1461
      %v1482 = vpop.f32.mrf.mxu0
      %v1483 = vadd.f32 0.0, %v1482
      %1484 = vdwg.mxu0
      %v1485 = vadd.f32 %v1455, %v1483
      %s1486 = scalar_lea.vmem %s1, 160
      %v1487 = vld [vmem:[%s1486] sm:$0xf]
      %1488 = vrot.lane.b32.xlu0 %v287, 88
      %v1489 = vpop.permute.xlu0 %1488
      %v1491 = vsel %vm294, %v1487, 0
      %v1493 = vsel %vm298, %v1489, 0
      %1495 = vmatpush.msra.mxu0 0.0
      %1496 = vmatpush.msra.mxu0 0.0
      %1497 = vmatpush.msra.mxu0 0.0
      %1498 = vmatpush.msra.mxu0 0.0
      %1499 = vmatpush.msra.mxu0 0.0
      %1500 = vmatpush.msra.mxu0 0.0
      %1501 = vmatpush.msra.mxu0 0.0
      %1502 = vmatpush.msra.mxu0 0.0
      %1503 = vmatpush.msra.mxu0 0.0
      %1504 = vmatpush.msra.mxu0 0.0
      %1505 = vmatpush.msra.mxu0 0.0
      %1506 = vmatpush.msra.mxu0 0.0
      %1507 = vmatpush.msra.mxu0 0.0
      %1508 = vmatpush.msra.mxu0 0.0
      %1509 = vmatpush.msra.mxu0 0.0
      %1510 = vmatpush.msra.mxu0 %v1493
      %1511 = vmatmul.f32.gmra.mxu0 %v1491
      %v1512 = vpop.f32.mrf.mxu0
      %v1513 = vadd.f32 0.0, %v1512
      %1514 = vdwg.mxu0
      %v1515 = vadd.f32 %v1485, %v1513
      %s1516 = scalar_lea.vmem %s1, 164
      %v1517 = vld [vmem:[%s1516] sm:$0xf]
      %1518 = vrot.lane.b32.xlu0 %v287, 87
      %v1519 = vpop.permute.xlu0 %1518
      %v1521 = vsel %vm294, %v1517, 0
      %v1523 = vsel %vm298, %v1519, 0
      %1525 = vmatpush.msra.mxu0 0.0
      %1526 = vmatpush.msra.mxu0 0.0
      %1527 = vmatpush.msra.mxu0 0.0
      %1528 = vmatpush.msra.mxu0 0.0
      %1529 = vmatpush.msra.mxu0 0.0
      %1530 = vmatpush.msra.mxu0 0.0
      %1531 = vmatpush.msra.mxu0 0.0
      %1532 = vmatpush.msra.mxu0 0.0
      %1533 = vmatpush.msra.mxu0 0.0
      %1534 = vmatpush.msra.mxu0 0.0
      %1535 = vmatpush.msra.mxu0 0.0
      %1536 = vmatpush.msra.mxu0 0.0
      %1537 = vmatpush.msra.mxu0 0.0
      %1538 = vmatpush.msra.mxu0 0.0
      %1539 = vmatpush.msra.mxu0 0.0
      %1540 = vmatpush.msra.mxu0 %v1523
      %1541 = vmatmul.f32.gmra.mxu0 %v1521
      %v1542 = vpop.f32.mrf.mxu0
      %v1543 = vadd.f32 0.0, %v1542
      %1544 = vdwg.mxu0
      %v1545 = vadd.f32 %v1515, %v1543
      %s1546 = scalar_lea.vmem %s1, 168
      %v1547 = vld [vmem:[%s1546] sm:$0xf]
      %1548 = vrot.lane.b32.xlu0 %v287, 86
      %v1549 = vpop.permute.xlu0 %1548
      %v1551 = vsel %vm294, %v1547, 0
      %v1553 = vsel %vm298, %v1549, 0
      %1555 = vmatpush.msra.mxu0 0.0
      %1556 = vmatpush.msra.mxu0 0.0
      %1557 = vmatpush.msra.mxu0 0.0
      %1558 = vmatpush.msra.mxu0 0.0
      %1559 = vmatpush.msra.mxu0 0.0
      %1560 = vmatpush.msra.mxu0 0.0
      %1561 = vmatpush.msra.mxu0 0.0
      %1562 = vmatpush.msra.mxu0 0.0
      %1563 = vmatpush.msra.mxu0 0.0
      %1564 = vmatpush.msra.mxu0 0.0
      %1565 = vmatpush.msra.mxu0 0.0
      %1566 = vmatpush.msra.mxu0 0.0
      %1567 = vmatpush.msra.mxu0 0.0
      %1568 = vmatpush.msra.mxu0 0.0
      %1569 = vmatpush.msra.mxu0 0.0
      %1570 = vmatpush.msra.mxu0 %v1553
      %1571 = vmatmul.f32.gmra.mxu0 %v1551
      %v1572 = vpop.f32.mrf.mxu0
      %v1573 = vadd.f32 0.0, %v1572
      %1574 = vdwg.mxu0
      %v1575 = vadd.f32 %v1545, %v1573
      %s1576 = scalar_lea.vmem %s1, 172
      %v1577 = vld [vmem:[%s1576] sm:$0xf]
      %1578 = vrot.lane.b32.xlu0 %v287, 85
      %v1579 = vpop.permute.xlu0 %1578
      %v1581 = vsel %vm294, %v1577, 0
      %v1583 = vsel %vm298, %v1579, 0
      %1585 = vmatpush.msra.mxu0 0.0
      %1586 = vmatpush.msra.mxu0 0.0
      %1587 = vmatpush.msra.mxu0 0.0
      %1588 = vmatpush.msra.mxu0 0.0
      %1589 = vmatpush.msra.mxu0 0.0
      %1590 = vmatpush.msra.mxu0 0.0
      %1591 = vmatpush.msra.mxu0 0.0
      %1592 = vmatpush.msra.mxu0 0.0
      %1593 = vmatpush.msra.mxu0 0.0
      %1594 = vmatpush.msra.mxu0 0.0
      %1595 = vmatpush.msra.mxu0 0.0
      %1596 = vmatpush.msra.mxu0 0.0
      %1597 = vmatpush.msra.mxu0 0.0
      %1598 = vmatpush.msra.mxu0 0.0
      %1599 = vmatpush.msra.mxu0 0.0
      %1600 = vmatpush.msra.mxu0 %v1583
      %1601 = vmatmul.f32.gmra.mxu0 %v1581
      %v1602 = vpop.f32.mrf.mxu0
      %v1603 = vadd.f32 0.0, %v1602
      %1604 = vdwg.mxu0
      %v1605 = vadd.f32 %v1575, %v1603
      %s1606 = scalar_lea.vmem %s1, 176
      %v1607 = vld [vmem:[%s1606] sm:$0xf]
      %1608 = vrot.lane.b32.xlu0 %v287, 84
      %v1609 = vpop.permute.xlu0 %1608
      %v1611 = vsel %vm294, %v1607, 0
      %v1613 = vsel %vm298, %v1609, 0
      %1615 = vmatpush.msra.mxu0 0.0
      %1616 = vmatpush.msra.mxu0 0.0
      %1617 = vmatpush.msra.mxu0 0.0
      %1618 = vmatpush.msra.mxu0 0.0
      %1619 = vmatpush.msra.mxu0 0.0
      %1620 = vmatpush.msra.mxu0 0.0
      %1621 = vmatpush.msra.mxu0 0.0
      %1622 = vmatpush.msra.mxu0 0.0
      %1623 = vmatpush.msra.mxu0 0.0
      %1624 = vmatpush.msra.mxu0 0.0
      %1625 = vmatpush.msra.mxu0 0.0
      %1626 = vmatpush.msra.mxu0 0.0
      %1627 = vmatpush.msra.mxu0 0.0
      %1628 = vmatpush.msra.mxu0 0.0
      %1629 = vmatpush.msra.mxu0 0.0
      %1630 = vmatpush.msra.mxu0 %v1613
      %1631 = vmatmul.f32.gmra.mxu0 %v1611
      %v1632 = vpop.f32.mrf.mxu0
      %v1633 = vadd.f32 0.0, %v1632
      %1634 = vdwg.mxu0
      %v1635 = vadd.f32 %v1605, %v1633
      %s1636 = scalar_lea.vmem %s1, 180
      %v1637 = vld [vmem:[%s1636] sm:$0xf]
      %1638 = vrot.lane.b32.xlu0 %v287, 83
      %v1639 = vpop.permute.xlu0 %1638
      %v1641 = vsel %vm294, %v1637, 0
      %v1643 = vsel %vm298, %v1639, 0
      %1645 = vmatpush.msra.mxu0 0.0
      %1646 = vmatpush.msra.mxu0 0.0
      %1647 = vmatpush.msra.mxu0 0.0
      %1648 = vmatpush.msra.mxu0 0.0
      %1649 = vmatpush.msra.mxu0 0.0
      %1650 = vmatpush.msra.mxu0 0.0
      %1651 = vmatpush.msra.mxu0 0.0
      %1652 = vmatpush.msra.mxu0 0.0
      %1653 = vmatpush.msra.mxu0 0.0
      %1654 = vmatpush.msra.mxu0 0.0
      %1655 = vmatpush.msra.mxu0 0.0
      %1656 = vmatpush.msra.mxu0 0.0
      %1657 = vmatpush.msra.mxu0 0.0
      %1658 = vmatpush.msra.mxu0 0.0
      %1659 = vmatpush.msra.mxu0 0.0
      %1660 = vmatpush.msra.mxu0 %v1643
      %1661 = vmatmul.f32.gmra.mxu0 %v1641
      %v1662 = vpop.f32.mrf.mxu0
      %v1663 = vadd.f32 0.0, %v1662
      %1664 = vdwg.mxu0
      %v1665 = vadd.f32 %v1635, %v1663
      %s1666 = scalar_lea.vmem %s1, 184
      %v1667 = vld [vmem:[%s1666] sm:$0xf]
      %1668 = vrot.lane.b32.xlu0 %v287, 82
      %v1669 = vpop.permute.xlu0 %1668
      %v1671 = vsel %vm294, %v1667, 0
      %v1673 = vsel %vm298, %v1669, 0
      %1675 = vmatpush.msra.mxu0 0.0
      %1676 = vmatpush.msra.mxu0 0.0
      %1677 = vmatpush.msra.mxu0 0.0
      %1678 = vmatpush.msra.mxu0 0.0
      %1679 = vmatpush.msra.mxu0 0.0
      %1680 = vmatpush.msra.mxu0 0.0
      %1681 = vmatpush.msra.mxu0 0.0
      %1682 = vmatpush.msra.mxu0 0.0
      %1683 = vmatpush.msra.mxu0 0.0
      %1684 = vmatpush.msra.mxu0 0.0
      %1685 = vmatpush.msra.mxu0 0.0
      %1686 = vmatpush.msra.mxu0 0.0
      %1687 = vmatpush.msra.mxu0 0.0
      %1688 = vmatpush.msra.mxu0 0.0
      %1689 = vmatpush.msra.mxu0 0.0
      %1690 = vmatpush.msra.mxu0 %v1673
      %1691 = vmatmul.f32.gmra.mxu0 %v1671
      %v1692 = vpop.f32.mrf.mxu0
      %v1693 = vadd.f32 0.0, %v1692
      %1694 = vdwg.mxu0
      %v1695 = vadd.f32 %v1665, %v1693
      %s1696 = scalar_lea.vmem %s1, 188
      %v1697 = vld [vmem:[%s1696] sm:$0xf]
      %1698 = vrot.lane.b32.xlu0 %v287, 81
      %v1699 = vpop.permute.xlu0 %1698
      %v1701 = vsel %vm294, %v1697, 0
      %v1703 = vsel %vm298, %v1699, 0
      %1705 = vmatpush.msra.mxu0 0.0
      %1706 = vmatpush.msra.mxu0 0.0
      %1707 = vmatpush.msra.mxu0 0.0
      %1708 = vmatpush.msra.mxu0 0.0
      %1709 = vmatpush.msra.mxu0 0.0
      %1710 = vmatpush.msra.mxu0 0.0
      %1711 = vmatpush.msra.mxu0 0.0
      %1712 = vmatpush.msra.mxu0 0.0
      %1713 = vmatpush.msra.mxu0 0.0
      %1714 = vmatpush.msra.mxu0 0.0
      %1715 = vmatpush.msra.mxu0 0.0
      %1716 = vmatpush.msra.mxu0 0.0
      %1717 = vmatpush.msra.mxu0 0.0
      %1718 = vmatpush.msra.mxu0 0.0
      %1719 = vmatpush.msra.mxu0 0.0
      %1720 = vmatpush.msra.mxu0 %v1703
      %1721 = vmatmul.f32.gmra.mxu0 %v1701
      %v1722 = vpop.f32.mrf.mxu0
      %v1723 = vadd.f32 0.0, %v1722
      %1724 = vdwg.mxu0
      %v1725 = vadd.f32 %v1695, %v1723
      %s1726 = scalar_lea.vmem %s1, 192
      %v1727 = vld [vmem:[%s1726] sm:$0xf]
      %1728 = vrot.lane.b32.xlu0 %v287, 80
      %v1729 = vpop.permute.xlu0 %1728
      %v1731 = vsel %vm294, %v1727, 0
      %v1733 = vsel %vm298, %v1729, 0
      %1735 = vmatpush.msra.mxu0 0.0
      %1736 = vmatpush.msra.mxu0 0.0
      %1737 = vmatpush.msra.mxu0 0.0
      %1738 = vmatpush.msra.mxu0 0.0
      %1739 = vmatpush.msra.mxu0 0.0
      %1740 = vmatpush.msra.mxu0 0.0
      %1741 = vmatpush.msra.mxu0 0.0
      %1742 = vmatpush.msra.mxu0 0.0
      %1743 = vmatpush.msra.mxu0 0.0
      %1744 = vmatpush.msra.mxu0 0.0
      %1745 = vmatpush.msra.mxu0 0.0
      %1746 = vmatpush.msra.mxu0 0.0
      %1747 = vmatpush.msra.mxu0 0.0
      %1748 = vmatpush.msra.mxu0 0.0
      %1749 = vmatpush.msra.mxu0 0.0
      %1750 = vmatpush.msra.mxu0 %v1733
      %1751 = vmatmul.f32.gmra.mxu0 %v1731
      %v1752 = vpop.f32.mrf.mxu0
      %v1753 = vadd.f32 0.0, %v1752
      %1754 = vdwg.mxu0
      %v1755 = vadd.f32 %v1725, %v1753
      %v1756 = vld [vmem:[%s2] sm:$0xf]
      %1758 = vset.pattern.permute.xlu0 0
      %1759 = vperm.xlu0 %1758, %v1756
      %v1760 = vpop.permute.xlu0 %1759
      %v1762 = vadd.f32 %v1755, %v1760
      %v1763 = vmax.f32 %v1762, 0.0
      %v1764 = vld [vmem:[%s3] sm:$0xf]
      %s1765 = scalar_lea.vmem %s3, 4
      %v1766 = vld [vmem:[%s1765] sm:$0xf]
      %1768 = vrot.lane.b32.xlu0 %v1763, 127
      %v1769 = vpop.permute.xlu0 %1768
      %vm1770 = vcmask 31744
      %v1772 = vsel %vm1770, %v1766, 0
      %vm1774 = vcmask 1043456
      %v1775 = vsel %vm1774, %v1769, 0
      %1777 = vmatpush.msra.mxu0 0.0
      %1778 = vmatpush.msra.mxu0 0.0
      %1779 = vmatpush.msra.mxu0 0.0
      %1780 = vmatpush.msra.mxu0 0.0
      %1781 = vmatpush.msra.mxu0 0.0
      %1782 = vmatpush.msra.mxu0 0.0
      %1783 = vmatpush.msra.mxu0 0.0
      %1784 = vmatpush.msra.mxu0 0.0
      %1785 = vmatpush.msra.mxu0 0.0
      %1786 = vmatpush.msra.mxu0 0.0
      %1787 = vmatpush.msra.mxu0 0.0
      %1788 = vmatpush.msra.mxu0 0.0
      %1789 = vmatpush.msra.mxu0 0.0
      %1790 = vmatpush.msra.mxu0 0.0
      %1791 = vmatpush.msra.mxu0 0.0
      %1792 = vmatpush.msra.mxu0 %v1775
      %1793 = vmatmul.f32.gmra.mxu0 %v1772
      %v1794 = vpop.f32.mrf.mxu0
      %v1795 = vadd.f32 0.0, %v1794
      %1796 = vdwg.mxu0
      %v1798 = vsel %vm1770, %v1764, 0
      %v1800 = vsel %vm1774, %v1763, 0
      %1802 = vmatpush.msra.mxu0 0.0
      %1803 = vmatpush.msra.mxu0 0.0
      %1804 = vmatpush.msra.mxu0 0.0
      %1805 = vmatpush.msra.mxu0 0.0
      %1806 = vmatpush.msra.mxu0 0.0
      %1807 = vmatpush.msra.mxu0 0.0
      %1808 = vmatpush.msra.mxu0 0.0
      %1809 = vmatpush.msra.mxu0 0.0
      %1810 = vmatpush.msra.mxu0 0.0
      %1811 = vmatpush.msra.mxu0 0.0
      %1812 = vmatpush.msra.mxu0 0.0
      %1813 = vmatpush.msra.mxu0 0.0
      %1814 = vmatpush.msra.mxu0 0.0
      %1815 = vmatpush.msra.mxu0 0.0
      %1816 = vmatpush.msra.mxu0 0.0
      %1817 = vmatpush.msra.mxu0 %v1800
      %1818 = vmatmul.f32.gmra.mxu0 %v1798
      %v1819 = vpop.f32.mrf.mxu0
      %v1820 = vadd.f32 %v1795, %v1819
      %1821 = vdwg.mxu0
      %v1823 = vadd.f32 %v1763, %v1769
      %s1824 = scalar_lea.vmem %s3, 8
      %v1825 = vld [vmem:[%s1824] sm:$0xf]
      %1826 = vrot.lane.b32.xlu0 %v1763, 126
      %v1827 = vpop.permute.xlu0 %1826
      %v1829 = vsel %vm1770, %v1825, 0
      %v1831 = vsel %vm1774, %v1827, 0
      %1833 = vmatpush.msra.mxu0 0.0
      %1834 = vmatpush.msra.mxu0 0.0
      %1835 = vmatpush.msra.mxu0 0.0
      %1836 = vmatpush.msra.mxu0 0.0
      %1837 = vmatpush.msra.mxu0 0.0
      %1838 = vmatpush.msra.mxu0 0.0
      %1839 = vmatpush.msra.mxu0 0.0
      %1840 = vmatpush.msra.mxu0 0.0
      %1841 = vmatpush.msra.mxu0 0.0
      %1842 = vmatpush.msra.mxu0 0.0
      %1843 = vmatpush.msra.mxu0 0.0
      %1844 = vmatpush.msra.mxu0 0.0
      %1845 = vmatpush.msra.mxu0 0.0
      %1846 = vmatpush.msra.mxu0 0.0
      %1847 = vmatpush.msra.mxu0 0.0
      %1848 = vmatpush.msra.mxu0 %v1831
      %1849 = vmatmul.f32.gmra.mxu0 %v1829
      %v1850 = vpop.f32.mrf.mxu0
      %v1851 = vadd.f32 0.0, %v1850
      %1852 = vdwg.mxu0
      %v1853 = vadd.f32 %v1820, %v1851
      %v1855 = vadd.f32 %v1823, %v1827
      %s1856 = scalar_lea.vmem %s3, 12
      %v1857 = vld [vmem:[%s1856] sm:$0xf]
      %1858 = vrot.lane.b32.xlu0 %v1763, 125
      %v1859 = vpop.permute.xlu0 %1858
      %v1861 = vsel %vm1770, %v1857, 0
      %v1863 = vsel %vm1774, %v1859, 0
      %1865 = vmatpush.msra.mxu0 0.0
      %1866 = vmatpush.msra.mxu0 0.0
      %1867 = vmatpush.msra.mxu0 0.0
      %1868 = vmatpush.msra.mxu0 0.0
      %1869 = vmatpush.msra.mxu0 0.0
      %1870 = vmatpush.msra.mxu0 0.0
      %1871 = vmatpush.msra.mxu0 0.0
      %1872 = vmatpush.msra.mxu0 0.0
      %1873 = vmatpush.msra.mxu0 0.0
      %1874 = vmatpush.msra.mxu0 0.0
      %1875 = vmatpush.msra.mxu0 0.0
      %1876 = vmatpush.msra.mxu0 0.0
      %1877 = vmatpush.msra.mxu0 0.0
      %1878 = vmatpush.msra.mxu0 0.0
      %1879 = vmatpush.msra.mxu0 0.0
      %1880 = vmatpush.msra.mxu0 %v1863
      %1881 = vmatmul.f32.gmra.mxu0 %v1861
      %v1882 = vpop.f32.mrf.mxu0
      %v1883 = vadd.f32 0.0, %v1882
      %1884 = vdwg.mxu0
      %v1885 = vadd.f32 %v1853, %v1883
      %v1887 = vadd.f32 %v1855, %v1859
      %s1888 = scalar_lea.vmem %s3, 16
      %v1889 = vld [vmem:[%s1888] sm:$0xf]
      %1890 = vrot.lane.b32.xlu0 %v1763, 124
      %v1891 = vpop.permute.xlu0 %1890
      %v1893 = vsel %vm1770, %v1889, 0
      %v1895 = vsel %vm1774, %v1891, 0
      %1897 = vmatpush.msra.mxu0 0.0
      %1898 = vmatpush.msra.mxu0 0.0
      %1899 = vmatpush.msra.mxu0 0.0
      %1900 = vmatpush.msra.mxu0 0.0
      %1901 = vmatpush.msra.mxu0 0.0
      %1902 = vmatpush.msra.mxu0 0.0
      %1903 = vmatpush.msra.mxu0 0.0
      %1904 = vmatpush.msra.mxu0 0.0
      %1905 = vmatpush.msra.mxu0 0.0
      %1906 = vmatpush.msra.mxu0 0.0
      %1907 = vmatpush.msra.mxu0 0.0
      %1908 = vmatpush.msra.mxu0 0.0
      %1909 = vmatpush.msra.mxu0 0.0
      %1910 = vmatpush.msra.mxu0 0.0
      %1911 = vmatpush.msra.mxu0 0.0
      %1912 = vmatpush.msra.mxu0 %v1895
      %1913 = vmatmul.f32.gmra.mxu0 %v1893
      %v1914 = vpop.f32.mrf.mxu0
      %v1915 = vadd.f32 0.0, %v1914
      %1916 = vdwg.mxu0
      %v1917 = vadd.f32 %v1885, %v1915
      %v1919 = vadd.f32 %v1887, %v1891
      %s1920 = scalar_lea.vmem %s3, 20
      %v1921 = vld [vmem:[%s1920] sm:$0xf]
      %1922 = vrot.lane.b32.xlu0 %v1763, 123
      %v1923 = vpop.permute.xlu0 %1922
      %v1925 = vsel %vm1770, %v1921, 0
      %v1927 = vsel %vm1774, %v1923, 0
      %1929 = vmatpush.msra.mxu0 0.0
      %1930 = vmatpush.msra.mxu0 0.0
      %1931 = vmatpush.msra.mxu0 0.0
      %1932 = vmatpush.msra.mxu0 0.0
      %1933 = vmatpush.msra.mxu0 0.0
      %1934 = vmatpush.msra.mxu0 0.0
      %1935 = vmatpush.msra.mxu0 0.0
      %1936 = vmatpush.msra.mxu0 0.0
      %1937 = vmatpush.msra.mxu0 0.0
      %1938 = vmatpush.msra.mxu0 0.0
      %1939 = vmatpush.msra.mxu0 0.0
      %1940 = vmatpush.msra.mxu0 0.0
      %1941 = vmatpush.msra.mxu0 0.0
      %1942 = vmatpush.msra.mxu0 0.0
      %1943 = vmatpush.msra.mxu0 0.0
      %1944 = vmatpush.msra.mxu0 %v1927
      %1945 = vmatmul.f32.gmra.mxu0 %v1925
      %v1946 = vpop.f32.mrf.mxu0
      %v1947 = vadd.f32 0.0, %v1946
      %1948 = vdwg.mxu0
      %v1949 = vadd.f32 %v1917, %v1947
      %v1951 = vadd.f32 %v1919, %v1923
      %s1952 = scalar_lea.vmem %s3, 24
      %v1953 = vld [vmem:[%s1952] sm:$0xf]
      %1954 = vrot.lane.b32.xlu0 %v1763, 122
      %v1955 = vpop.permute.xlu0 %1954
      %v1957 = vsel %vm1770, %v1953, 0
      %v1959 = vsel %vm1774, %v1955, 0
      %1961 = vmatpush.msra.mxu0 0.0
      %1962 = vmatpush.msra.mxu0 0.0
      %1963 = vmatpush.msra.mxu0 0.0
      %1964 = vmatpush.msra.mxu0 0.0
      %1965 = vmatpush.msra.mxu0 0.0
      %1966 = vmatpush.msra.mxu0 0.0
      %1967 = vmatpush.msra.mxu0 0.0
      %1968 = vmatpush.msra.mxu0 0.0
      %1969 = vmatpush.msra.mxu0 0.0
      %1970 = vmatpush.msra.mxu0 0.0
      %1971 = vmatpush.msra.mxu0 0.0
      %1972 = vmatpush.msra.mxu0 0.0
      %1973 = vmatpush.msra.mxu0 0.0
      %1974 = vmatpush.msra.mxu0 0.0
      %1975 = vmatpush.msra.mxu0 0.0
      %1976 = vmatpush.msra.mxu0 %v1959
      %1977 = vmatmul.f32.gmra.mxu0 %v1957
      %v1978 = vpop.f32.mrf.mxu0
      %v1979 = vadd.f32 0.0, %v1978
      %1980 = vdwg.mxu0
      %v1981 = vadd.f32 %v1949, %v1979
      %v1983 = vadd.f32 %v1951, %v1955
      %s1984 = scalar_lea.vmem %s3, 28
      %v1985 = vld [vmem:[%s1984] sm:$0xf]
      %1986 = vrot.lane.b32.xlu0 %v1763, 121
      %v1987 = vpop.permute.xlu0 %1986
      %v1989 = vsel %vm1770, %v1985, 0
      %v1991 = vsel %vm1774, %v1987, 0
      %1993 = vmatpush.msra.mxu0 0.0
      %1994 = vmatpush.msra.mxu0 0.0
      %1995 = vmatpush.msra.mxu0 0.0
      %1996 = vmatpush.msra.mxu0 0.0
      %1997 = vmatpush.msra.mxu0 0.0
      %1998 = vmatpush.msra.mxu0 0.0
      %1999 = vmatpush.msra.mxu0 0.0
      %2000 = vmatpush.msra.mxu0 0.0
      %2001 = vmatpush.msra.mxu0 0.0
      %2002 = vmatpush.msra.mxu0 0.0
      %2003 = vmatpush.msra.mxu0 0.0
      %2004 = vmatpush.msra.mxu0 0.0
      %2005 = vmatpush.msra.mxu0 0.0
      %2006 = vmatpush.msra.mxu0 0.0
      %2007 = vmatpush.msra.mxu0 0.0
      %2008 = vmatpush.msra.mxu0 %v1991
      %2009 = vmatmul.f32.gmra.mxu0 %v1989
      %v2010 = vpop.f32.mrf.mxu0
      %v2011 = vadd.f32 0.0, %v2010
      %2012 = vdwg.mxu0
      %v2013 = vadd.f32 %v1981, %v2011
      %v2015 = vadd.f32 %v1983, %v1987
      %s2016 = scalar_lea.vmem %s3, 32
      %v2017 = vld [vmem:[%s2016] sm:$0xf]
      %2018 = vrot.lane.b32.xlu0 %v1763, 120
      %v2019 = vpop.permute.xlu0 %2018
      %v2021 = vsel %vm1770, %v2017, 0
      %v2023 = vsel %vm1774, %v2019, 0
      %2025 = vmatpush.msra.mxu0 0.0
      %2026 = vmatpush.msra.mxu0 0.0
      %2027 = vmatpush.msra.mxu0 0.0
      %2028 = vmatpush.msra.mxu0 0.0
      %2029 = vmatpush.msra.mxu0 0.0
      %2030 = vmatpush.msra.mxu0 0.0
      %2031 = vmatpush.msra.mxu0 0.0
      %2032 = vmatpush.msra.mxu0 0.0
      %2033 = vmatpush.msra.mxu0 0.0
      %2034 = vmatpush.msra.mxu0 0.0
      %2035 = vmatpush.msra.mxu0 0.0
      %2036 = vmatpush.msra.mxu0 0.0
      %2037 = vmatpush.msra.mxu0 0.0
      %2038 = vmatpush.msra.mxu0 0.0
      %2039 = vmatpush.msra.mxu0 0.0
      %2040 = vmatpush.msra.mxu0 %v2023
      %2041 = vmatmul.f32.gmra.mxu0 %v2021
      %v2042 = vpop.f32.mrf.mxu0
      %v2043 = vadd.f32 0.0, %v2042
      %2044 = vdwg.mxu0
      %v2045 = vadd.f32 %v2013, %v2043
      %v2047 = vadd.f32 %v2015, %v2019
      %s2048 = scalar_lea.vmem %s3, 36
      %v2049 = vld [vmem:[%s2048] sm:$0xf]
      %2050 = vrot.lane.b32.xlu0 %v1763, 119
      %v2051 = vpop.permute.xlu0 %2050
      %v2053 = vsel %vm1770, %v2049, 0
      %v2055 = vsel %vm1774, %v2051, 0
      %2057 = vmatpush.msra.mxu0 0.0
      %2058 = vmatpush.msra.mxu0 0.0
      %2059 = vmatpush.msra.mxu0 0.0
      %2060 = vmatpush.msra.mxu0 0.0
      %2061 = vmatpush.msra.mxu0 0.0
      %2062 = vmatpush.msra.mxu0 0.0
      %2063 = vmatpush.msra.mxu0 0.0
      %2064 = vmatpush.msra.mxu0 0.0
      %2065 = vmatpush.msra.mxu0 0.0
      %2066 = vmatpush.msra.mxu0 0.0
      %2067 = vmatpush.msra.mxu0 0.0
      %2068 = vmatpush.msra.mxu0 0.0
      %2069 = vmatpush.msra.mxu0 0.0
      %2070 = vmatpush.msra.mxu0 0.0
      %2071 = vmatpush.msra.mxu0 0.0
      %2072 = vmatpush.msra.mxu0 %v2055
      %2073 = vmatmul.f32.gmra.mxu0 %v2053
      %v2074 = vpop.f32.mrf.mxu0
      %v2075 = vadd.f32 0.0, %v2074
      %2076 = vdwg.mxu0
      %v2077 = vadd.f32 %v2045, %v2075
      %v2079 = vadd.f32 %v2047, %v2051
      %s2080 = scalar_lea.vmem %s3, 40
      %v2081 = vld [vmem:[%s2080] sm:$0xf]
      %2082 = vrot.lane.b32.xlu0 %v1763, 118
      %v2083 = vpop.permute.xlu0 %2082
      %v2085 = vsel %vm1770, %v2081, 0
      %v2087 = vsel %vm1774, %v2083, 0
      %2089 = vmatpush.msra.mxu0 0.0
      %2090 = vmatpush.msra.mxu0 0.0
      %2091 = vmatpush.msra.mxu0 0.0
      %2092 = vmatpush.msra.mxu0 0.0
      %2093 = vmatpush.msra.mxu0 0.0
      %2094 = vmatpush.msra.mxu0 0.0
      %2095 = vmatpush.msra.mxu0 0.0
      %2096 = vmatpush.msra.mxu0 0.0
      %2097 = vmatpush.msra.mxu0 0.0
      %2098 = vmatpush.msra.mxu0 0.0
      %2099 = vmatpush.msra.mxu0 0.0
      %2100 = vmatpush.msra.mxu0 0.0
      %2101 = vmatpush.msra.mxu0 0.0
      %2102 = vmatpush.msra.mxu0 0.0
      %2103 = vmatpush.msra.mxu0 0.0
      %2104 = vmatpush.msra.mxu0 %v2087
      %2105 = vmatmul.f32.gmra.mxu0 %v2085
      %v2106 = vpop.f32.mrf.mxu0
      %v2107 = vadd.f32 0.0, %v2106
      %2108 = vdwg.mxu0
      %v2109 = vadd.f32 %v2077, %v2107
      %v2111 = vadd.f32 %v2079, %v2083
      %s2112 = scalar_lea.vmem %s3, 44
      %v2113 = vld [vmem:[%s2112] sm:$0xf]
      %2114 = vrot.lane.b32.xlu0 %v1763, 117
      %v2115 = vpop.permute.xlu0 %2114
      %v2117 = vsel %vm1770, %v2113, 0
      %v2119 = vsel %vm1774, %v2115, 0
      %2121 = vmatpush.msra.mxu0 0.0
      %2122 = vmatpush.msra.mxu0 0.0
      %2123 = vmatpush.msra.mxu0 0.0
      %2124 = vmatpush.msra.mxu0 0.0
      %2125 = vmatpush.msra.mxu0 0.0
      %2126 = vmatpush.msra.mxu0 0.0
      %2127 = vmatpush.msra.mxu0 0.0
      %2128 = vmatpush.msra.mxu0 0.0
      %2129 = vmatpush.msra.mxu0 0.0
      %2130 = vmatpush.msra.mxu0 0.0
      %2131 = vmatpush.msra.mxu0 0.0
      %2132 = vmatpush.msra.mxu0 0.0
      %2133 = vmatpush.msra.mxu0 0.0
      %2134 = vmatpush.msra.mxu0 0.0
      %2135 = vmatpush.msra.mxu0 0.0
      %2136 = vmatpush.msra.mxu0 %v2119
      %2137 = vmatmul.f32.gmra.mxu0 %v2117
      %v2138 = vpop.f32.mrf.mxu0
      %v2139 = vadd.f32 0.0, %v2138
      %2140 = vdwg.mxu0
      %v2141 = vadd.f32 %v2109, %v2139
      %v2143 = vadd.f32 %v2111, %v2115
      %s2144 = scalar_lea.vmem %s3, 48
      %v2145 = vld [vmem:[%s2144] sm:$0xf]
      %2146 = vrot.lane.b32.xlu0 %v1763, 116
      %v2147 = vpop.permute.xlu0 %2146
      %v2149 = vsel %vm1770, %v2145, 0
      %v2151 = vsel %vm1774, %v2147, 0
      %2153 = vmatpush.msra.mxu0 0.0
      %2154 = vmatpush.msra.mxu0 0.0
      %2155 = vmatpush.msra.mxu0 0.0
      %2156 = vmatpush.msra.mxu0 0.0
      %2157 = vmatpush.msra.mxu0 0.0
      %2158 = vmatpush.msra.mxu0 0.0
      %2159 = vmatpush.msra.mxu0 0.0
      %2160 = vmatpush.msra.mxu0 0.0
      %2161 = vmatpush.msra.mxu0 0.0
      %2162 = vmatpush.msra.mxu0 0.0
      %2163 = vmatpush.msra.mxu0 0.0
      %2164 = vmatpush.msra.mxu0 0.0
      %2165 = vmatpush.msra.mxu0 0.0
      %2166 = vmatpush.msra.mxu0 0.0
      %2167 = vmatpush.msra.mxu0 0.0
      %2168 = vmatpush.msra.mxu0 %v2151
      %2169 = vmatmul.f32.gmra.mxu0 %v2149
      %v2170 = vpop.f32.mrf.mxu0
      %v2171 = vadd.f32 0.0, %v2170
      %2172 = vdwg.mxu0
      %v2173 = vadd.f32 %v2141, %v2171
      %v2175 = vadd.f32 %v2143, %v2147
      %s2176 = scalar_lea.vmem %s3, 52
      %v2177 = vld [vmem:[%s2176] sm:$0xf]
      %2178 = vrot.lane.b32.xlu0 %v1763, 115
      %v2179 = vpop.permute.xlu0 %2178
      %v2181 = vsel %vm1770, %v2177, 0
      %v2183 = vsel %vm1774, %v2179, 0
      %2185 = vmatpush.msra.mxu0 0.0
      %2186 = vmatpush.msra.mxu0 0.0
      %2187 = vmatpush.msra.mxu0 0.0
      %2188 = vmatpush.msra.mxu0 0.0
      %2189 = vmatpush.msra.mxu0 0.0
      %2190 = vmatpush.msra.mxu0 0.0
      %2191 = vmatpush.msra.mxu0 0.0
      %2192 = vmatpush.msra.mxu0 0.0
      %2193 = vmatpush.msra.mxu0 0.0
      %2194 = vmatpush.msra.mxu0 0.0
      %2195 = vmatpush.msra.mxu0 0.0
      %2196 = vmatpush.msra.mxu0 0.0
      %2197 = vmatpush.msra.mxu0 0.0
      %2198 = vmatpush.msra.mxu0 0.0
      %2199 = vmatpush.msra.mxu0 0.0
      %2200 = vmatpush.msra.mxu0 %v2183
      %2201 = vmatmul.f32.gmra.mxu0 %v2181
      %v2202 = vpop.f32.mrf.mxu0
      %v2203 = vadd.f32 0.0, %v2202
      %2204 = vdwg.mxu0
      %v2205 = vadd.f32 %v2173, %v2203
      %v2207 = vadd.f32 %v2175, %v2179
      %s2208 = scalar_lea.vmem %s3, 56
      %v2209 = vld [vmem:[%s2208] sm:$0xf]
      %2210 = vrot.lane.b32.xlu0 %v1763, 114
      %v2211 = vpop.permute.xlu0 %2210
      %v2213 = vsel %vm1770, %v2209, 0
      %v2215 = vsel %vm1774, %v2211, 0
      %2217 = vmatpush.msra.mxu0 0.0
      %2218 = vmatpush.msra.mxu0 0.0
      %2219 = vmatpush.msra.mxu0 0.0
      %2220 = vmatpush.msra.mxu0 0.0
      %2221 = vmatpush.msra.mxu0 0.0
      %2222 = vmatpush.msra.mxu0 0.0
      %2223 = vmatpush.msra.mxu0 0.0
      %2224 = vmatpush.msra.mxu0 0.0
      %2225 = vmatpush.msra.mxu0 0.0
      %2226 = vmatpush.msra.mxu0 0.0
      %2227 = vmatpush.msra.mxu0 0.0
      %2228 = vmatpush.msra.mxu0 0.0
      %2229 = vmatpush.msra.mxu0 0.0
      %2230 = vmatpush.msra.mxu0 0.0
      %2231 = vmatpush.msra.mxu0 0.0
      %2232 = vmatpush.msra.mxu0 %v2215
      %2233 = vmatmul.f32.gmra.mxu0 %v2213
      %v2234 = vpop.f32.mrf.mxu0
      %v2235 = vadd.f32 0.0, %v2234
      %2236 = vdwg.mxu0
      %v2237 = vadd.f32 %v2205, %v2235
      %v2239 = vadd.f32 %v2207, %v2211
      %s2240 = scalar_lea.vmem %s3, 60
      %v2241 = vld [vmem:[%s2240] sm:$0xf]
      %2242 = vrot.lane.b32.xlu0 %v1763, 113
      %v2243 = vpop.permute.xlu0 %2242
      %v2245 = vsel %vm1770, %v2241, 0
      %v2247 = vsel %vm1774, %v2243, 0
      %2249 = vmatpush.msra.mxu0 0.0
      %2250 = vmatpush.msra.mxu0 0.0
      %2251 = vmatpush.msra.mxu0 0.0
      %2252 = vmatpush.msra.mxu0 0.0
      %2253 = vmatpush.msra.mxu0 0.0
      %2254 = vmatpush.msra.mxu0 0.0
      %2255 = vmatpush.msra.mxu0 0.0
      %2256 = vmatpush.msra.mxu0 0.0
      %2257 = vmatpush.msra.mxu0 0.0
      %2258 = vmatpush.msra.mxu0 0.0
      %2259 = vmatpush.msra.mxu0 0.0
      %2260 = vmatpush.msra.mxu0 0.0
      %2261 = vmatpush.msra.mxu0 0.0
      %2262 = vmatpush.msra.mxu0 0.0
      %2263 = vmatpush.msra.mxu0 0.0
      %2264 = vmatpush.msra.mxu0 %v2247
      %2265 = vmatmul.f32.gmra.mxu0 %v2245
      %v2266 = vpop.f32.mrf.mxu0
      %v2267 = vadd.f32 0.0, %v2266
      %2268 = vdwg.mxu0
      %v2269 = vadd.f32 %v2237, %v2267
      %v2271 = vadd.f32 %v2239, %v2243
      %s2272 = scalar_lea.vmem %s3, 64
      %v2273 = vld [vmem:[%s2272] sm:$0xf]
      %2274 = vrot.lane.b32.xlu0 %v1763, 112
      %v2275 = vpop.permute.xlu0 %2274
      %v2277 = vsel %vm1770, %v2273, 0
      %v2279 = vsel %vm1774, %v2275, 0
      %2281 = vmatpush.msra.mxu0 0.0
      %2282 = vmatpush.msra.mxu0 0.0
      %2283 = vmatpush.msra.mxu0 0.0
      %2284 = vmatpush.msra.mxu0 0.0
      %2285 = vmatpush.msra.mxu0 0.0
      %2286 = vmatpush.msra.mxu0 0.0
      %2287 = vmatpush.msra.mxu0 0.0
      %2288 = vmatpush.msra.mxu0 0.0
      %2289 = vmatpush.msra.mxu0 0.0
      %2290 = vmatpush.msra.mxu0 0.0
      %2291 = vmatpush.msra.mxu0 0.0
      %2292 = vmatpush.msra.mxu0 0.0
      %2293 = vmatpush.msra.mxu0 0.0
      %2294 = vmatpush.msra.mxu0 0.0
      %2295 = vmatpush.msra.mxu0 0.0
      %2296 = vmatpush.msra.mxu0 %v2279
      %2297 = vmatmul.f32.gmra.mxu0 %v2277
      %v2298 = vpop.f32.mrf.mxu0
      %v2299 = vadd.f32 0.0, %v2298
      %2300 = vdwg.mxu0
      %v2301 = vadd.f32 %v2269, %v2299
      %v2303 = vadd.f32 %v2271, %v2275
      %s2304 = scalar_lea.vmem %s3, 68
      %v2305 = vld [vmem:[%s2304] sm:$0xf]
      %2306 = vrot.lane.b32.xlu0 %v1763, 111
      %v2307 = vpop.permute.xlu0 %2306
      %v2309 = vsel %vm1770, %v2305, 0
      %v2311 = vsel %vm1774, %v2307, 0
      %2313 = vmatpush.msra.mxu0 0.0
      %2314 = vmatpush.msra.mxu0 0.0
      %2315 = vmatpush.msra.mxu0 0.0
      %2316 = vmatpush.msra.mxu0 0.0
      %2317 = vmatpush.msra.mxu0 0.0
      %2318 = vmatpush.msra.mxu0 0.0
      %2319 = vmatpush.msra.mxu0 0.0
      %2320 = vmatpush.msra.mxu0 0.0
      %2321 = vmatpush.msra.mxu0 0.0
      %2322 = vmatpush.msra.mxu0 0.0
      %2323 = vmatpush.msra.mxu0 0.0
      %2324 = vmatpush.msra.mxu0 0.0
      %2325 = vmatpush.msra.mxu0 0.0
      %2326 = vmatpush.msra.mxu0 0.0
      %2327 = vmatpush.msra.mxu0 0.0
      %2328 = vmatpush.msra.mxu0 %v2311
      %2329 = vmatmul.f32.gmra.mxu0 %v2309
      %v2330 = vpop.f32.mrf.mxu0
      %v2331 = vadd.f32 0.0, %v2330
      %2332 = vdwg.mxu0
      %v2333 = vadd.f32 %v2301, %v2331
      %v2335 = vadd.f32 %v2303, %v2307
      %s2336 = scalar_lea.vmem %s3, 72
      %v2337 = vld [vmem:[%s2336] sm:$0xf]
      %2338 = vrot.lane.b32.xlu0 %v1763, 110
      %v2339 = vpop.permute.xlu0 %2338
      %v2341 = vsel %vm1770, %v2337, 0
      %v2343 = vsel %vm1774, %v2339, 0
      %2345 = vmatpush.msra.mxu0 0.0
      %2346 = vmatpush.msra.mxu0 0.0
      %2347 = vmatpush.msra.mxu0 0.0
      %2348 = vmatpush.msra.mxu0 0.0
      %2349 = vmatpush.msra.mxu0 0.0
      %2350 = vmatpush.msra.mxu0 0.0
      %2351 = vmatpush.msra.mxu0 0.0
      %2352 = vmatpush.msra.mxu0 0.0
      %2353 = vmatpush.msra.mxu0 0.0
      %2354 = vmatpush.msra.mxu0 0.0
      %2355 = vmatpush.msra.mxu0 0.0
      %2356 = vmatpush.msra.mxu0 0.0
      %2357 = vmatpush.msra.mxu0 0.0
      %2358 = vmatpush.msra.mxu0 0.0
      %2359 = vmatpush.msra.mxu0 0.0
      %2360 = vmatpush.msra.mxu0 %v2343
      %2361 = vmatmul.f32.gmra.mxu0 %v2341
      %v2362 = vpop.f32.mrf.mxu0
      %v2363 = vadd.f32 0.0, %v2362
      %2364 = vdwg.mxu0
      %v2365 = vadd.f32 %v2333, %v2363
      %v2367 = vadd.f32 %v2335, %v2339
      %s2368 = scalar_lea.vmem %s3, 76
      %v2369 = vld [vmem:[%s2368] sm:$0xf]
      %2370 = vrot.lane.b32.xlu0 %v1763, 109
      %v2371 = vpop.permute.xlu0 %2370
      %v2373 = vsel %vm1770, %v2369, 0
      %v2375 = vsel %vm1774, %v2371, 0
      %2377 = vmatpush.msra.mxu0 0.0
      %2378 = vmatpush.msra.mxu0 0.0
      %2379 = vmatpush.msra.mxu0 0.0
      %2380 = vmatpush.msra.mxu0 0.0
      %2381 = vmatpush.msra.mxu0 0.0
      %2382 = vmatpush.msra.mxu0 0.0
      %2383 = vmatpush.msra.mxu0 0.0
      %2384 = vmatpush.msra.mxu0 0.0
      %2385 = vmatpush.msra.mxu0 0.0
      %2386 = vmatpush.msra.mxu0 0.0
      %2387 = vmatpush.msra.mxu0 0.0
      %2388 = vmatpush.msra.mxu0 0.0
      %2389 = vmatpush.msra.mxu0 0.0
      %2390 = vmatpush.msra.mxu0 0.0
      %2391 = vmatpush.msra.mxu0 0.0
      %2392 = vmatpush.msra.mxu0 %v2375
      %2393 = vmatmul.f32.gmra.mxu0 %v2373
      %v2394 = vpop.f32.mrf.mxu0
      %v2395 = vadd.f32 0.0, %v2394
      %2396 = vdwg.mxu0
      %v2397 = vadd.f32 %v2365, %v2395
      %v2399 = vadd.f32 %v2367, %v2371
      %s2400 = scalar_lea.vmem %s3, 80
      %v2401 = vld [vmem:[%s2400] sm:$0xf]
      %2402 = vrot.lane.b32.xlu0 %v1763, 108
      %v2403 = vpop.permute.xlu0 %2402
      %v2405 = vsel %vm1770, %v2401, 0
      %v2407 = vsel %vm1774, %v2403, 0
      %2409 = vmatpush.msra.mxu0 0.0
      %2410 = vmatpush.msra.mxu0 0.0
      %2411 = vmatpush.msra.mxu0 0.0
      %2412 = vmatpush.msra.mxu0 0.0
      %2413 = vmatpush.msra.mxu0 0.0
      %2414 = vmatpush.msra.mxu0 0.0
      %2415 = vmatpush.msra.mxu0 0.0
      %2416 = vmatpush.msra.mxu0 0.0
      %2417 = vmatpush.msra.mxu0 0.0
      %2418 = vmatpush.msra.mxu0 0.0
      %2419 = vmatpush.msra.mxu0 0.0
      %2420 = vmatpush.msra.mxu0 0.0
      %2421 = vmatpush.msra.mxu0 0.0
      %2422 = vmatpush.msra.mxu0 0.0
      %2423 = vmatpush.msra.mxu0 0.0
      %2424 = vmatpush.msra.mxu0 %v2407
      %2425 = vmatmul.f32.gmra.mxu0 %v2405
      %v2426 = vpop.f32.mrf.mxu0
      %v2427 = vadd.f32 0.0, %v2426
      %2428 = vdwg.mxu0
      %v2429 = vadd.f32 %v2397, %v2427
      %v2431 = vadd.f32 %v2399, %v2403
      %s2432 = scalar_lea.vmem %s3, 84
      %v2433 = vld [vmem:[%s2432] sm:$0xf]
      %2434 = vrot.lane.b32.xlu0 %v1763, 107
      %v2435 = vpop.permute.xlu0 %2434
      %v2437 = vsel %vm1770, %v2433, 0
      %v2439 = vsel %vm1774, %v2435, 0
      %2441 = vmatpush.msra.mxu0 0.0
      %2442 = vmatpush.msra.mxu0 0.0
      %2443 = vmatpush.msra.mxu0 0.0
      %2444 = vmatpush.msra.mxu0 0.0
      %2445 = vmatpush.msra.mxu0 0.0
      %2446 = vmatpush.msra.mxu0 0.0
      %2447 = vmatpush.msra.mxu0 0.0
      %2448 = vmatpush.msra.mxu0 0.0
      %2449 = vmatpush.msra.mxu0 0.0
      %2450 = vmatpush.msra.mxu0 0.0
      %2451 = vmatpush.msra.mxu0 0.0
      %2452 = vmatpush.msra.mxu0 0.0
      %2453 = vmatpush.msra.mxu0 0.0
      %2454 = vmatpush.msra.mxu0 0.0
      %2455 = vmatpush.msra.mxu0 0.0
      %2456 = vmatpush.msra.mxu0 %v2439
      %2457 = vmatmul.f32.gmra.mxu0 %v2437
      %v2458 = vpop.f32.mrf.mxu0
      %v2459 = vadd.f32 0.0, %v2458
      %2460 = vdwg.mxu0
      %v2461 = vadd.f32 %v2429, %v2459
      %v2463 = vadd.f32 %v2431, %v2435
      %s2464 = scalar_lea.vmem %s3, 88
      %v2465 = vld [vmem:[%s2464] sm:$0xf]
      %2466 = vrot.lane.b32.xlu0 %v1763, 106
      %v2467 = vpop.permute.xlu0 %2466
      %v2469 = vsel %vm1770, %v2465, 0
      %v2471 = vsel %vm1774, %v2467, 0
      %2473 = vmatpush.msra.mxu0 0.0
      %2474 = vmatpush.msra.mxu0 0.0
      %2475 = vmatpush.msra.mxu0 0.0
      %2476 = vmatpush.msra.mxu0 0.0
      %2477 = vmatpush.msra.mxu0 0.0
      %2478 = vmatpush.msra.mxu0 0.0
      %2479 = vmatpush.msra.mxu0 0.0
      %2480 = vmatpush.msra.mxu0 0.0
      %2481 = vmatpush.msra.mxu0 0.0
      %2482 = vmatpush.msra.mxu0 0.0
      %2483 = vmatpush.msra.mxu0 0.0
      %2484 = vmatpush.msra.mxu0 0.0
      %2485 = vmatpush.msra.mxu0 0.0
      %2486 = vmatpush.msra.mxu0 0.0
      %2487 = vmatpush.msra.mxu0 0.0
      %2488 = vmatpush.msra.mxu0 %v2471
      %2489 = vmatmul.f32.gmra.mxu0 %v2469
      %v2490 = vpop.f32.mrf.mxu0
      %v2491 = vadd.f32 0.0, %v2490
      %2492 = vdwg.mxu0
      %v2493 = vadd.f32 %v2461, %v2491
      %v2495 = vadd.f32 %v2463, %v2467
      %s2496 = scalar_lea.vmem %s3, 92
      %v2497 = vld [vmem:[%s2496] sm:$0xf]
      %2498 = vrot.lane.b32.xlu0 %v1763, 105
      %v2499 = vpop.permute.xlu0 %2498
      %v2501 = vsel %vm1770, %v2497, 0
      %v2503 = vsel %vm1774, %v2499, 0
      %2505 = vmatpush.msra.mxu0 0.0
      %2506 = vmatpush.msra.mxu0 0.0
      %2507 = vmatpush.msra.mxu0 0.0
      %2508 = vmatpush.msra.mxu0 0.0
      %2509 = vmatpush.msra.mxu0 0.0
      %2510 = vmatpush.msra.mxu0 0.0
      %2511 = vmatpush.msra.mxu0 0.0
      %2512 = vmatpush.msra.mxu0 0.0
      %2513 = vmatpush.msra.mxu0 0.0
      %2514 = vmatpush.msra.mxu0 0.0
      %2515 = vmatpush.msra.mxu0 0.0
      %2516 = vmatpush.msra.mxu0 0.0
      %2517 = vmatpush.msra.mxu0 0.0
      %2518 = vmatpush.msra.mxu0 0.0
      %2519 = vmatpush.msra.mxu0 0.0
      %2520 = vmatpush.msra.mxu0 %v2503
      %2521 = vmatmul.f32.gmra.mxu0 %v2501
      %v2522 = vpop.f32.mrf.mxu0
      %v2523 = vadd.f32 0.0, %v2522
      %2524 = vdwg.mxu0
      %v2525 = vadd.f32 %v2493, %v2523
      %v2527 = vadd.f32 %v2495, %v2499
      %s2528 = scalar_lea.vmem %s3, 96
      %v2529 = vld [vmem:[%s2528] sm:$0xf]
      %2530 = vrot.lane.b32.xlu0 %v1763, 104
      %v2531 = vpop.permute.xlu0 %2530
      %v2533 = vsel %vm1770, %v2529, 0
      %v2535 = vsel %vm1774, %v2531, 0
      %2537 = vmatpush.msra.mxu0 0.0
      %2538 = vmatpush.msra.mxu0 0.0
      %2539 = vmatpush.msra.mxu0 0.0
      %2540 = vmatpush.msra.mxu0 0.0
      %2541 = vmatpush.msra.mxu0 0.0
      %2542 = vmatpush.msra.mxu0 0.0
      %2543 = vmatpush.msra.mxu0 0.0
      %2544 = vmatpush.msra.mxu0 0.0
      %2545 = vmatpush.msra.mxu0 0.0
      %2546 = vmatpush.msra.mxu0 0.0
      %2547 = vmatpush.msra.mxu0 0.0
      %2548 = vmatpush.msra.mxu0 0.0
      %2549 = vmatpush.msra.mxu0 0.0
      %2550 = vmatpush.msra.mxu0 0.0
      %2551 = vmatpush.msra.mxu0 0.0
      %2552 = vmatpush.msra.mxu0 %v2535
      %2553 = vmatmul.f32.gmra.mxu0 %v2533
      %v2554 = vpop.f32.mrf.mxu0
      %v2555 = vadd.f32 0.0, %v2554
      %2556 = vdwg.mxu0
      %v2557 = vadd.f32 %v2525, %v2555
      %v2559 = vadd.f32 %v2527, %v2531
      %s2560 = scalar_lea.vmem %s3, 100
      %v2561 = vld [vmem:[%s2560] sm:$0xf]
      %2562 = vrot.lane.b32.xlu0 %v1763, 103
      %v2563 = vpop.permute.xlu0 %2562
      %v2565 = vsel %vm1770, %v2561, 0
      %v2567 = vsel %vm1774, %v2563, 0
      %2569 = vmatpush.msra.mxu0 0.0
      %2570 = vmatpush.msra.mxu0 0.0
      %2571 = vmatpush.msra.mxu0 0.0
      %2572 = vmatpush.msra.mxu0 0.0
      %2573 = vmatpush.msra.mxu0 0.0
      %2574 = vmatpush.msra.mxu0 0.0
      %2575 = vmatpush.msra.mxu0 0.0
      %2576 = vmatpush.msra.mxu0 0.0
      %2577 = vmatpush.msra.mxu0 0.0
      %2578 = vmatpush.msra.mxu0 0.0
      %2579 = vmatpush.msra.mxu0 0.0
      %2580 = vmatpush.msra.mxu0 0.0
      %2581 = vmatpush.msra.mxu0 0.0
      %2582 = vmatpush.msra.mxu0 0.0
      %2583 = vmatpush.msra.mxu0 0.0
      %2584 = vmatpush.msra.mxu0 %v2567
      %2585 = vmatmul.f32.gmra.mxu0 %v2565
      %v2586 = vpop.f32.mrf.mxu0
      %v2587 = vadd.f32 0.0, %v2586
      %2588 = vdwg.mxu0
      %v2589 = vadd.f32 %v2557, %v2587
      %v2591 = vadd.f32 %v2559, %v2563
      %s2592 = scalar_lea.vmem %s3, 104
      %v2593 = vld [vmem:[%s2592] sm:$0xf]
      %2594 = vrot.lane.b32.xlu0 %v1763, 102
      %v2595 = vpop.permute.xlu0 %2594
      %v2597 = vsel %vm1770, %v2593, 0
      %v2599 = vsel %vm1774, %v2595, 0
      %2601 = vmatpush.msra.mxu0 0.0
      %2602 = vmatpush.msra.mxu0 0.0
      %2603 = vmatpush.msra.mxu0 0.0
      %2604 = vmatpush.msra.mxu0 0.0
      %2605 = vmatpush.msra.mxu0 0.0
      %2606 = vmatpush.msra.mxu0 0.0
      %2607 = vmatpush.msra.mxu0 0.0
      %2608 = vmatpush.msra.mxu0 0.0
      %2609 = vmatpush.msra.mxu0 0.0
      %2610 = vmatpush.msra.mxu0 0.0
      %2611 = vmatpush.msra.mxu0 0.0
      %2612 = vmatpush.msra.mxu0 0.0
      %2613 = vmatpush.msra.mxu0 0.0
      %2614 = vmatpush.msra.mxu0 0.0
      %2615 = vmatpush.msra.mxu0 0.0
      %2616 = vmatpush.msra.mxu0 %v2599
      %2617 = vmatmul.f32.gmra.mxu0 %v2597
      %v2618 = vpop.f32.mrf.mxu0
      %v2619 = vadd.f32 0.0, %v2618
      %2620 = vdwg.mxu0
      %v2621 = vadd.f32 %v2589, %v2619
      %v2623 = vadd.f32 %v2591, %v2595
      %s2624 = scalar_lea.vmem %s3, 108
      %v2625 = vld [vmem:[%s2624] sm:$0xf]
      %2626 = vrot.lane.b32.xlu0 %v1763, 101
      %v2627 = vpop.permute.xlu0 %2626
      %v2629 = vsel %vm1770, %v2625, 0
      %v2631 = vsel %vm1774, %v2627, 0
      %2633 = vmatpush.msra.mxu0 0.0
      %2634 = vmatpush.msra.mxu0 0.0
      %2635 = vmatpush.msra.mxu0 0.0
      %2636 = vmatpush.msra.mxu0 0.0
      %2637 = vmatpush.msra.mxu0 0.0
      %2638 = vmatpush.msra.mxu0 0.0
      %2639 = vmatpush.msra.mxu0 0.0
      %2640 = vmatpush.msra.mxu0 0.0
      %2641 = vmatpush.msra.mxu0 0.0
      %2642 = vmatpush.msra.mxu0 0.0
      %2643 = vmatpush.msra.mxu0 0.0
      %2644 = vmatpush.msra.mxu0 0.0
      %2645 = vmatpush.msra.mxu0 0.0
      %2646 = vmatpush.msra.mxu0 0.0
      %2647 = vmatpush.msra.mxu0 0.0
      %2648 = vmatpush.msra.mxu0 %v2631
      %2649 = vmatmul.f32.gmra.mxu0 %v2629
      %v2650 = vpop.f32.mrf.mxu0
      %v2651 = vadd.f32 0.0, %v2650
      %2652 = vdwg.mxu0
      %v2653 = vadd.f32 %v2621, %v2651
      %v2655 = vadd.f32 %v2623, %v2627
      %s2656 = scalar_lea.vmem %s3, 112
      %v2657 = vld [vmem:[%s2656] sm:$0xf]
      %2658 = vrot.lane.b32.xlu0 %v1763, 100
      %v2659 = vpop.permute.xlu0 %2658
      %v2661 = vsel %vm1770, %v2657, 0
      %v2663 = vsel %vm1774, %v2659, 0
      %2665 = vmatpush.msra.mxu0 0.0
      %2666 = vmatpush.msra.mxu0 0.0
      %2667 = vmatpush.msra.mxu0 0.0
      %2668 = vmatpush.msra.mxu0 0.0
      %2669 = vmatpush.msra.mxu0 0.0
      %2670 = vmatpush.msra.mxu0 0.0
      %2671 = vmatpush.msra.mxu0 0.0
      %2672 = vmatpush.msra.mxu0 0.0
      %2673 = vmatpush.msra.mxu0 0.0
      %2674 = vmatpush.msra.mxu0 0.0
      %2675 = vmatpush.msra.mxu0 0.0
      %2676 = vmatpush.msra.mxu0 0.0
      %2677 = vmatpush.msra.mxu0 0.0
      %2678 = vmatpush.msra.mxu0 0.0
      %2679 = vmatpush.msra.mxu0 0.0
      %2680 = vmatpush.msra.mxu0 %v2663
      %2681 = vmatmul.f32.gmra.mxu0 %v2661
      %v2682 = vpop.f32.mrf.mxu0
      %v2683 = vadd.f32 0.0, %v2682
      %2684 = vdwg.mxu0
      %v2685 = vadd.f32 %v2653, %v2683
      %v2687 = vadd.f32 %v2655, %v2659
      %s2688 = scalar_lea.vmem %s3, 116
      %v2689 = vld [vmem:[%s2688] sm:$0xf]
      %2690 = vrot.lane.b32.xlu0 %v1763, 99
      %v2691 = vpop.permute.xlu0 %2690
      %v2693 = vsel %vm1770, %v2689, 0
      %v2695 = vsel %vm1774, %v2691, 0
      %2697 = vmatpush.msra.mxu0 0.0
      %2698 = vmatpush.msra.mxu0 0.0
      %2699 = vmatpush.msra.mxu0 0.0
      %2700 = vmatpush.msra.mxu0 0.0
      %2701 = vmatpush.msra.mxu0 0.0
      %2702 = vmatpush.msra.mxu0 0.0
      %2703 = vmatpush.msra.mxu0 0.0
      %2704 = vmatpush.msra.mxu0 0.0
      %2705 = vmatpush.msra.mxu0 0.0
      %2706 = vmatpush.msra.mxu0 0.0
      %2707 = vmatpush.msra.mxu0 0.0
      %2708 = vmatpush.msra.mxu0 0.0
      %2709 = vmatpush.msra.mxu0 0.0
      %2710 = vmatpush.msra.mxu0 0.0
      %2711 = vmatpush.msra.mxu0 0.0
      %2712 = vmatpush.msra.mxu0 %v2695
      %2713 = vmatmul.f32.gmra.mxu0 %v2693
      %v2714 = vpop.f32.mrf.mxu0
      %v2715 = vadd.f32 0.0, %v2714
      %2716 = vdwg.mxu0
      %v2717 = vadd.f32 %v2685, %v2715
      %v2719 = vadd.f32 %v2687, %v2691
      %s2720 = scalar_lea.vmem %s3, 120
      %v2721 = vld [vmem:[%s2720] sm:$0xf]
      %2722 = vrot.lane.b32.xlu0 %v1763, 98
      %v2723 = vpop.permute.xlu0 %2722
      %v2725 = vsel %vm1770, %v2721, 0
      %v2727 = vsel %vm1774, %v2723, 0
      %2729 = vmatpush.msra.mxu0 0.0
      %2730 = vmatpush.msra.mxu0 0.0
      %2731 = vmatpush.msra.mxu0 0.0
      %2732 = vmatpush.msra.mxu0 0.0
      %2733 = vmatpush.msra.mxu0 0.0
      %2734 = vmatpush.msra.mxu0 0.0
      %2735 = vmatpush.msra.mxu0 0.0
      %2736 = vmatpush.msra.mxu0 0.0
      %2737 = vmatpush.msra.mxu0 0.0
      %2738 = vmatpush.msra.mxu0 0.0
      %2739 = vmatpush.msra.mxu0 0.0
      %2740 = vmatpush.msra.mxu0 0.0
      %2741 = vmatpush.msra.mxu0 0.0
      %2742 = vmatpush.msra.mxu0 0.0
      %2743 = vmatpush.msra.mxu0 0.0
      %2744 = vmatpush.msra.mxu0 %v2727
      %2745 = vmatmul.f32.gmra.mxu0 %v2725
      %v2746 = vpop.f32.mrf.mxu0
      %v2747 = vadd.f32 0.0, %v2746
      %2748 = vdwg.mxu0
      %v2749 = vadd.f32 %v2717, %v2747
      %v2751 = vadd.f32 %v2719, %v2723
      %s2752 = scalar_lea.vmem %s3, 124
      %v2753 = vld [vmem:[%s2752] sm:$0xf]
      %2754 = vrot.lane.b32.xlu0 %v1763, 97
      %v2755 = vpop.permute.xlu0 %2754
      %v2757 = vsel %vm1770, %v2753, 0
      %v2759 = vsel %vm1774, %v2755, 0
      %2761 = vmatpush.msra.mxu0 0.0
      %2762 = vmatpush.msra.mxu0 0.0
      %2763 = vmatpush.msra.mxu0 0.0
      %2764 = vmatpush.msra.mxu0 0.0
      %2765 = vmatpush.msra.mxu0 0.0
      %2766 = vmatpush.msra.mxu0 0.0
      %2767 = vmatpush.msra.mxu0 0.0
      %2768 = vmatpush.msra.mxu0 0.0
      %2769 = vmatpush.msra.mxu0 0.0
      %2770 = vmatpush.msra.mxu0 0.0
      %2771 = vmatpush.msra.mxu0 0.0
      %2772 = vmatpush.msra.mxu0 0.0
      %2773 = vmatpush.msra.mxu0 0.0
      %2774 = vmatpush.msra.mxu0 0.0
      %2775 = vmatpush.msra.mxu0 0.0
      %2776 = vmatpush.msra.mxu0 %v2759
      %2777 = vmatmul.f32.gmra.mxu0 %v2757
      %v2778 = vpop.f32.mrf.mxu0
      %v2779 = vadd.f32 0.0, %v2778
      %2780 = vdwg.mxu0
      %v2781 = vadd.f32 %v2749, %v2779
      %v2783 = vadd.f32 %v2751, %v2755
      %s2784 = scalar_lea.vmem %s3, 128
      %v2785 = vld [vmem:[%s2784] sm:$0xf]
      %2786 = vrot.lane.b32.xlu0 %v1763, 96
      %v2787 = vpop.permute.xlu0 %2786
      %v2789 = vsel %vm1770, %v2785, 0
      %v2791 = vsel %vm1774, %v2787, 0
      %2793 = vmatpush.msra.mxu0 0.0
      %2794 = vmatpush.msra.mxu0 0.0
      %2795 = vmatpush.msra.mxu0 0.0
      %2796 = vmatpush.msra.mxu0 0.0
      %2797 = vmatpush.msra.mxu0 0.0
      %2798 = vmatpush.msra.mxu0 0.0
      %2799 = vmatpush.msra.mxu0 0.0
      %2800 = vmatpush.msra.mxu0 0.0
      %2801 = vmatpush.msra.mxu0 0.0
      %2802 = vmatpush.msra.mxu0 0.0
      %2803 = vmatpush.msra.mxu0 0.0
      %2804 = vmatpush.msra.mxu0 0.0
      %2805 = vmatpush.msra.mxu0 0.0
      %2806 = vmatpush.msra.mxu0 0.0
      %2807 = vmatpush.msra.mxu0 0.0
      %2808 = vmatpush.msra.mxu0 %v2791
      %2809 = vmatmul.f32.gmra.mxu0 %v2789
      %v2810 = vpop.f32.mrf.mxu0
      %v2811 = vadd.f32 0.0, %v2810
      %2812 = vdwg.mxu0
      %v2813 = vadd.f32 %v2781, %v2811
      %v2815 = vadd.f32 %v2783, %v2787
      %s2816 = scalar_lea.vmem %s3, 132
      %v2817 = vld [vmem:[%s2816] sm:$0xf]
      %2818 = vrot.lane.b32.xlu0 %v1763, 95
      %v2819 = vpop.permute.xlu0 %2818
      %v2821 = vsel %vm1770, %v2817, 0
      %v2823 = vsel %vm1774, %v2819, 0
      %2825 = vmatpush.msra.mxu0 0.0
      %2826 = vmatpush.msra.mxu0 0.0
      %2827 = vmatpush.msra.mxu0 0.0
      %2828 = vmatpush.msra.mxu0 0.0
      %2829 = vmatpush.msra.mxu0 0.0
      %2830 = vmatpush.msra.mxu0 0.0
      %2831 = vmatpush.msra.mxu0 0.0
      %2832 = vmatpush.msra.mxu0 0.0
      %2833 = vmatpush.msra.mxu0 0.0
      %2834 = vmatpush.msra.mxu0 0.0
      %2835 = vmatpush.msra.mxu0 0.0
      %2836 = vmatpush.msra.mxu0 0.0
      %2837 = vmatpush.msra.mxu0 0.0
      %2838 = vmatpush.msra.mxu0 0.0
      %2839 = vmatpush.msra.mxu0 0.0
      %2840 = vmatpush.msra.mxu0 %v2823
      %2841 = vmatmul.f32.gmra.mxu0 %v2821
      %v2842 = vpop.f32.mrf.mxu0
      %v2843 = vadd.f32 0.0, %v2842
      %2844 = vdwg.mxu0
      %v2845 = vadd.f32 %v2813, %v2843
      %v2847 = vadd.f32 %v2815, %v2819
      %s2848 = scalar_lea.vmem %s3, 136
      %v2849 = vld [vmem:[%s2848] sm:$0xf]
      %2850 = vrot.lane.b32.xlu0 %v1763, 94
      %v2851 = vpop.permute.xlu0 %2850
      %v2853 = vsel %vm1770, %v2849, 0
      %v2855 = vsel %vm1774, %v2851, 0
      %2857 = vmatpush.msra.mxu0 0.0
      %2858 = vmatpush.msra.mxu0 0.0
      %2859 = vmatpush.msra.mxu0 0.0
      %2860 = vmatpush.msra.mxu0 0.0
      %2861 = vmatpush.msra.mxu0 0.0
      %2862 = vmatpush.msra.mxu0 0.0
      %2863 = vmatpush.msra.mxu0 0.0
      %2864 = vmatpush.msra.mxu0 0.0
      %2865 = vmatpush.msra.mxu0 0.0
      %2866 = vmatpush.msra.mxu0 0.0
      %2867 = vmatpush.msra.mxu0 0.0
      %2868 = vmatpush.msra.mxu0 0.0
      %2869 = vmatpush.msra.mxu0 0.0
      %2870 = vmatpush.msra.mxu0 0.0
      %2871 = vmatpush.msra.mxu0 0.0
      %2872 = vmatpush.msra.mxu0 %v2855
      %2873 = vmatmul.f32.gmra.mxu0 %v2853
      %v2874 = vpop.f32.mrf.mxu0
      %v2875 = vadd.f32 0.0, %v2874
      %2876 = vdwg.mxu0
      %v2877 = vadd.f32 %v2845, %v2875
      %v2879 = vadd.f32 %v2847, %v2851
      %s2880 = scalar_lea.vmem %s3, 140
      %v2881 = vld [vmem:[%s2880] sm:$0xf]
      %2882 = vrot.lane.b32.xlu0 %v1763, 93
      %v2883 = vpop.permute.xlu0 %2882
      %v2885 = vsel %vm1770, %v2881, 0
      %v2887 = vsel %vm1774, %v2883, 0
      %2889 = vmatpush.msra.mxu0 0.0
      %2890 = vmatpush.msra.mxu0 0.0
      %2891 = vmatpush.msra.mxu0 0.0
      %2892 = vmatpush.msra.mxu0 0.0
      %2893 = vmatpush.msra.mxu0 0.0
      %2894 = vmatpush.msra.mxu0 0.0
      %2895 = vmatpush.msra.mxu0 0.0
      %2896 = vmatpush.msra.mxu0 0.0
      %2897 = vmatpush.msra.mxu0 0.0
      %2898 = vmatpush.msra.mxu0 0.0
      %2899 = vmatpush.msra.mxu0 0.0
      %2900 = vmatpush.msra.mxu0 0.0
      %2901 = vmatpush.msra.mxu0 0.0
      %2902 = vmatpush.msra.mxu0 0.0
      %2903 = vmatpush.msra.mxu0 0.0
      %2904 = vmatpush.msra.mxu0 %v2887
      %2905 = vmatmul.f32.gmra.mxu0 %v2885
      %v2906 = vpop.f32.mrf.mxu0
      %v2907 = vadd.f32 0.0, %v2906
      %2908 = vdwg.mxu0
      %v2909 = vadd.f32 %v2877, %v2907
      %v2911 = vadd.f32 %v2879, %v2883
      %s2912 = scalar_lea.vmem %s3, 144
      %v2913 = vld [vmem:[%s2912] sm:$0xf]
      %2914 = vrot.lane.b32.xlu0 %v1763, 92
      %v2915 = vpop.permute.xlu0 %2914
      %v2917 = vsel %vm1770, %v2913, 0
      %v2919 = vsel %vm1774, %v2915, 0
      %2921 = vmatpush.msra.mxu0 0.0
      %2922 = vmatpush.msra.mxu0 0.0
      %2923 = vmatpush.msra.mxu0 0.0
      %2924 = vmatpush.msra.mxu0 0.0
      %2925 = vmatpush.msra.mxu0 0.0
      %2926 = vmatpush.msra.mxu0 0.0
      %2927 = vmatpush.msra.mxu0 0.0
      %2928 = vmatpush.msra.mxu0 0.0
      %2929 = vmatpush.msra.mxu0 0.0
      %2930 = vmatpush.msra.mxu0 0.0
      %2931 = vmatpush.msra.mxu0 0.0
      %2932 = vmatpush.msra.mxu0 0.0
      %2933 = vmatpush.msra.mxu0 0.0
      %2934 = vmatpush.msra.mxu0 0.0
      %2935 = vmatpush.msra.mxu0 0.0
      %2936 = vmatpush.msra.mxu0 %v2919
      %2937 = vmatmul.f32.gmra.mxu0 %v2917
      %v2938 = vpop.f32.mrf.mxu0
      %v2939 = vadd.f32 0.0, %v2938
      %2940 = vdwg.mxu0
      %v2941 = vadd.f32 %v2909, %v2939
      %v2943 = vadd.f32 %v2911, %v2915
      %s2944 = scalar_lea.vmem %s3, 148
      %v2945 = vld [vmem:[%s2944] sm:$0xf]
      %2946 = vrot.lane.b32.xlu0 %v1763, 91
      %v2947 = vpop.permute.xlu0 %2946
      %v2949 = vsel %vm1770, %v2945, 0
      %v2951 = vsel %vm1774, %v2947, 0
      %2953 = vmatpush.msra.mxu0 0.0
      %2954 = vmatpush.msra.mxu0 0.0
      %2955 = vmatpush.msra.mxu0 0.0
      %2956 = vmatpush.msra.mxu0 0.0
      %2957 = vmatpush.msra.mxu0 0.0
      %2958 = vmatpush.msra.mxu0 0.0
      %2959 = vmatpush.msra.mxu0 0.0
      %2960 = vmatpush.msra.mxu0 0.0
      %2961 = vmatpush.msra.mxu0 0.0
      %2962 = vmatpush.msra.mxu0 0.0
      %2963 = vmatpush.msra.mxu0 0.0
      %2964 = vmatpush.msra.mxu0 0.0
      %2965 = vmatpush.msra.mxu0 0.0
      %2966 = vmatpush.msra.mxu0 0.0
      %2967 = vmatpush.msra.mxu0 0.0
      %2968 = vmatpush.msra.mxu0 %v2951
      %2969 = vmatmul.f32.gmra.mxu0 %v2949
      %v2970 = vpop.f32.mrf.mxu0
      %v2971 = vadd.f32 0.0, %v2970
      %2972 = vdwg.mxu0
      %v2973 = vadd.f32 %v2941, %v2971
      %v2975 = vadd.f32 %v2943, %v2947
      %s2976 = scalar_lea.vmem %s3, 152
      %v2977 = vld [vmem:[%s2976] sm:$0xf]
      %2978 = vrot.lane.b32.xlu0 %v1763, 90
      %v2979 = vpop.permute.xlu0 %2978
      %v2981 = vsel %vm1770, %v2977, 0
      %v2983 = vsel %vm1774, %v2979, 0
      %2985 = vmatpush.msra.mxu0 0.0
      %2986 = vmatpush.msra.mxu0 0.0
      %2987 = vmatpush.msra.mxu0 0.0
      %2988 = vmatpush.msra.mxu0 0.0
      %2989 = vmatpush.msra.mxu0 0.0
      %2990 = vmatpush.msra.mxu0 0.0
      %2991 = vmatpush.msra.mxu0 0.0
      %2992 = vmatpush.msra.mxu0 0.0
      %2993 = vmatpush.msra.mxu0 0.0
      %2994 = vmatpush.msra.mxu0 0.0
      %2995 = vmatpush.msra.mxu0 0.0
      %2996 = vmatpush.msra.mxu0 0.0
      %2997 = vmatpush.msra.mxu0 0.0
      %2998 = vmatpush.msra.mxu0 0.0
      %2999 = vmatpush.msra.mxu0 0.0
      %3000 = vmatpush.msra.mxu0 %v2983
      %3001 = vmatmul.f32.gmra.mxu0 %v2981
      %v3002 = vpop.f32.mrf.mxu0
      %v3003 = vadd.f32 0.0, %v3002
      %3004 = vdwg.mxu0
      %v3005 = vadd.f32 %v2973, %v3003
      %v3007 = vadd.f32 %v2975, %v2979
      %s3008 = scalar_lea.vmem %s3, 156
      %v3009 = vld [vmem:[%s3008] sm:$0xf]
      %3010 = vrot.lane.b32.xlu0 %v1763, 89
      %v3011 = vpop.permute.xlu0 %3010
      %v3013 = vsel %vm1770, %v3009, 0
      %v3015 = vsel %vm1774, %v3011, 0
      %3017 = vmatpush.msra.mxu0 0.0
      %3018 = vmatpush.msra.mxu0 0.0
      %3019 = vmatpush.msra.mxu0 0.0
      %3020 = vmatpush.msra.mxu0 0.0
      %3021 = vmatpush.msra.mxu0 0.0
      %3022 = vmatpush.msra.mxu0 0.0
      %3023 = vmatpush.msra.mxu0 0.0
      %3024 = vmatpush.msra.mxu0 0.0
      %3025 = vmatpush.msra.mxu0 0.0
      %3026 = vmatpush.msra.mxu0 0.0
      %3027 = vmatpush.msra.mxu0 0.0
      %3028 = vmatpush.msra.mxu0 0.0
      %3029 = vmatpush.msra.mxu0 0.0
      %3030 = vmatpush.msra.mxu0 0.0
      %3031 = vmatpush.msra.mxu0 0.0
      %3032 = vmatpush.msra.mxu0 %v3015
      %3033 = vmatmul.f32.gmra.mxu0 %v3013
      %v3034 = vpop.f32.mrf.mxu0
      %v3035 = vadd.f32 0.0, %v3034
      %3036 = vdwg.mxu0
      %v3037 = vadd.f32 %v3005, %v3035
      %v3039 = vadd.f32 %v3007, %v3011
      %s3040 = scalar_lea.vmem %s3, 160
      %v3041 = vld [vmem:[%s3040] sm:$0xf]
      %3042 = vrot.lane.b32.xlu0 %v1763, 88
      %v3043 = vpop.permute.xlu0 %3042
      %v3045 = vsel %vm1770, %v3041, 0
      %v3047 = vsel %vm1774, %v3043, 0
      %3049 = vmatpush.msra.mxu0 0.0
      %3050 = vmatpush.msra.mxu0 0.0
      %3051 = vmatpush.msra.mxu0 0.0
      %3052 = vmatpush.msra.mxu0 0.0
      %3053 = vmatpush.msra.mxu0 0.0
      %3054 = vmatpush.msra.mxu0 0.0
      %3055 = vmatpush.msra.mxu0 0.0
      %3056 = vmatpush.msra.mxu0 0.0
      %3057 = vmatpush.msra.mxu0 0.0
      %3058 = vmatpush.msra.mxu0 0.0
      %3059 = vmatpush.msra.mxu0 0.0
      %3060 = vmatpush.msra.mxu0 0.0
      %3061 = vmatpush.msra.mxu0 0.0
      %3062 = vmatpush.msra.mxu0 0.0
      %3063 = vmatpush.msra.mxu0 0.0
      %3064 = vmatpush.msra.mxu0 %v3047
      %3065 = vmatmul.f32.gmra.mxu0 %v3045
      %v3066 = vpop.f32.mrf.mxu0
      %v3067 = vadd.f32 0.0, %v3066
      %3068 = vdwg.mxu0
      %v3069 = vadd.f32 %v3037, %v3067
      %v3071 = vadd.f32 %v3039, %v3043
      %s3072 = scalar_lea.vmem %s3, 164
      %v3073 = vld [vmem:[%s3072] sm:$0xf]
      %3074 = vrot.lane.b32.xlu0 %v1763, 87
      %v3075 = vpop.permute.xlu0 %3074
      %v3077 = vsel %vm1770, %v3073, 0
      %v3079 = vsel %vm1774, %v3075, 0
      %3081 = vmatpush.msra.mxu0 0.0
      %3082 = vmatpush.msra.mxu0 0.0
      %3083 = vmatpush.msra.mxu0 0.0
      %3084 = vmatpush.msra.mxu0 0.0
      %3085 = vmatpush.msra.mxu0 0.0
      %3086 = vmatpush.msra.mxu0 0.0
      %3087 = vmatpush.msra.mxu0 0.0
      %3088 = vmatpush.msra.mxu0 0.0
      %3089 = vmatpush.msra.mxu0 0.0
      %3090 = vmatpush.msra.mxu0 0.0
      %3091 = vmatpush.msra.mxu0 0.0
      %3092 = vmatpush.msra.mxu0 0.0
      %3093 = vmatpush.msra.mxu0 0.0
      %3094 = vmatpush.msra.mxu0 0.0
      %3095 = vmatpush.msra.mxu0 0.0
      %3096 = vmatpush.msra.mxu0 %v3079
      %3097 = vmatmul.f32.gmra.mxu0 %v3077
      %v3098 = vpop.f32.mrf.mxu0
      %v3099 = vadd.f32 0.0, %v3098
      %3100 = vdwg.mxu0
      %v3101 = vadd.f32 %v3069, %v3099
      %v3103 = vadd.f32 %v3071, %v3075
      %s3104 = scalar_lea.vmem %s3, 168
      %v3105 = vld [vmem:[%s3104] sm:$0xf]
      %3106 = vrot.lane.b32.xlu0 %v1763, 86
      %v3107 = vpop.permute.xlu0 %3106
      %v3109 = vsel %vm1770, %v3105, 0
      %v3111 = vsel %vm1774, %v3107, 0
      %3113 = vmatpush.msra.mxu0 0.0
      %3114 = vmatpush.msra.mxu0 0.0
      %3115 = vmatpush.msra.mxu0 0.0
      %3116 = vmatpush.msra.mxu0 0.0
      %3117 = vmatpush.msra.mxu0 0.0
      %3118 = vmatpush.msra.mxu0 0.0
      %3119 = vmatpush.msra.mxu0 0.0
      %3120 = vmatpush.msra.mxu0 0.0
      %3121 = vmatpush.msra.mxu0 0.0
      %3122 = vmatpush.msra.mxu0 0.0
      %3123 = vmatpush.msra.mxu0 0.0
      %3124 = vmatpush.msra.mxu0 0.0
      %3125 = vmatpush.msra.mxu0 0.0
      %3126 = vmatpush.msra.mxu0 0.0
      %3127 = vmatpush.msra.mxu0 0.0
      %3128 = vmatpush.msra.mxu0 %v3111
      %3129 = vmatmul.f32.gmra.mxu0 %v3109
      %v3130 = vpop.f32.mrf.mxu0
      %v3131 = vadd.f32 0.0, %v3130
      %3132 = vdwg.mxu0
      %v3133 = vadd.f32 %v3101, %v3131
      %v3135 = vadd.f32 %v3103, %v3107
      %s3136 = scalar_lea.vmem %s3, 172
      %v3137 = vld [vmem:[%s3136] sm:$0xf]
      %3138 = vrot.lane.b32.xlu0 %v1763, 85
      %v3139 = vpop.permute.xlu0 %3138
      %v3141 = vsel %vm1770, %v3137, 0
      %v3143 = vsel %vm1774, %v3139, 0
      %3145 = vmatpush.msra.mxu0 0.0
      %3146 = vmatpush.msra.mxu0 0.0
      %3147 = vmatpush.msra.mxu0 0.0
      %3148 = vmatpush.msra.mxu0 0.0
      %3149 = vmatpush.msra.mxu0 0.0
      %3150 = vmatpush.msra.mxu0 0.0
      %3151 = vmatpush.msra.mxu0 0.0
      %3152 = vmatpush.msra.mxu0 0.0
      %3153 = vmatpush.msra.mxu0 0.0
      %3154 = vmatpush.msra.mxu0 0.0
      %3155 = vmatpush.msra.mxu0 0.0
      %3156 = vmatpush.msra.mxu0 0.0
      %3157 = vmatpush.msra.mxu0 0.0
      %3158 = vmatpush.msra.mxu0 0.0
      %3159 = vmatpush.msra.mxu0 0.0
      %3160 = vmatpush.msra.mxu0 %v3143
      %3161 = vmatmul.f32.gmra.mxu0 %v3141
      %v3162 = vpop.f32.mrf.mxu0
      %v3163 = vadd.f32 0.0, %v3162
      %3164 = vdwg.mxu0
      %v3165 = vadd.f32 %v3133, %v3163
      %v3167 = vadd.f32 %v3135, %v3139
      %s3168 = scalar_lea.vmem %s3, 176
      %v3169 = vld [vmem:[%s3168] sm:$0xf]
      %3170 = vrot.lane.b32.xlu0 %v1763, 84
      %v3171 = vpop.permute.xlu0 %3170
      %v3173 = vsel %vm1770, %v3169, 0
      %v3175 = vsel %vm1774, %v3171, 0
      %3177 = vmatpush.msra.mxu0 0.0
      %3178 = vmatpush.msra.mxu0 0.0
      %3179 = vmatpush.msra.mxu0 0.0
      %3180 = vmatpush.msra.mxu0 0.0
      %3181 = vmatpush.msra.mxu0 0.0
      %3182 = vmatpush.msra.mxu0 0.0
      %3183 = vmatpush.msra.mxu0 0.0
      %3184 = vmatpush.msra.mxu0 0.0
      %3185 = vmatpush.msra.mxu0 0.0
      %3186 = vmatpush.msra.mxu0 0.0
      %3187 = vmatpush.msra.mxu0 0.0
      %3188 = vmatpush.msra.mxu0 0.0
      %3189 = vmatpush.msra.mxu0 0.0
      %3190 = vmatpush.msra.mxu0 0.0
      %3191 = vmatpush.msra.mxu0 0.0
      %3192 = vmatpush.msra.mxu0 %v3175
      %3193 = vmatmul.f32.gmra.mxu0 %v3173
      %v3194 = vpop.f32.mrf.mxu0
      %v3195 = vadd.f32 0.0, %v3194
      %3196 = vdwg.mxu0
      %v3197 = vadd.f32 %v3165, %v3195
      %v3199 = vadd.f32 %v3167, %v3171
      %s3200 = scalar_lea.vmem %s3, 180
      %v3201 = vld [vmem:[%s3200] sm:$0xf]
      %3202 = vrot.lane.b32.xlu0 %v1763, 83
      %v3203 = vpop.permute.xlu0 %3202
      %v3205 = vsel %vm1770, %v3201, 0
      %v3207 = vsel %vm1774, %v3203, 0
      %3209 = vmatpush.msra.mxu0 0.0
      %3210 = vmatpush.msra.mxu0 0.0
      %3211 = vmatpush.msra.mxu0 0.0
      %3212 = vmatpush.msra.mxu0 0.0
      %3213 = vmatpush.msra.mxu0 0.0
      %3214 = vmatpush.msra.mxu0 0.0
      %3215 = vmatpush.msra.mxu0 0.0
      %3216 = vmatpush.msra.mxu0 0.0
      %3217 = vmatpush.msra.mxu0 0.0
      %3218 = vmatpush.msra.mxu0 0.0
      %3219 = vmatpush.msra.mxu0 0.0
      %3220 = vmatpush.msra.mxu0 0.0
      %3221 = vmatpush.msra.mxu0 0.0
      %3222 = vmatpush.msra.mxu0 0.0
      %3223 = vmatpush.msra.mxu0 0.0
      %3224 = vmatpush.msra.mxu0 %v3207
      %3225 = vmatmul.f32.gmra.mxu0 %v3205
      %v3226 = vpop.f32.mrf.mxu0
      %v3227 = vadd.f32 0.0, %v3226
      %3228 = vdwg.mxu0
      %v3229 = vadd.f32 %v3197, %v3227
      %v3231 = vadd.f32 %v3199, %v3203
      %s3232 = scalar_lea.vmem %s3, 184
      %v3233 = vld [vmem:[%s3232] sm:$0xf]
      %3234 = vrot.lane.b32.xlu0 %v1763, 82
      %v3235 = vpop.permute.xlu0 %3234
      %v3237 = vsel %vm1770, %v3233, 0
      %v3239 = vsel %vm1774, %v3235, 0
      %3241 = vmatpush.msra.mxu0 0.0
      %3242 = vmatpush.msra.mxu0 0.0
      %3243 = vmatpush.msra.mxu0 0.0
      %3244 = vmatpush.msra.mxu0 0.0
      %3245 = vmatpush.msra.mxu0 0.0
      %3246 = vmatpush.msra.mxu0 0.0
      %3247 = vmatpush.msra.mxu0 0.0
      %3248 = vmatpush.msra.mxu0 0.0
      %3249 = vmatpush.msra.mxu0 0.0
      %3250 = vmatpush.msra.mxu0 0.0
      %3251 = vmatpush.msra.mxu0 0.0
      %3252 = vmatpush.msra.mxu0 0.0
      %3253 = vmatpush.msra.mxu0 0.0
      %3254 = vmatpush.msra.mxu0 0.0
      %3255 = vmatpush.msra.mxu0 0.0
      %3256 = vmatpush.msra.mxu0 %v3239
      %3257 = vmatmul.f32.gmra.mxu0 %v3237
      %v3258 = vpop.f32.mrf.mxu0
      %v3259 = vadd.f32 0.0, %v3258
      %3260 = vdwg.mxu0
      %v3261 = vadd.f32 %v3229, %v3259
      %v3263 = vadd.f32 %v3231, %v3235
      %s3264 = scalar_lea.vmem %s3, 188
      %v3265 = vld [vmem:[%s3264] sm:$0xf]
      %3266 = vrot.lane.b32.xlu0 %v1763, 81
      %v3267 = vpop.permute.xlu0 %3266
      %v3269 = vsel %vm1770, %v3265, 0
      %v3271 = vsel %vm1774, %v3267, 0
      %3273 = vmatpush.msra.mxu0 0.0
      %3274 = vmatpush.msra.mxu0 0.0
      %3275 = vmatpush.msra.mxu0 0.0
      %3276 = vmatpush.msra.mxu0 0.0
      %3277 = vmatpush.msra.mxu0 0.0
      %3278 = vmatpush.msra.mxu0 0.0
      %3279 = vmatpush.msra.mxu0 0.0
      %3280 = vmatpush.msra.mxu0 0.0
      %3281 = vmatpush.msra.mxu0 0.0
      %3282 = vmatpush.msra.mxu0 0.0
      %3283 = vmatpush.msra.mxu0 0.0
      %3284 = vmatpush.msra.mxu0 0.0
      %3285 = vmatpush.msra.mxu0 0.0
      %3286 = vmatpush.msra.mxu0 0.0
      %3287 = vmatpush.msra.mxu0 0.0
      %3288 = vmatpush.msra.mxu0 %v3271
      %3289 = vmatmul.f32.gmra.mxu0 %v3269
      %v3290 = vpop.f32.mrf.mxu0
      %v3291 = vadd.f32 0.0, %v3290
      %3292 = vdwg.mxu0
      %v3293 = vadd.f32 %v3261, %v3291
      %v3295 = vadd.f32 %v3263, %v3267
      %s3296 = scalar_lea.vmem %s3, 192
      %v3297 = vld [vmem:[%s3296] sm:$0xf]
      %3298 = vrot.lane.b32.xlu0 %v1763, 80
      %v3299 = vpop.permute.xlu0 %3298
      %v3301 = vsel %vm1770, %v3297, 0
      %v3303 = vsel %vm1774, %v3299, 0
      %3305 = vmatpush.msra.mxu0 0.0
      %3306 = vmatpush.msra.mxu0 0.0
      %3307 = vmatpush.msra.mxu0 0.0
      %3308 = vmatpush.msra.mxu0 0.0
      %3309 = vmatpush.msra.mxu0 0.0
      %3310 = vmatpush.msra.mxu0 0.0
      %3311 = vmatpush.msra.mxu0 0.0
      %3312 = vmatpush.msra.mxu0 0.0
      %3313 = vmatpush.msra.mxu0 0.0
      %3314 = vmatpush.msra.mxu0 0.0
      %3315 = vmatpush.msra.mxu0 0.0
      %3316 = vmatpush.msra.mxu0 0.0
      %3317 = vmatpush.msra.mxu0 0.0
      %3318 = vmatpush.msra.mxu0 0.0
      %3319 = vmatpush.msra.mxu0 0.0
      %3320 = vmatpush.msra.mxu0 %v3303
      %3321 = vmatmul.f32.gmra.mxu0 %v3301
      %v3322 = vpop.f32.mrf.mxu0
      %v3323 = vadd.f32 0.0, %v3322
      %3324 = vdwg.mxu0
      %v3325 = vadd.f32 %v3293, %v3323
      %v3327 = vadd.f32 %v3295, %v3299
      %v3328 = vld [vmem:[%s4] sm:$0xf]
      %3330 = vset.pattern.permute.xlu0 0
      %3331 = vperm.xlu0 %3330, %v3328
      %v3332 = vpop.permute.xlu0 %3331
      %v3334 = vadd.f32 %v3325, %v3332
      %v3335 = vmax.f32 %v3334, 0.0
      %v3336 = vmul.f32 %v3327, 0.020408163
      %v3337 = vadd.f32 %v3335, %v3336
      %v3338 = vld [vmem:[%s5] sm:$0xff]
      %v3339 = vld [vmem:[%s5 + $0x8] sm:$0xff]
      %v3340 = vld [vmem:[%s5 + $0x10] sm:$0xff]
      %v3341 = vld [vmem:[%s5 + $0x18] sm:$0xff]
      %v3342 = vld [vmem:[%s5 + $0x20] sm:$0xff]
      %v3343 = vld [vmem:[%s5 + $0x28] sm:$0xff]
      %v3344 = vld [vmem:[%s5 + $0x30] sm:$0xff]
      %v3345 = vld [vmem:[%s5 + $0x38] sm:$0xff]
      %vm3346 = vcmask 261120
      %v3348 = vsel %vm3346, %v3337, 0
      %3350 = vmatpush.msra.mxu0 0.0
      %3351 = vmatpush.msra.mxu0 0.0
      %3352 = vmatpush.msra.mxu0 0.0
      %3353 = vmatpush.msra.mxu0 0.0
      %3354 = vmatpush.msra.mxu0 0.0
      %3355 = vmatpush.msra.mxu0 0.0
      %3356 = vmatpush.msra.mxu0 0.0
      %3357 = vmatpush.msra.mxu0 0.0
      %3358 = vmatpush.msra.mxu0 0.0
      %3359 = vmatpush.msra.mxu0 0.0
      %3360 = vmatpush.msra.mxu0 0.0
      %3361 = vmatpush.msra.mxu0 0.0
      %3362 = vmatpush.msra.mxu0 %v3344
      %3363 = vmatpush.msra.mxu0 %v3342
      %3364 = vmatpush.msra.mxu0 %v3340
      %3365 = vmatpush.msra.mxu0 %v3338
      %3366 = vmatmul.f32.gmra.mxu0 %v3348
      %v3367 = vpop.f32.mrf.mxu0
      %v3368 = vadd.f32 0.0, %v3367
      %3369 = vdwg.mxu0
      %3370 = vmatpush.msra.mxu0 0.0
      %3371 = vmatpush.msra.mxu0 0.0
      %3372 = vmatpush.msra.mxu0 0.0
      %3373 = vmatpush.msra.mxu0 0.0
      %3374 = vmatpush.msra.mxu0 0.0
      %3375 = vmatpush.msra.mxu0 0.0
      %3376 = vmatpush.msra.mxu0 0.0
      %3377 = vmatpush.msra.mxu0 0.0
      %3378 = vmatpush.msra.mxu0 0.0
      %3379 = vmatpush.msra.mxu0 0.0
      %3380 = vmatpush.msra.mxu0 0.0
      %3381 = vmatpush.msra.mxu0 0.0
      %3382 = vmatpush.msra.mxu0 %v3345
      %3383 = vmatpush.msra.mxu0 %v3343
      %3384 = vmatpush.msra.mxu0 %v3341
      %3385 = vmatpush.msra.mxu0 %v3339
      %3386 = vmatmul.f32.gmra.mxu0 %v3348
      %v3387 = vpop.f32.mrf.mxu0
      %v3388 = vadd.f32 0.0, %v3387
      %3389 = vdwg.mxu0
      %s3390 = scalar_lea.vmem %s5, 64
      %v3391 = vld [vmem:[%s3390] sm:$0xff]
      %v3392 = vld [vmem:[%s3390 + $0x8] sm:$0xff]
      %v3393 = vld [vmem:[%s3390 + $0x10] sm:$0xff]
      %v3394 = vld [vmem:[%s3390 + $0x18] sm:$0xff]
      %v3395 = vld [vmem:[%s3390 + $0x20] sm:$0xff]
      %v3396 = vld [vmem:[%s3390 + $0x28] sm:$0xff]
      %v3397 = vld [vmem:[%s3390 + $0x30] sm:$0xff]
      %v3398 = vld [vmem:[%s3390 + $0x38] sm:$0xff]
      %3399 = vmatpush.msra.mxu0 0.0
      %3400 = vmatpush.msra.mxu0 0.0
      %3401 = vmatpush.msra.mxu0 0.0
      %3402 = vmatpush.msra.mxu0 0.0
      %3403 = vmatpush.msra.mxu0 0.0
      %3404 = vmatpush.msra.mxu0 0.0
      %3405 = vmatpush.msra.mxu0 0.0
      %3406 = vmatpush.msra.mxu0 0.0
      %3407 = vmatpush.msra.mxu0 0.0
      %3408 = vmatpush.msra.mxu0 0.0
      %3409 = vmatpush.msra.mxu0 0.0
      %3410 = vmatpush.msra.mxu0 0.0
      %3411 = vmatpush.msra.mxu0 %v3397
      %3412 = vmatpush.msra.mxu0 %v3395
      %3413 = vmatpush.msra.mxu0 %v3393
      %3414 = vmatpush.msra.mxu0 %v3391
      %3415 = vmatmul.f32.gmra.mxu0 %v3348
      %v3416 = vpop.f32.mrf.mxu0
      %v3417 = vadd.f32 0.0, %v3416
      %3418 = vdwg.mxu0
      %3419 = vmatpush.msra.mxu0 0.0
      %3420 = vmatpush.msra.mxu0 0.0
      %3421 = vmatpush.msra.mxu0 0.0
      %3422 = vmatpush.msra.mxu0 0.0
      %3423 = vmatpush.msra.mxu0 0.0
      %3424 = vmatpush.msra.mxu0 0.0
      %3425 = vmatpush.msra.mxu0 0.0
      %3426 = vmatpush.msra.mxu0 0.0
      %3427 = vmatpush.msra.mxu0 0.0
      %3428 = vmatpush.msra.mxu0 0.0
      %3429 = vmatpush.msra.mxu0 0.0
      %3430 = vmatpush.msra.mxu0 0.0
      %3431 = vmatpush.msra.mxu0 %v3398
      %3432 = vmatpush.msra.mxu0 %v3396
      %3433 = vmatpush.msra.mxu0 %v3394
      %3434 = vmatpush.msra.mxu0 %v3392
      %3435 = vmatmul.f32.gmra.mxu0 %v3348
      %v3436 = vpop.f32.mrf.mxu0
      %v3437 = vadd.f32 0.0, %v3436
      %3438 = vdwg.mxu0
      %v3439 = vmax.f32 %v3368, %v3417
      %v3440 = vmax.f32 %v3388, %v3437
      %s3441 = scalar_lea.vmem %s5, 128
      %v3442 = vld [vmem:[%s3441] sm:$0xff]
      %v3443 = vld [vmem:[%s3441 + $0x8] sm:$0xff]
      %v3444 = vld [vmem:[%s3441 + $0x10] sm:$0xff]
      %v3445 = vld [vmem:[%s3441 + $0x18] sm:$0xff]
      %v3446 = vld [vmem:[%s3441 + $0x20] sm:$0xff]
      %v3447 = vld [vmem:[%s3441 + $0x28] sm:$0xff]
      %v3448 = vld [vmem:[%s3441 + $0x30] sm:$0xff]
      %v3449 = vld [vmem:[%s3441 + $0x38] sm:$0xff]
      %3450 = vmatpush.msra.mxu0 0.0
      %3451 = vmatpush.msra.mxu0 0.0
      %3452 = vmatpush.msra.mxu0 0.0
      %3453 = vmatpush.msra.mxu0 0.0
      %3454 = vmatpush.msra.mxu0 0.0
      %3455 = vmatpush.msra.mxu0 0.0
      %3456 = vmatpush.msra.mxu0 0.0
      %3457 = vmatpush.msra.mxu0 0.0
      %3458 = vmatpush.msra.mxu0 0.0
      %3459 = vmatpush.msra.mxu0 0.0
      %3460 = vmatpush.msra.mxu0 0.0
      %3461 = vmatpush.msra.mxu0 0.0
      %3462 = vmatpush.msra.mxu0 %v3448
      %3463 = vmatpush.msra.mxu0 %v3446
      %3464 = vmatpush.msra.mxu0 %v3444
      %3465 = vmatpush.msra.mxu0 %v3442
      %3466 = vmatmul.f32.gmra.mxu0 %v3348
      %v3467 = vpop.f32.mrf.mxu0
      %v3468 = vadd.f32 0.0, %v3467
      %3469 = vdwg.mxu0
      %3470 = vmatpush.msra.mxu0 0.0
      %3471 = vmatpush.msra.mxu0 0.0
      %3472 = vmatpush.msra.mxu0 0.0
      %3473 = vmatpush.msra.mxu0 0.0
      %3474 = vmatpush.msra.mxu0 0.0
      %3475 = vmatpush.msra.mxu0 0.0
      %3476 = vmatpush.msra.mxu0 0.0
      %3477 = vmatpush.msra.mxu0 0.0
      %3478 = vmatpush.msra.mxu0 0.0
      %3479 = vmatpush.msra.mxu0 0.0
      %3480 = vmatpush.msra.mxu0 0.0
      %3481 = vmatpush.msra.mxu0 0.0
      %3482 = vmatpush.msra.mxu0 %v3449
      %3483 = vmatpush.msra.mxu0 %v3447
      %3484 = vmatpush.msra.mxu0 %v3445
      %3485 = vmatpush.msra.mxu0 %v3443
      %3486 = vmatmul.f32.gmra.mxu0 %v3348
      %v3487 = vpop.f32.mrf.mxu0
      %v3488 = vadd.f32 0.0, %v3487
      %3489 = vdwg.mxu0
      %v3490 = vmax.f32 %v3439, %v3468
      %v3491 = vmax.f32 %v3440, %v3488
      %v3494 = vrot.slane %v3491, 4
      %v3495 = vsel %vm1774, %v3490, %v3494
      %vm3497 = vcmask 474116
      %vm3498 = vmor %vm3497, %vm1774
      %3499 = vst.msk [vmem:[%s282] sm:$0xff] %vm3498, %v3495
      %v3500 = vlaneseq
      %v3501 = vshrl.u32 %v3500, 7
      %v3502 = vadd.s32 %v3501, 8
      %v3503 = vlaneseq
      %v3504 = vand.u32 %v3503, 127
      %v3505 = vadd.s32 %v3504, 128
      %v3506 = vmul.u32 %v3501, 10
      %v3507 = vmul.u32 %v3502, 10
      %vm3508 = vcmp.ge.s32.totalorder %v3504, %v3506
      %vm3509 = vcmp.ge.s32.totalorder %v3505, %v3506
      %vm3510 = vcmp.ge.s32.totalorder %v3504, %v3507
      %vm3511 = vcmp.ge.s32.totalorder %v3505, %v3507
      %v3512 = vadd.s32 %v3506, 100
      %v3513 = vadd.s32 %v3507, 100
      %vm3514 = vcmp.lt.s32.totalorder %v3504, %v3512
      %vm3515 = vcmp.lt.s32.totalorder %v3505, %v3512
      %vm3516 = vcmp.lt.s32.totalorder %v3504, %v3513
      %vm3517 = vcmp.lt.s32.totalorder %v3505, %v3513
      %vm3518 = vmand %vm3508, %vm3514
      %vm3519 = vmand %vm3509, %vm3515
      %vm3520 = vmand %vm3510, %vm3516
      %vm3521 = vmand %vm3511, %vm3517
      %v3522 = vrot.slane %v3491, 7
      %vm3523 = vcmask 1040384
      %v3524 = vsel %vm3523, %v3490, %v3522
      %vm3525 = vcmask 1041409
      %v3526 = vsel %vm3525, %v3490, %v3522
      %v3527 = vrot.slane %v3526, 1
      %vm3528 = vcmask 1042434
      %v3529 = vsel %vm3528, %v3490, %v3522
      %v3530 = vrot.slane %v3529, 2
      %vm3531 = vcmask 1043459
      %v3532 = vsel %vm3531, %v3490, %v3522
      %v3533 = vrot.slane %v3532, 3
      %v3534 = vsel %vm3518, 1, 0
      %v3535 = vsel %vm3519, 1, 0
      %v3536 = vsel %vm3520, 1, 0
      %v3537 = vsel %vm3521, 1, 0
      %vm3538 = vcmp.eq.s32.totalorder %v3534, 1
      %vm3539 = vcmp.eq.s32.totalorder %v3535, 1
      %vm3540 = vcmp.eq.s32.totalorder %v3536, 1
      %vm3541 = vcmp.eq.s32.totalorder %v3537, 1
      %v3542 = vperm.slane %v3524, 0
      %v3543 = vperm.slane %v3524, 1
      %v3544 = vperm.slane %v3527, 0
      %v3545 = vperm.slane %v3527, 1
      %v3546 = vperm.slane %v3530, 0
      %v3547 = vperm.slane %v3530, 1
      %v3548 = vperm.slane %v3533, 0
      %v3549 = vperm.slane %v3533, 1
      %v3558 = vsel %vm3538, %v3542, -inf
      %v3559 = vsel %vm3539, %v3543, -inf
      %v3560 = vsel %vm3540, %v3542, -inf
      %v3561 = vsel %vm3541, %v3543, -inf
      %v3562 = vsel %vm3538, %v3544, -inf
      %v3563 = vsel %vm3539, %v3545, -inf
      %v3564 = vsel %vm3540, %v3544, -inf
      %v3565 = vsel %vm3541, %v3545, -inf
      %v3566 = vsel %vm3538, %v3546, -inf
      %v3567 = vsel %vm3539, %v3547, -inf
      %v3568 = vsel %vm3540, %v3546, -inf
      %v3569 = vsel %vm3541, %v3547, -inf
      %v3570 = vsel %vm3538, %v3548, -inf
      %v3571 = vsel %vm3539, %v3549, -inf
      %v3572 = vsel %vm3540, %v3548, -inf
      %v3573 = vsel %vm3541, %v3549, -inf
      %vm3574 = vcmask 474112
      %v3575 = vsel %vm3574, %v3559, -inf
      %v3576 = vmax.f32 %v3558, %v3575
      %3577 = vmax.xlane.f32.xlu0 %v3576
      %v3578 = vpop.xlane.xlu0 %3577
      %v3579 = vsel %vm3523, %v3560, -inf
      %vm3580 = vcmask 466944
      %v3581 = vsel %vm3580, %v3561, -inf
      %v3582 = vmax.f32 %v3579, %v3581
      %3583 = vmax.xlane.f32.xlu0 %v3582
      %v3584 = vpop.xlane.xlu0 %3583
      %v3585 = vsel %vm3574, %v3563, -inf
      %v3586 = vmax.f32 %v3562, %v3585
      %3587 = vmax.xlane.f32.xlu0 %v3586
      %v3588 = vpop.xlane.xlu0 %3587
      %v3589 = vsel %vm3523, %v3564, -inf
      %v3590 = vsel %vm3580, %v3565, -inf
      %v3591 = vmax.f32 %v3589, %v3590
      %3592 = vmax.xlane.f32.xlu0 %v3591
      %v3593 = vpop.xlane.xlu0 %3592
      %v3594 = vsel %vm3574, %v3567, -inf
      %v3595 = vmax.f32 %v3566, %v3594
      %3596 = vmax.xlane.f32.xlu0 %v3595
      %v3597 = vpop.xlane.xlu0 %3596
      %v3598 = vsel %vm3523, %v3568, -inf
      %v3599 = vsel %vm3580, %v3569, -inf
      %v3600 = vmax.f32 %v3598, %v3599
      %3601 = vmax.xlane.f32.xlu0 %v3600
      %v3602 = vpop.xlane.xlu0 %3601
      %v3603 = vsel %vm3574, %v3571, -inf
      %v3604 = vmax.f32 %v3570, %v3603
      %3605 = vmax.xlane.f32.xlu0 %v3604
      %v3606 = vpop.xlane.xlu0 %3605
      %v3607 = vsel %vm3523, %v3572, -inf
      %v3608 = vsel %vm3580, %v3573, -inf
      %v3609 = vmax.f32 %v3607, %v3608
      %3610 = vmax.xlane.f32.xlu0 %v3609
      %v3611 = vpop.xlane.xlu0 %3610
      %v3620 = vperm.slane %v3578, %v3504
      %v3621 = vadd.s32 %v3504, 4294967288
      %v3622 = vperm.slane %v3584, %v3621
      %vm3623 = vcmask 130112
      %v3624 = vsel %vm3623, %v3622, %v3620
      %v3625 = vperm.slane %v3588, %v3504
      %v3626 = vperm.slane %v3593, %v3621
      %v3627 = vsel %vm3623, %v3626, %v3625
      %v3628 = vperm.slane %v3597, %v3504
      %v3629 = vperm.slane %v3602, %v3621
      %v3630 = vsel %vm3623, %v3629, %v3628
      %v3631 = vperm.slane %v3606, %v3504
      %v3632 = vperm.slane %v3611, %v3621
      %v3633 = vsel %vm3623, %v3632, %v3631
      %v3634 = vsel %vm3525, %v3627, %v3624
      %v3635 = vsel %vm3528, %v3630, %v3634
      %v3636 = vsel %vm3531, %v3633, %v3635
      %vm3638 = vcmask 68608
      %v3639 = vsel %vm3638, %v3636, 0.0
      %3640 = vadd.xlane.f32.xlu0 %v3639
      %v3641 = vpop.xlane.xlu0 %3640
      %v3642 = vrcp.pop 9.0
      %v3643 = vmul.f32 9.0, %v3642
      %v3644 = vsub.f32 1.0, %v3643
      %v3645 = vmul.f32 %v3642, %v3644
      %v3646 = vadd.f32 %v3642, %v3645
      %vm3647 = vweird.f32 %v3642
      %v3648 = vsel %vm3647, %v3642, %v3646
      %v3649 = vmul.f32 %v3641, %v3648
      %vm3650 = vcmask 3072
      %3651 = vst.msk [vmem:[%s286] sm:$0xf] %vm3650, %v3649
      %p3652 = scmp.lt.s32.totalorder %s19, 1
      %s3653 = scalar_select %p3652, %s19, 1
      %s3654 = smul.addr %s3653, 2
      %s3655 = smul.addr %s3654, 4
      %s3656 = scalar_lea.vmem %s6, %s3655
      %p3657 = scmp.lt.s32.totalorder %s19, 1
      %s3658 = scalar_select %p3657, %s19, 1
      %s3659 = smul.addr %s3658, 4
      %s3660 = scalar_lea.vmem %s7, %s3659
      // Predicated region
      $region45: #{mplc_cnn_forward.1} parent=43 // pred_check
        %p3661 = pneg %p168
      $region46: #{mplc_cnn_forward.1} parent=43 // pred_check_branch
        %3663 = sbr.rel (%p3661) target = $region48
      $region47: #{mplc_cnn_forward.1} parent=43 // pred_region
        _
      $region48: #{mplc_cnn_forward.1} parent=43 // pred_fallthru
        _
      // Predicated region
      $region49: #{mplc_cnn_forward.1} parent=43 // pred_check
        %p3664 = pneg %p194
      $region50: #{mplc_cnn_forward.1} parent=43 // pred_check_branch
        %3666 = sbr.rel (%p3664) target = $region52
      $region51: #{mplc_cnn_forward.1} parent=43 // pred_region
        _
      $region52: #{mplc_cnn_forward.1} parent=43 // pred_fallthru
        _
    $region44: #{mplc_cnn_forward.1} parent=5 // pred_fallthru
      _
    %p3667 = scmp.le.s32.totalorder 2, %s14
    // Predicated region
    $region53: #{mplc_cnn_forward.1} parent=5 // pred_check
      %p3668 = pneg %p3667
    $region54: #{mplc_cnn_forward.1} parent=5 // pred_check_branch
      %3670 = sbr.rel (%p3668) target = $region56
    $region55: #{mplc_cnn_forward.1} parent=5 // pred_region
      %s3671 = ssub.s32 %s14, 2
      // Predicated region
      $region57: #{mplc_cnn_forward.1} parent=55 // pred_check
        %p3672 = pneg %p174
      $region58: #{mplc_cnn_forward.1} parent=55 // pred_check_branch
        %3674 = sbr.rel (%p3672) target = $region60
      $region59: #{mplc_cnn_forward.1} parent=55 // pred_region
        %p3675 = scmp.lt.s32.totalorder %s20, 1
        %s3676 = scalar_select %p3675, %s20, 1
        %s3677 = smul.addr %s3676, 2
        %s3678 = smul.addr %s3677, 4
        %s3679 = scalar_lea.vmem %s6, %s3678
      $region60: #{mplc_cnn_forward.1} parent=55 // pred_fallthru
        _
      // Predicated region
      $region61: #{mplc_cnn_forward.1} parent=55 // pred_check
        %p3680 = pneg %p200
      $region62: #{mplc_cnn_forward.1} parent=55 // pred_check_branch
        %3682 = sbr.rel (%p3680) target = $region64
      $region63: #{mplc_cnn_forward.1} parent=55 // pred_region
        %p3683 = scmp.lt.s32.totalorder %s20, 1
        %s3684 = scalar_select %p3683, %s20, 1
        %s3685 = smul.addr %s3684, 4
        %s3686 = scalar_lea.vmem %s7, %s3685
      $region64: #{mplc_cnn_forward.1} parent=55 // pred_fallthru
        _
    $region56: #{mplc_cnn_forward.1} parent=5 // pred_fallthru
      _
  $region6: #{mplc_cnn_forward.1} parent=0 // loop_footer
    %s18 = sadd.s32 1, %s14
  $region7: #{mplc_cnn_forward.1} parent=0 // loop_footer_branch
    %13 = sbr.rel target = $region3
  $region8: #{mplc_cnn_forward.1} parent=0 // loop_exit
    _

</llo_original>
